<compile_context>
chip_gen: v7x
topology: tpu7x:2x2x1
jax: 0.10.0
libtpu: 0.0.40
codegen_flags: <defaults>
</compile_context>

<pallas_src>
import functools

import jax
import jax.numpy as jnp
from jax import lax
from jax.experimental import pallas as pl
from jax.experimental.pallas import tpu as pltpu


def gelu_tanh(v):
    # TODO(synk): PyTorch nn.GELU defaults to the exact erf form; erf has no
    # guaranteed Mosaic lowering, so the tanh approximation is used here (the
    # pure-JAX reference below uses the same formula; diff vs erf-GELU ~1e-3).
    c = 0.7978845608028654  # sqrt(2/pi)
    return 0.5 * v * (1.0 + jnp.tanh(c * (v + 0.044715 * v * v * v)))


# 3x3 taps in the same (row-major) order as wd.reshape(M, 9).
_TAPS = ((-1, -1), (-1, 0), (-1, 1),
         (0, -1), (0, 0), (0, 1),
         (1, -1), (1, 0), (1, 1))


def _pick_tile_rows(H, W, C, M, itemsize):
    """Largest row-tile TH dividing H whose per-step working set fits a
    conservative VMEM budget (safe on v7x's 64 MiB physical VMEM)."""
    budget = 12 * 1024 * 1024

    def bytes_for(th):
        t = th * W
        x_blk = 2 * t * C * itemsize            # double-buffered x tile
        o_blk = 2 * t * C * itemsize            # double-buffered out tile
        scratch = (t + 4 * W) * M * 4           # halo h scratch (f32)
        temps = 5 * t * max(M, C) * 4           # acc / tap slice / masks / y
        return x_blk + o_blk + scratch + temps

    best = H
    for th in range(H, 0, -1):
        if H % th:
            continue
        if th != H and (th * W) % 8 != 0:       # (8,128) sublane constraint
            continue
        best = th
        if bytes_for(th) <= budget:
            return th
    return best                                  # smallest feasible tile


def _kernel(x_ref, xp_ref, xn_ref, w1_ref, b1_ref, dw_ref, bd_ref,
            w2_ref, b2_ref, o_ref, h_ref, *, W, TH):
    T = TH * W
    M = w1_ref.shape[1]
    t = pl.program_id(1)
    n_t = pl.num_programs(1)

    w1 = w1_ref[...]
    b1 = b1_ref[...]

    # --- 1x1 conv + GELU for the tile and its one-row halo (recomputed) ----
    hm = gelu_tanh(jnp.dot(x_ref[0], w1,
                           preferred_element_type=jnp.float32) + b1)       # (T, M)
    hp = gelu_tanh(jnp.dot(xp_ref[0, 0], w1,
                           preferred_element_type=jnp.float32) + b1)       # (W, M)
    hn = gelu_tanh(jnp.dot(xn_ref[0, 0], w1,
                           preferred_element_type=jnp.float32) + b1)       # (W, M)

    # Zero halo rows at image boundaries (== zero padding of the 3x3 conv).
    hp = hp * (t > 0).astype(jnp.float32)
    hn = hn * (t < n_t - 1).astype(jnp.float32)

    # --- halo scratch: [guard W | prev row W | tile T | next row W | guard W]
    zrow = jnp.zeros((W, M), jnp.float32)
    h_ref[0:W, :] = zrow
    h_ref[W:2 * W, :] = hp
    h_ref[2 * W:2 * W + T, :] = hm
    h_ref[2 * W + T:3 * W + T, :] = hn
    h_ref[3 * W + T:4 * W + T, :] = zrow

    # --- depthwise 3x3: nine static slices of the halo scratch --------------
    dw = dw_ref[...]                              # (9, M) per-channel taps
    acc = jnp.broadcast_to(bd_ref[...], (T, M))   # bias folded into init

    pos = lax.broadcasted_iota(jnp.int32, (T, M), 0)
    if W & (W - 1) == 0:
        col = jnp.bitwise_and(pos, W - 1)
    else:
        col = pos % W
    not_left = col != 0
    not_right = col != W - 1

    base = 2 * W
    for idx, (dy, dx) in enumerate(_TAPS):
        start = base + dy * W + dx
        s = h_ref[start:start + T, :]
        if dx == -1:
            s = jnp.where(not_left, s, 0.0)
        elif dx == 1:
            s = jnp.where(not_right, s, 0.0)
        acc = acc + s * dw[idx:idx + 1, :]

    d = jnp.maximum(acc, 0.0)                     # ReLU (bias already in acc)

    # --- final 1x1 conv ------------------------------------------------------
    y = jnp.dot(d.astype(w2_ref.dtype), w2_ref[...],
                preferred_element_type=jnp.float32) + b2_ref[...]
    o_ref[0] = y.astype(o_ref.dtype)


def local_integration(x, w1, b1, wd, bd, w2, b2, *, tile_rows=None):
    """Pallas TPU implementation of LocalIntegration.forward.

    x : (B, C, H, W)  NCHW
    w1: (M, C, 1, 1), b1: (M,)   -- Conv2d(dim, mid, 1)
    wd: (M, 1, 3, 3), bd: (M,)   -- Conv2d(mid, mid, 3, padding=1, groups=mid)
    w2: (C, M, 1, 1), b2: (C,)   -- Conv2d(mid, dim, 1)
    """
    B, C, H, W = x.shape
    M = w1.shape[0]
    HW = H * W

    # ---- hoisted layout transforms / casts (never redone per grid step) ----
    cdt = x.dtype
    w1_t = jnp.asarray(w1, cdt).reshape(M, C).T            # (C, M)
    w2_t = jnp.asarray(w2, cdt).reshape(C, M).T            # (M, C)
    dw_t = jnp.asarray(wd, jnp.float32).reshape(M, 9).T    # (9, M)
    b1_r = jnp.asarray(b1, jnp.float32).reshape(1, M)
    bd_r = jnp.asarray(bd, jnp.float32).reshape(1, M)
    b2_r = jnp.asarray(b2, jnp.float32).reshape(1, C)

    # NCHW -> NHWC: channels on lanes, spatial on sublanes.
    # TODO(synk): keep the surrounding model in NHWC to remove these two
    # full-tensor transposes (and the one on the output) at the graph level.
    x_nhwc = jnp.transpose(x, (0, 2, 3, 1))                # (B, H, W, C)
    x_flat = x_nhwc.reshape(B, HW, C)                      # (B, HW, C)

    TH = tile_rows if tile_rows is not None else _pick_tile_rows(
        H, W, C, M, x.dtype.itemsize)
    if H % TH != 0:
        raise ValueError(f"tile_rows={TH} must divide H={H}")
    if TH != H and (TH * W) % 8 != 0:
        raise ValueError("tile_rows * W must be a multiple of 8")
    nT = H // TH
    T = TH * W

    kernel = functools.partial(_kernel, W=W, TH=TH)

    prev_row = lambda b, t: (b, jnp.maximum(t * TH - 1, 0), 0, 0)
    next_row = lambda b, t: (b, jnp.minimum(t * TH + TH, H - 1), 0, 0)

    out_flat = pl.pallas_call(
        kernel,
        out_shape=jax.ShapeDtypeStruct((B, HW, C), x.dtype),
        grid_spec=pltpu.PrefetchScalarGridSpec(
            num_scalar_prefetch=0,
            grid=(B, nT),
            in_specs=[
                pl.BlockSpec((1, T, C), lambda b, t: (b, t, 0)),   # x tile
                pl.BlockSpec((1, 1, W, C), prev_row),              # row above
                pl.BlockSpec((1, 1, W, C), next_row),              # row below
                pl.BlockSpec((C, M), lambda b, t: (0, 0)),         # w1
                pl.BlockSpec((1, M), lambda b, t: (0, 0)),         # b1
                pl.BlockSpec((9, M), lambda b, t: (0, 0)),         # dw taps
                pl.BlockSpec((1, M), lambda b, t: (0, 0)),         # bd
                pl.BlockSpec((M, C), lambda b, t: (0, 0)),         # w2
                pl.BlockSpec((1, C), lambda b, t: (0, 0)),         # b2
            ],
            out_specs=pl.BlockSpec((1, T, C), lambda b, t: (b, t, 0)),
            scratch_shapes=[pltpu.VMEM((T + 4 * W, M), jnp.float32)],
        ),
        compiler_params=pltpu.CompilerParams(
            dimension_semantics=("parallel", "parallel"),
            vmem_limit_bytes=48 * 1024 * 1024,
        ),
    )(x_flat, x_nhwc, x_nhwc, w1_t, b1_r, dw_t, bd_r, w2_t, b2_r)

    return jnp.transpose(out_flat.reshape(B, H, W, C), (0, 3, 1, 2))


def reference(x, w1, b1, wd, bd, w2, b2):
    """Plain-JAX (XLA) reference with identical semantics."""
    B, C, H, W = x.shape
    M = w1.shape[0]
    h = jnp.einsum('bchw,mc->bmhw', x, w1.reshape(M, C)) + b1[None, :, None, None]
    h = gelu_tanh(h)
    d = jax.lax.conv_general_dilated(
        h, wd, window_strides=(1, 1), padding=((1, 1), (1, 1)),
        dimension_numbers=('NCHW', 'OIHW', 'NCHW'),
        feature_group_count=M)
    d = jnp.maximum(d + bd[None, :, None, None], 0.0)
    y = jnp.einsum('bmhw,cm->bchw', d, w2.reshape(C, M)) + b2[None, :, None, None]
    return y


if __name__ == "__main__":
    key = jax.random.PRNGKey(0)
    ks = jax.random.split(key, 7)

    B, dim, H, W = 2, 4, 16, 16
    ratio = 1
    mid = round(ratio * dim)

    x = jax.random.normal(ks[0], (B, dim, H, W), dtype=jnp.float32)
    w1 = jax.random.normal(ks[1], (mid, dim, 1, 1), dtype=jnp.float32) * (1.0 / dim ** 0.5)
    b1 = jax.random.normal(ks[2], (mid,), dtype=jnp.float32) * 0.1
    wd = jax.random.normal(ks[3], (mid, 1, 3, 3), dtype=jnp.float32) * (1.0 / 3.0)
    bd = jax.random.normal(ks[4], (mid,), dtype=jnp.float32) * 0.1
    w2 = jax.random.normal(ks[5], (dim, mid, 1, 1), dtype=jnp.float32) * (1.0 / mid ** 0.5)
    b2 = jax.random.normal(ks[6], (dim,), dtype=jnp.float32) * 0.1

    ref = reference(x, w1, b1, wd, bd, w2, b2)

    # 1) Default tile selection (whole image per batch at this tiny shape).
    out = jax.block_until_ready(local_integration(x, w1, b1, wd, bd, w2, b2))
    assert out.shape == ref.shape
    err = float(jnp.max(jnp.abs(out - ref)))
    assert jnp.allclose(out, ref, atol=1e-4, rtol=1e-4), err

    # 2) Forced spatial tiling to exercise the halo / boundary-gating path.
    out_tiled = jax.block_until_ready(
        local_integration(x, w1, b1, wd, bd, w2, b2, tile_rows=4))
    err_t = float(jnp.max(jnp.abs(out_tiled - ref)))
    assert jnp.allclose(out_tiled, ref, atol=1e-4, rtol=1e-4), err_t

    print("KERNEL_OK")
</pallas_src>

<mosaic_0001>
module attributes {stable_mosaic.version = 11 : i64} {
  func.func @_kernel(%arg0: i32, %arg1: i32, %arg2: memref<1x256x4xf32, #tpu.memory_space<vmem>>, %arg3: memref<1x1x16x4xf32, #tpu.memory_space<vmem>>, %arg4: memref<1x1x16x4xf32, #tpu.memory_space<vmem>>, %arg5: memref<4x4xf32, #tpu.memory_space<vmem>>, %arg6: memref<1x4xf32, #tpu.memory_space<vmem>>, %arg7: memref<9x4xf32, #tpu.memory_space<vmem>>, %arg8: memref<1x4xf32, #tpu.memory_space<vmem>>, %arg9: memref<4x4xf32, #tpu.memory_space<vmem>>, %arg10: memref<1x4xf32, #tpu.memory_space<vmem>>, %arg11: memref<1x256x4xf32, #tpu.memory_space<vmem>>, %arg12: memref<320x4xf32, #tpu.memory_space<vmem>>) attributes {dimension_semantics = [#tpu.dimension_semantics<parallel>, #tpu.dimension_semantics<parallel>], iteration_bounds = array<i64: 2, 1>, scalar_prefetch = 0 : i64, scratch_operands = 1 : i64, tpu.core_type = #tpu.core_type<tc>, window_params = [{transform_indices = @transform_0, window_bounds = array<i64: 1, 256, 4>}, {transform_indices = @transform_1, window_bounds = array<i64: 1, 1, 16, 4>}, {transform_indices = @transform_2, window_bounds = array<i64: 1, 1, 16, 4>}, {pipeline_mode = #tpu.pipeline_mode<synchronous>, transform_indices = @transform_3, window_bounds = array<i64: 4, 4>}, {pipeline_mode = #tpu.pipeline_mode<synchronous>, transform_indices = @transform_4, window_bounds = array<i64: 1, 4>}, {pipeline_mode = #tpu.pipeline_mode<synchronous>, transform_indices = @transform_5, window_bounds = array<i64: 9, 4>}, {pipeline_mode = #tpu.pipeline_mode<synchronous>, transform_indices = @transform_6, window_bounds = array<i64: 1, 4>}, {pipeline_mode = #tpu.pipeline_mode<synchronous>, transform_indices = @transform_7, window_bounds = array<i64: 4, 4>}, {pipeline_mode = #tpu.pipeline_mode<synchronous>, transform_indices = @transform_8, window_bounds = array<i64: 1, 4>}, {transform_indices = @transform_9, window_bounds = array<i64: 1, 256, 4>}]} {
    %c0 = arith.constant 0 : index
    %c0_0 = arith.constant 0 : index
    %0 = vector.load %arg5[%c0, %c0_0] : memref<4x4xf32, #tpu.memory_space<vmem>>, vector<4x4xf32>
    %c0_1 = arith.constant 0 : index
    %c0_2 = arith.constant 0 : index
    %1 = vector.load %arg6[%c0_1, %c0_2] : memref<1x4xf32, #tpu.memory_space<vmem>>, vector<1x4xf32>
    %c0_3 = arith.constant 0 : index
    %c0_4 = arith.constant 0 : index
    %c0_5 = arith.constant 0 : index
    %2 = vector.load %arg2[%c0_3, %c0_4, %c0_5] : memref<1x256x4xf32, #tpu.memory_space<vmem>>, vector<1x256x4xf32>
    %3 = vector.shape_cast %2 : vector<1x256x4xf32> to vector<256x4xf32>
    %cst = arith.constant dense<0.000000e+00> : vector<256x4xf32>
    %4 = tpu.matmul %3, %0, %cst {dimension_numbers = #tpu.dot_dimension_numbers<[1], [0], [0], [1], [0, 0, 1, 1], [], []>} : vector<256x4xf32>, vector<4x4xf32>, vector<256x4xf32> -> vector<256x4xf32>
    %5 = vector.broadcast %1 : vector<1x4xf32> to vector<256x4xf32>
    %6 = arith.addf %4, %5 : vector<256x4xf32>
    %cst_6 = arith.constant 5.000000e-01 : f32
    %7 = vector.broadcast %cst_6 : f32 to vector<256x4xf32>
    %8 = arith.mulf %7, %6 : vector<256x4xf32>
    %cst_7 = arith.constant 4.471500e-02 : f32
    %9 = vector.broadcast %cst_7 : f32 to vector<256x4xf32>
    %10 = arith.mulf %9, %6 : vector<256x4xf32>
    %11 = arith.mulf %10, %6 : vector<256x4xf32>
    %12 = arith.mulf %11, %6 : vector<256x4xf32>
    %13 = arith.addf %6, %12 : vector<256x4xf32>
    %cst_8 = arith.constant 0.797884583 : f32
    %14 = vector.broadcast %cst_8 : f32 to vector<256x4xf32>
    %15 = arith.mulf %14, %13 : vector<256x4xf32>
    %16 = math.tanh %15 : vector<256x4xf32>
    %cst_9 = arith.constant 1.000000e+00 : f32
    %17 = vector.broadcast %cst_9 : f32 to vector<256x4xf32>
    %18 = arith.addf %17, %16 : vector<256x4xf32>
    %19 = arith.mulf %8, %18 : vector<256x4xf32>
    %c0_10 = arith.constant 0 : index
    %c0_11 = arith.constant 0 : index
    %c0_12 = arith.constant 0 : index
    %c0_13 = arith.constant 0 : index
    %20 = vector.load %arg3[%c0_10, %c0_11, %c0_12, %c0_13] : memref<1x1x16x4xf32, #tpu.memory_space<vmem>>, vector<1x1x16x4xf32>
    %21 = vector.shape_cast %20 : vector<1x1x16x4xf32> to vector<16x4xf32>
    %cst_14 = arith.constant dense<0.000000e+00> : vector<16x4xf32>
    %22 = tpu.matmul %21, %0, %cst_14 {dimension_numbers = #tpu.dot_dimension_numbers<[1], [0], [0], [1], [0, 0, 1, 1], [], []>} : vector<16x4xf32>, vector<4x4xf32>, vector<16x4xf32> -> vector<16x4xf32>
    %23 = vector.broadcast %1 : vector<1x4xf32> to vector<16x4xf32>
    %24 = arith.addf %22, %23 : vector<16x4xf32>
    %cst_15 = arith.constant 5.000000e-01 : f32
    %25 = vector.broadcast %cst_15 : f32 to vector<16x4xf32>
    %26 = arith.mulf %25, %24 : vector<16x4xf32>
    %cst_16 = arith.constant 4.471500e-02 : f32
    %27 = vector.broadcast %cst_16 : f32 to vector<16x4xf32>
    %28 = arith.mulf %27, %24 : vector<16x4xf32>
    %29 = arith.mulf %28, %24 : vector<16x4xf32>
    %30 = arith.mulf %29, %24 : vector<16x4xf32>
    %31 = arith.addf %24, %30 : vector<16x4xf32>
    %cst_17 = arith.constant 0.797884583 : f32
    %32 = vector.broadcast %cst_17 : f32 to vector<16x4xf32>
    %33 = arith.mulf %32, %31 : vector<16x4xf32>
    %34 = math.tanh %33 : vector<16x4xf32>
    %cst_18 = arith.constant 1.000000e+00 : f32
    %35 = vector.broadcast %cst_18 : f32 to vector<16x4xf32>
    %36 = arith.addf %35, %34 : vector<16x4xf32>
    %37 = arith.mulf %26, %36 : vector<16x4xf32>
    %c0_19 = arith.constant 0 : index
    %c0_20 = arith.constant 0 : index
    %c0_21 = arith.constant 0 : index
    %c0_22 = arith.constant 0 : index
    %38 = vector.load %arg4[%c0_19, %c0_20, %c0_21, %c0_22] : memref<1x1x16x4xf32, #tpu.memory_space<vmem>>, vector<1x1x16x4xf32>
    %39 = vector.shape_cast %38 : vector<1x1x16x4xf32> to vector<16x4xf32>
    %cst_23 = arith.constant dense<0.000000e+00> : vector<16x4xf32>
    %40 = tpu.matmul %39, %0, %cst_23 {dimension_numbers = #tpu.dot_dimension_numbers<[1], [0], [0], [1], [0, 0, 1, 1], [], []>} : vector<16x4xf32>, vector<4x4xf32>, vector<16x4xf32> -> vector<16x4xf32>
    %41 = vector.broadcast %1 : vector<1x4xf32> to vector<16x4xf32>
    %42 = arith.addf %40, %41 : vector<16x4xf32>
    %cst_24 = arith.constant 5.000000e-01 : f32
    %43 = vector.broadcast %cst_24 : f32 to vector<16x4xf32>
    %44 = arith.mulf %43, %42 : vector<16x4xf32>
    %cst_25 = arith.constant 4.471500e-02 : f32
    %45 = vector.broadcast %cst_25 : f32 to vector<16x4xf32>
    %46 = arith.mulf %45, %42 : vector<16x4xf32>
    %47 = arith.mulf %46, %42 : vector<16x4xf32>
    %48 = arith.mulf %47, %42 : vector<16x4xf32>
    %49 = arith.addf %42, %48 : vector<16x4xf32>
    %cst_26 = arith.constant 0.797884583 : f32
    %50 = vector.broadcast %cst_26 : f32 to vector<16x4xf32>
    %51 = arith.mulf %50, %49 : vector<16x4xf32>
    %52 = math.tanh %51 : vector<16x4xf32>
    %cst_27 = arith.constant 1.000000e+00 : f32
    %53 = vector.broadcast %cst_27 : f32 to vector<16x4xf32>
    %54 = arith.addf %53, %52 : vector<16x4xf32>
    %55 = arith.mulf %44, %54 : vector<16x4xf32>
    %c0_i32 = arith.constant 0 : i32
    %56 = arith.cmpi sgt, %arg1, %c0_i32 : i32
    %57 = arith.extui %56 : i1 to i32
    %58 = arith.sitofp %57 : i32 to f32
    %59 = vector.broadcast %58 : f32 to vector<16x4xf32>
    %60 = arith.mulf %37, %59 : vector<16x4xf32>
    %c0_i32_28 = arith.constant 0 : i32
    %61 = arith.cmpi slt, %arg1, %c0_i32_28 : i32
    %62 = arith.extui %61 : i1 to i32
    %63 = arith.sitofp %62 : i32 to f32
    %64 = vector.broadcast %63 : f32 to vector<16x4xf32>
    %65 = arith.mulf %55, %64 : vector<16x4xf32>
    %cst_29 = arith.constant 0.000000e+00 : f32
    %66 = vector.broadcast %cst_29 : f32 to vector<16x4xf32>
    %c0_30 = arith.constant 0 : index
    %c0_31 = arith.constant 0 : index
    %67 = vector.load %arg12[%c0_30, %c0_31] : memref<320x4xf32, #tpu.memory_space<vmem>>, vector<16x4xf32>
    tpu.vector_store %arg12[%c0_30, %c0_31], %66 {strides = array<i32>} : memref<320x4xf32, #tpu.memory_space<vmem>>, vector<16x4xf32>,
    %c16 = arith.constant 16 : index
    %c0_32 = arith.constant 0 : index
    %68 = vector.load %arg12[%c16, %c0_32] : memref<320x4xf32, #tpu.memory_space<vmem>>, vector<16x4xf32>
    tpu.vector_store %arg12[%c16, %c0_32], %60 {strides = array<i32>} : memref<320x4xf32, #tpu.memory_space<vmem>>, vector<16x4xf32>,
    %c32 = arith.constant 32 : index
    %c0_33 = arith.constant 0 : index
    %69 = vector.load %arg12[%c32, %c0_33] : memref<320x4xf32, #tpu.memory_space<vmem>>, vector<256x4xf32>
    tpu.vector_store %arg12[%c32, %c0_33], %19 {strides = array<i32>} : memref<320x4xf32, #tpu.memory_space<vmem>>, vector<256x4xf32>,
    %c288 = arith.constant 288 : index
    %c0_34 = arith.constant 0 : index
    %70 = vector.load %arg12[%c288, %c0_34] : memref<320x4xf32, #tpu.memory_space<vmem>>, vector<16x4xf32>
    tpu.vector_store %arg12[%c288, %c0_34], %65 {strides = array<i32>} : memref<320x4xf32, #tpu.memory_space<vmem>>, vector<16x4xf32>,
    %c304 = arith.constant 304 : index
    %c0_35 = arith.constant 0 : index
    %71 = vector.load %arg12[%c304, %c0_35] : memref<320x4xf32, #tpu.memory_space<vmem>>, vector<16x4xf32>
    tpu.vector_store %arg12[%c304, %c0_35], %66 {strides = array<i32>} : memref<320x4xf32, #tpu.memory_space<vmem>>, vector<16x4xf32>,
    %c0_36 = arith.constant 0 : index
    %c0_37 = arith.constant 0 : index
    %72 = vector.load %arg7[%c0_36, %c0_37] : memref<9x4xf32, #tpu.memory_space<vmem>>, vector<9x4xf32>
    %c0_38 = arith.constant 0 : index
    %c0_39 = arith.constant 0 : index
    %73 = vector.load %arg8[%c0_38, %c0_39] : memref<1x4xf32, #tpu.memory_space<vmem>>, vector<1x4xf32>
    %74 = vector.shape_cast %73 : vector<1x4xf32> to vector<1x4xf32>
    %75 = vector.broadcast %74 : vector<1x4xf32> to vector<256x4xf32>
    %76 = tpu.iota {dimensions = array<i32: 0>} : vector<256x4xi32>
    %c15_i32 = arith.constant 15 : i32
    %77 = vector.broadcast %c15_i32 : i32 to vector<256x4xi32>
    %78 = arith.andi %76, %77 : vector<256x4xi32>
    %c0_i32_40 = arith.constant 0 : i32
    %79 = vector.broadcast %c0_i32_40 : i32 to vector<256x4xi32>
    %80 = arith.cmpi ne, %78, %79 : vector<256x4xi32>
    %c15_i32_41 = arith.constant 15 : i32
    %81 = vector.broadcast %c15_i32_41 : i32 to vector<256x4xi32>
    %82 = arith.cmpi ne, %78, %81 : vector<256x4xi32>
    %c15 = arith.constant 15 : index
    %c0_42 = arith.constant 0 : index
    %83 = vector.load %arg12[%c15, %c0_42] : memref<320x4xf32, #tpu.memory_space<vmem>>, vector<256x4xf32>
    %cst_43 = arith.constant 0.000000e+00 : f32
    %84 = vector.broadcast %cst_43 : f32 to vector<256x4xf32>
    %85 = arith.select %80, %83, %84 : vector<256x4xi1>, vector<256x4xf32>
    %86 = vector.extract_strided_slice %72 {offsets = [0, 0], sizes = [1, 4], strides = [1, 1]} : vector<9x4xf32> to vector<1x4xf32>
    %87 = vector.broadcast %86 : vector<1x4xf32> to vector<256x4xf32>
    %88 = arith.mulf %85, %87 : vector<256x4xf32>
    %89 = arith.addf %75, %88 : vector<256x4xf32>
    %c16_44 = arith.constant 16 : index
    %c0_45 = arith.constant 0 : index
    %90 = vector.load %arg12[%c16_44, %c0_45] : memref<320x4xf32, #tpu.memory_space<vmem>>, vector<256x4xf32>
    %91 = vector.extract_strided_slice %72 {offsets = [1, 0], sizes = [1, 4], strides = [1, 1]} : vector<9x4xf32> to vector<1x4xf32>
    %92 = vector.broadcast %91 : vector<1x4xf32> to vector<256x4xf32>
    %93 = arith.mulf %90, %92 : vector<256x4xf32>
    %94 = arith.addf %89, %93 : vector<256x4xf32>
    %c17 = arith.constant 17 : index
    %c0_46 = arith.constant 0 : index
    %95 = vector.load %arg12[%c17, %c0_46] : memref<320x4xf32, #tpu.memory_space<vmem>>, vector<256x4xf32>
    %cst_47 = arith.constant 0.000000e+00 : f32
    %96 = vector.broadcast %cst_47 : f32 to vector<256x4xf32>
    %97 = arith.select %82, %95, %96 : vector<256x4xi1>, vector<256x4xf32>
    %98 = vector.extract_strided_slice %72 {offsets = [2, 0], sizes = [1, 4], strides = [1, 1]} : vector<9x4xf32> to vector<1x4xf32>
    %99 = vector.broadcast %98 : vector<1x4xf32> to vector<256x4xf32>
    %100 = arith.mulf %97, %99 : vector<256x4xf32>
    %101 = arith.addf %94, %100 : vector<256x4xf32>
    %c31 = arith.constant 31 : index
    %c0_48 = arith.constant 0 : index
    %102 = vector.load %arg12[%c31, %c0_48] : memref<320x4xf32, #tpu.memory_space<vmem>>, vector<256x4xf32>
    %cst_49 = arith.constant 0.000000e+00 : f32
    %103 = vector.broadcast %cst_49 : f32 to vector<256x4xf32>
    %104 = arith.select %80, %102, %103 : vector<256x4xi1>, vector<256x4xf32>
    %105 = vector.extract_strided_slice %72 {offsets = [3, 0], sizes = [1, 4], strides = [1, 1]} : vector<9x4xf32> to vector<1x4xf32>
    %106 = vector.broadcast %105 : vector<1x4xf32> to vector<256x4xf32>
    %107 = arith.mulf %104, %106 : vector<256x4xf32>
    %108 = arith.addf %101, %107 : vector<256x4xf32>
    %c32_50 = arith.constant 32 : index
    %c0_51 = arith.constant 0 : index
    %109 = vector.load %arg12[%c32_50, %c0_51] : memref<320x4xf32, #tpu.memory_space<vmem>>, vector<256x4xf32>
    %110 = vector.extract_strided_slice %72 {offsets = [4, 0], sizes = [1, 4], strides = [1, 1]} : vector<9x4xf32> to vector<1x4xf32>
    %111 = vector.broadcast %110 : vector<1x4xf32> to vector<256x4xf32>
    %112 = arith.mulf %109, %111 : vector<256x4xf32>
    %113 = arith.addf %108, %112 : vector<256x4xf32>
    %c33 = arith.constant 33 : index
    %c0_52 = arith.constant 0 : index
    %114 = vector.load %arg12[%c33, %c0_52] : memref<320x4xf32, #tpu.memory_space<vmem>>, vector<256x4xf32>
    %cst_53 = arith.constant 0.000000e+00 : f32
    %115 = vector.broadcast %cst_53 : f32 to vector<256x4xf32>
    %116 = arith.select %82, %114, %115 : vector<256x4xi1>, vector<256x4xf32>
    %117 = vector.extract_strided_slice %72 {offsets = [5, 0], sizes = [1, 4], strides = [1, 1]} : vector<9x4xf32> to vector<1x4xf32>
    %118 = vector.broadcast %117 : vector<1x4xf32> to vector<256x4xf32>
    %119 = arith.mulf %116, %118 : vector<256x4xf32>
    %120 = arith.addf %113, %119 : vector<256x4xf32>
    %c47 = arith.constant 47 : index
    %c0_54 = arith.constant 0 : index
    %121 = vector.load %arg12[%c47, %c0_54] : memref<320x4xf32, #tpu.memory_space<vmem>>, vector<256x4xf32>
    %cst_55 = arith.constant 0.000000e+00 : f32
    %122 = vector.broadcast %cst_55 : f32 to vector<256x4xf32>
    %123 = arith.select %80, %121, %122 : vector<256x4xi1>, vector<256x4xf32>
    %124 = vector.extract_strided_slice %72 {offsets = [6, 0], sizes = [1, 4], strides = [1, 1]} : vector<9x4xf32> to vector<1x4xf32>
    %125 = vector.broadcast %124 : vector<1x4xf32> to vector<256x4xf32>
    %126 = arith.mulf %123, %125 : vector<256x4xf32>
    %127 = arith.addf %120, %126 : vector<256x4xf32>
    %c48 = arith.constant 48 : index
    %c0_56 = arith.constant 0 : index
    %128 = vector.load %arg12[%c48, %c0_56] : memref<320x4xf32, #tpu.memory_space<vmem>>, vector<256x4xf32>
    %129 = vector.extract_strided_slice %72 {offsets = [7, 0], sizes = [1, 4], strides = [1, 1]} : vector<9x4xf32> to vector<1x4xf32>
    %130 = vector.broadcast %129 : vector<1x4xf32> to vector<256x4xf32>
    %131 = arith.mulf %128, %130 : vector<256x4xf32>
    %132 = arith.addf %127, %131 : vector<256x4xf32>
    %c49 = arith.constant 49 : index
    %c0_57 = arith.constant 0 : index
    %133 = vector.load %arg12[%c49, %c0_57] : memref<320x4xf32, #tpu.memory_space<vmem>>, vector<256x4xf32>
    %cst_58 = arith.constant 0.000000e+00 : f32
    %134 = vector.broadcast %cst_58 : f32 to vector<256x4xf32>
    %135 = arith.select %82, %133, %134 : vector<256x4xi1>, vector<256x4xf32>
    %136 = vector.extract_strided_slice %72 {offsets = [8, 0], sizes = [1, 4], strides = [1, 1]} : vector<9x4xf32> to vector<1x4xf32>
    %137 = vector.broadcast %136 : vector<1x4xf32> to vector<256x4xf32>
    %138 = arith.mulf %135, %137 : vector<256x4xf32>
    %139 = arith.addf %132, %138 : vector<256x4xf32>
    %cst_59 = arith.constant 0.000000e+00 : f32
    %140 = vector.broadcast %cst_59 : f32 to vector<256x4xf32>
    %141 = arith.maximumf %139, %140 : vector<256x4xf32>
    %c0_60 = arith.constant 0 : index
    %c0_61 = arith.constant 0 : index
    %142 = vector.load %arg9[%c0_60, %c0_61] : memref<4x4xf32, #tpu.memory_space<vmem>>, vector<4x4xf32>
    %cst_62 = arith.constant dense<0.000000e+00> : vector<256x4xf32>
    %143 = tpu.matmul %141, %142, %cst_62 {dimension_numbers = #tpu.dot_dimension_numbers<[1], [0], [0], [1], [0, 0, 1, 1], [], []>} : vector<256x4xf32>, vector<4x4xf32>, vector<256x4xf32> -> vector<256x4xf32>
    %c0_63 = arith.constant 0 : index
    %c0_64 = arith.constant 0 : index
    %144 = vector.load %arg10[%c0_63, %c0_64] : memref<1x4xf32, #tpu.memory_space<vmem>>, vector<1x4xf32>
    %145 = vector.broadcast %144 : vector<1x4xf32> to vector<256x4xf32>
    %146 = arith.addf %143, %145 : vector<256x4xf32>
    %c0_65 = arith.constant 0 : index
    %c0_66 = arith.constant 0 : index
    %c0_67 = arith.constant 0 : index
    %147 = vector.load %arg11[%c0_65, %c0_66, %c0_67] : memref<1x256x4xf32, #tpu.memory_space<vmem>>, vector<1x256x4xf32>
    %148 = vector.shape_cast %147 : vector<1x256x4xf32> to vector<256x4xf32>
    %149 = vector.shape_cast %146 : vector<256x4xf32> to vector<1x256x4xf32>
    tpu.vector_store %arg11[%c0_65, %c0_66, %c0_67], %149 {strides = array<i32>} : memref<1x256x4xf32, #tpu.memory_space<vmem>>, vector<1x256x4xf32>,
    return
  }
  func.func @transform_0(%arg0: i32, %arg1: i32) -> (i32, i32, i32) {
    %c0_i32 = arith.constant 0 : i32
    %c0_i32_0 = arith.constant 0 : i32
    return %arg0, %arg1, %c0_i32 : i32, i32, i32
  }
  func.func @transform_1(%arg0: i32, %arg1: i32) -> (i32, i32, i32, i32) {
    %c16_i32 = arith.constant 16 : i32
    %0 = arith.muli %arg1, %c16_i32 : i32
    %c1_i32 = arith.constant 1 : i32
    %1 = arith.subi %0, %c1_i32 : i32
    %c0_i32 = arith.constant 0 : i32
    %2 = arith.maxsi %1, %c0_i32 : i32
    %c0_i32_0 = arith.constant 0 : i32
    %c0_i32_1 = arith.constant 0 : i32
    %c0_i32_2 = arith.constant 0 : i32
    return %arg0, %2, %c0_i32_0, %c0_i32_1 : i32, i32, i32, i32
  }
  func.func @transform_2(%arg0: i32, %arg1: i32) -> (i32, i32, i32, i32) {
    %c16_i32 = arith.constant 16 : i32
    %0 = arith.muli %arg1, %c16_i32 : i32
    %c16_i32_0 = arith.constant 16 : i32
    %1 = arith.addi %0, %c16_i32_0 : i32
    %c15_i32 = arith.constant 15 : i32
    %2 = arith.minsi %1, %c15_i32 : i32
    %c0_i32 = arith.constant 0 : i32
    %c0_i32_1 = arith.constant 0 : i32
    %c0_i32_2 = arith.constant 0 : i32
    return %arg0, %2, %c0_i32, %c0_i32_1 : i32, i32, i32, i32
  }
  func.func @transform_3(%arg0: i32, %arg1: i32) -> (i32, i32) {
    %c0_i32 = arith.constant 0 : i32
    %c0_i32_0 = arith.constant 0 : i32
    %c0_i32_1 = arith.constant 0 : i32
    return %c0_i32, %c0_i32_0 : i32, i32
  }
  func.func @transform_4(%arg0: i32, %arg1: i32) -> (i32, i32) {
    %c0_i32 = arith.constant 0 : i32
    %c0_i32_0 = arith.constant 0 : i32
    %c0_i32_1 = arith.constant 0 : i32
    return %c0_i32, %c0_i32_0 : i32, i32
  }
  func.func @transform_5(%arg0: i32, %arg1: i32) -> (i32, i32) {
    %c0_i32 = arith.constant 0 : i32
    %c0_i32_0 = arith.constant 0 : i32
    %c0_i32_1 = arith.constant 0 : i32
    return %c0_i32, %c0_i32_0 : i32, i32
  }
  func.func @transform_6(%arg0: i32, %arg1: i32) -> (i32, i32) {
    %c0_i32 = arith.constant 0 : i32
    %c0_i32_0 = arith.constant 0 : i32
    %c0_i32_1 = arith.constant 0 : i32
    return %c0_i32, %c0_i32_0 : i32, i32
  }
  func.func @transform_7(%arg0: i32, %arg1: i32) -> (i32, i32) {
    %c0_i32 = arith.constant 0 : i32
    %c0_i32_0 = arith.constant 0 : i32
    %c0_i32_1 = arith.constant 0 : i32
    return %c0_i32, %c0_i32_0 : i32, i32
  }
  func.func @transform_8(%arg0: i32, %arg1: i32) -> (i32, i32) {
    %c0_i32 = arith.constant 0 : i32
    %c0_i32_0 = arith.constant 0 : i32
    %c0_i32_1 = arith.constant 0 : i32
    return %c0_i32, %c0_i32_0 : i32, i32
  }
  func.func @transform_9(%arg0: i32, %arg1: i32) -> (i32, i32, i32) {
    %c0_i32 = arith.constant 0 : i32
    %c0_i32_0 = arith.constant 0 : i32
    return %arg0, %arg1, %c0_i32 : i32, i32, i32
  }
}

</mosaic_0001>

<llo_original>
// kernel: tpu_custom_call.1
$region0: #{tpu_custom_call.1}
  #allocation0 [shape = 'u32[]', space=smem, size = 0x4, offset = 0x4, fixed_abs, tag = 'smem constant byte address 0x4 - core index']
  #allocation1 [shape = 'u32[144,128]{1,0:T(1,128)}', space=vmem, size = 0x12000, scoped, tag = 'internal scratch']
  #allocation2 [shape = 'f32[320,4]{1,0:T(8,128)}', space=vmem, size = 0x28000, scoped, tag = 'scratch operand']
  %s0 = inlined_call_operand.vmem [shape: f32[2,256,4], index: 0, kind: input, shape index: {}]
  %s1 = inlined_call_operand.vmem [shape: f32[2,16,16,4], index: 1, kind: input, shape index: {}]
  %s2 = inlined_call_operand.vmem [shape: f32[2,16,16,4], index: 2, kind: input, shape index: {}]
  %s3 = inlined_call_operand.vmem [shape: f32[4,4], index: 3, kind: input, shape index: {}]
  %s4 = inlined_call_operand.vmem [shape: f32[1,4], index: 4, kind: input, shape index: {}]
  %s5 = inlined_call_operand.vmem [shape: f32[9,4], index: 5, kind: input, shape index: {}]
  %s6 = inlined_call_operand.vmem [shape: f32[1,4], index: 6, kind: input, shape index: {}]
  %s7 = inlined_call_operand.vmem [shape: f32[4,4], index: 7, kind: input, shape index: {}]
  %s8 = inlined_call_operand.vmem [shape: f32[1,4], index: 8, kind: input, shape index: {}]
  %s9 = inlined_call_operand.vmem [shape: f32[2,256,4], index: 9, kind: output, shape index: {}]
  %s10 = sld [smem:[#allocation0]]
  $region69: #{tpu_custom_call.1} parent=0
    _
  %s12 = ssub.s32 1, %s10
  %s13 = scalar_select 0, %s12, %s10
  loop: start=0, step=1, limit=4
  $region2: #{tpu_custom_call.1} parent=0 // loop_pre_header
    _
  $region3: #{tpu_custom_call.1} parent=0 // loop_header
    %s15 = sphi 0, %s19
    %p16 = scmp.ge.s32.totalorder %s15, 4
    %s22 = sphi 0, %s34
    %s23 = sphi 0, %s30
    %s24 = sphi 0, %s22
    %s25 = sphi 0, %s23
    %s26 = sphi 0, %s24
    %s27 = sphi 0, %s25
    %s39 = sphi 0, %s41
    %s42 = sphi 0, %s39
    %s43 = sphi 0, %s42
    %s59 = sphi 0, %s43
    %s75 = sphi 0, %s77
    %s78 = sphi 0, %s75
    %s79 = sphi 0, %s78
    %s95 = sphi 0, %s79
    %s111 = sphi 0, %s113
    %s114 = sphi 0, %s111
    %s115 = sphi 0, %s114
    %s131 = sphi 0, %s115
    %s135 = sphi 0, %s135
    %s137 = sphi 0, %s135
    %s138 = sphi 0, %s137
    %s152 = sphi 0, %s138
    %s156 = sphi 0, %s156
    %s158 = sphi 0, %s156
    %s159 = sphi 0, %s158
    %s173 = sphi 0, %s159
    %s177 = sphi 0, %s177
    %s179 = sphi 0, %s177
    %s180 = sphi 0, %s179
    %s194 = sphi 0, %s180
    %s198 = sphi 0, %s198
    %s200 = sphi 0, %s198
    %s201 = sphi 0, %s200
    %s215 = sphi 0, %s201
    %s219 = sphi 0, %s219
    %s221 = sphi 0, %s219
    %s222 = sphi 0, %s221
    %s236 = sphi 0, %s222
    %s240 = sphi 0, %s240
    %s242 = sphi 0, %s240
    %s243 = sphi 0, %s242
    %s257 = sphi 0, %s243
    %s265 = sphi 0, %s267
    %s268 = sphi 0, %s265
    %s269 = sphi 0, %s268
    %s285 = sphi 0, %s269
  $region4: #{tpu_custom_call.1} parent=0 // loop_header_branch
    %18 = sbr.rel (%p16) target = $region8
  $region5: #{tpu_custom_call.1} parent=0 // loop_body
    %s20 = ssub.s32 %s15, 1
    %s21 = ssub.s32 %s15, 2
    %s28 = sadd.s32 1, %s23
    %p29 = scmp.ge.s32.totalorder %s28, 1
    %s30 = scalar_select %p29, 0, %s28
    %s31 = sadd.s32 1, %s22
    %s32 = scalar_select %p29, %s31, %s22
    %p33 = scmp.ge.s32.totalorder %s32, 2
    %s34 = scalar_select %p33, 0, %s32
    %s35 = ssub.s32 %s22, %s34
    %s36 = ssub.s32 %s23, %s30
    %s37 = sor.u32 %s35, %s36
    %p38 = scmp.eq.s32.totalorder %s37, 0
    %s40 = sadd.s32 %s39, 1
    %s41 = scalar_select %p38, %s39, %s40
    %p44 = pneg %p38
    %p45 = scmp.eq.s32.totalorder %s15, 1
    %p46 = por %p44, %p45
    %p47 = scmp.ne.s32.totalorder %s39, %s42
    %p48 = scmp.eq.s32.totalorder %s15, 0
    %p49 = por %p47, %p48
    %p50 = scmp.ne.s32.totalorder %s39, %s42
    %p51 = scmp.eq.s32.totalorder %s20, 1
    %p52 = por %p50, %p51
    %p53 = scmp.ne.s32.totalorder %s42, %s43
    %p54 = scmp.eq.s32.totalorder %s20, 0
    %p55 = por %p53, %p54
    %p56 = scmp.ne.s32.totalorder %s42, %s43
    %p57 = scmp.eq.s32.totalorder %s21, 1
    %p58 = por %p56, %p57
    %p60 = scmp.ne.s32.totalorder %s43, %s59
    %p61 = scmp.eq.s32.totalorder %s21, 0
    %p62 = por %p60, %p61
    %s63 = smul.u32 %s23, 16
    %s64 = ssub.s32 %s63, 1
    %p65 = scmp.gt.s32.totalorder %s64, 0
    %s66 = scalar_select %p65, %s64, 0
    %s67 = smul.u32 %s30, 16
    %s68 = ssub.s32 %s67, 1
    %p69 = scmp.gt.s32.totalorder %s68, 0
    %s70 = scalar_select %p69, %s68, 0
    %s71 = ssub.s32 %s22, %s34
    %s72 = ssub.s32 %s66, %s70
    %s73 = sor.u32 %s71, %s72
    %p74 = scmp.eq.s32.totalorder %s73, 0
    %s76 = sadd.s32 %s75, 1
    %s77 = scalar_select %p74, %s75, %s76
    %p80 = pneg %p74
    %p81 = scmp.eq.s32.totalorder %s15, 1
    %p82 = por %p80, %p81
    %p83 = scmp.ne.s32.totalorder %s75, %s78
    %p84 = scmp.eq.s32.totalorder %s15, 0
    %p85 = por %p83, %p84
    %p86 = scmp.ne.s32.totalorder %s75, %s78
    %p87 = scmp.eq.s32.totalorder %s20, 1
    %p88 = por %p86, %p87
    %p89 = scmp.ne.s32.totalorder %s78, %s79
    %p90 = scmp.eq.s32.totalorder %s20, 0
    %p91 = por %p89, %p90
    %p92 = scmp.ne.s32.totalorder %s78, %s79
    %p93 = scmp.eq.s32.totalorder %s21, 1
    %p94 = por %p92, %p93
    %p96 = scmp.ne.s32.totalorder %s79, %s95
    %p97 = scmp.eq.s32.totalorder %s21, 0
    %p98 = por %p96, %p97
    %s99 = smul.u32 %s23, 16
    %s100 = sadd.s32 %s99, 16
    %p101 = scmp.lt.s32.totalorder %s100, 15
    %s102 = scalar_select %p101, %s100, 15
    %s103 = smul.u32 %s30, 16
    %s104 = sadd.s32 %s103, 16
    %p105 = scmp.lt.s32.totalorder %s104, 15
    %s106 = scalar_select %p105, %s104, 15
    %s107 = ssub.s32 %s22, %s34
    %s108 = ssub.s32 %s102, %s106
    %s109 = sor.u32 %s107, %s108
    %p110 = scmp.eq.s32.totalorder %s109, 0
    %s112 = sadd.s32 %s111, 1
    %s113 = scalar_select %p110, %s111, %s112
    %p116 = pneg %p110
    %p117 = scmp.eq.s32.totalorder %s15, 1
    %p118 = por %p116, %p117
    %p119 = scmp.ne.s32.totalorder %s111, %s114
    %p120 = scmp.eq.s32.totalorder %s15, 0
    %p121 = por %p119, %p120
    %p122 = scmp.ne.s32.totalorder %s111, %s114
    %p123 = scmp.eq.s32.totalorder %s20, 1
    %p124 = por %p122, %p123
    %p125 = scmp.ne.s32.totalorder %s114, %s115
    %p126 = scmp.eq.s32.totalorder %s20, 0
    %p127 = por %p125, %p126
    %p128 = scmp.ne.s32.totalorder %s114, %s115
    %p129 = scmp.eq.s32.totalorder %s21, 1
    %p130 = por %p128, %p129
    %p132 = scmp.ne.s32.totalorder %s115, %s131
    %p133 = scmp.eq.s32.totalorder %s21, 0
    %p134 = por %p132, %p133
    %s136 = sadd.s32 %s135, 1
    %p139 = scmp.eq.s32.totalorder %s15, 1
    %p140 = scmp.ne.s32.totalorder %s135, %s137
    %p141 = scmp.eq.s32.totalorder %s15, 0
    %p142 = por %p140, %p141
    %p143 = scmp.ne.s32.totalorder %s135, %s137
    %p144 = scmp.eq.s32.totalorder %s20, 1
    %p145 = por %p143, %p144
    %p146 = scmp.ne.s32.totalorder %s137, %s138
    %p147 = scmp.eq.s32.totalorder %s20, 0
    %p148 = por %p146, %p147
    %p149 = scmp.ne.s32.totalorder %s137, %s138
    %p150 = scmp.eq.s32.totalorder %s21, 1
    %p151 = por %p149, %p150
    %p153 = scmp.ne.s32.totalorder %s138, %s152
    %p154 = scmp.eq.s32.totalorder %s21, 0
    %p155 = por %p153, %p154
    %s157 = sadd.s32 %s156, 1
    %p160 = scmp.eq.s32.totalorder %s15, 1
    %p161 = scmp.ne.s32.totalorder %s156, %s158
    %p162 = scmp.eq.s32.totalorder %s15, 0
    %p163 = por %p161, %p162
    %p164 = scmp.ne.s32.totalorder %s156, %s158
    %p165 = scmp.eq.s32.totalorder %s20, 1
    %p166 = por %p164, %p165
    %p167 = scmp.ne.s32.totalorder %s158, %s159
    %p168 = scmp.eq.s32.totalorder %s20, 0
    %p169 = por %p167, %p168
    %p170 = scmp.ne.s32.totalorder %s158, %s159
    %p171 = scmp.eq.s32.totalorder %s21, 1
    %p172 = por %p170, %p171
    %p174 = scmp.ne.s32.totalorder %s159, %s173
    %p175 = scmp.eq.s32.totalorder %s21, 0
    %p176 = por %p174, %p175
    %s178 = sadd.s32 %s177, 1
    %p181 = scmp.eq.s32.totalorder %s15, 1
    %p182 = scmp.ne.s32.totalorder %s177, %s179
    %p183 = scmp.eq.s32.totalorder %s15, 0
    %p184 = por %p182, %p183
    %p185 = scmp.ne.s32.totalorder %s177, %s179
    %p186 = scmp.eq.s32.totalorder %s20, 1
    %p187 = por %p185, %p186
    %p188 = scmp.ne.s32.totalorder %s179, %s180
    %p189 = scmp.eq.s32.totalorder %s20, 0
    %p190 = por %p188, %p189
    %p191 = scmp.ne.s32.totalorder %s179, %s180
    %p192 = scmp.eq.s32.totalorder %s21, 1
    %p193 = por %p191, %p192
    %p195 = scmp.ne.s32.totalorder %s180, %s194
    %p196 = scmp.eq.s32.totalorder %s21, 0
    %p197 = por %p195, %p196
    %s199 = sadd.s32 %s198, 1
    %p202 = scmp.eq.s32.totalorder %s15, 1
    %p203 = scmp.ne.s32.totalorder %s198, %s200
    %p204 = scmp.eq.s32.totalorder %s15, 0
    %p205 = por %p203, %p204
    %p206 = scmp.ne.s32.totalorder %s198, %s200
    %p207 = scmp.eq.s32.totalorder %s20, 1
    %p208 = por %p206, %p207
    %p209 = scmp.ne.s32.totalorder %s200, %s201
    %p210 = scmp.eq.s32.totalorder %s20, 0
    %p211 = por %p209, %p210
    %p212 = scmp.ne.s32.totalorder %s200, %s201
    %p213 = scmp.eq.s32.totalorder %s21, 1
    %p214 = por %p212, %p213
    %p216 = scmp.ne.s32.totalorder %s201, %s215
    %p217 = scmp.eq.s32.totalorder %s21, 0
    %p218 = por %p216, %p217
    %s220 = sadd.s32 %s219, 1
    %p223 = scmp.eq.s32.totalorder %s15, 1
    %p224 = scmp.ne.s32.totalorder %s219, %s221
    %p225 = scmp.eq.s32.totalorder %s15, 0
    %p226 = por %p224, %p225
    %p227 = scmp.ne.s32.totalorder %s219, %s221
    %p228 = scmp.eq.s32.totalorder %s20, 1
    %p229 = por %p227, %p228
    %p230 = scmp.ne.s32.totalorder %s221, %s222
    %p231 = scmp.eq.s32.totalorder %s20, 0
    %p232 = por %p230, %p231
    %p233 = scmp.ne.s32.totalorder %s221, %s222
    %p234 = scmp.eq.s32.totalorder %s21, 1
    %p235 = por %p233, %p234
    %p237 = scmp.ne.s32.totalorder %s222, %s236
    %p238 = scmp.eq.s32.totalorder %s21, 0
    %p239 = por %p237, %p238
    %s241 = sadd.s32 %s240, 1
    %p244 = scmp.eq.s32.totalorder %s15, 1
    %p245 = scmp.ne.s32.totalorder %s240, %s242
    %p246 = scmp.eq.s32.totalorder %s15, 0
    %p247 = por %p245, %p246
    %p248 = scmp.ne.s32.totalorder %s240, %s242
    %p249 = scmp.eq.s32.totalorder %s20, 1
    %p250 = por %p248, %p249
    %p251 = scmp.ne.s32.totalorder %s242, %s243
    %p252 = scmp.eq.s32.totalorder %s20, 0
    %p253 = por %p251, %p252
    %p254 = scmp.ne.s32.totalorder %s242, %s243
    %p255 = scmp.eq.s32.totalorder %s21, 1
    %p256 = por %p254, %p255
    %p258 = scmp.ne.s32.totalorder %s243, %s257
    %p259 = scmp.eq.s32.totalorder %s21, 0
    %p260 = por %p258, %p259
    %s261 = ssub.s32 %s22, %s34
    %s262 = ssub.s32 %s23, %s30
    %s263 = sor.u32 %s261, %s262
    %p264 = scmp.eq.s32.totalorder %s263, 0
    %s266 = sadd.s32 %s265, 1
    %s267 = scalar_select %p264, %s265, %s266
    %p270 = pneg %p264
    %p271 = scmp.eq.s32.totalorder %s15, 1
    %p272 = por %p270, %p271
    %p273 = scmp.ne.s32.totalorder %s265, %s268
    %p274 = scmp.eq.s32.totalorder %s15, 0
    %p275 = por %p273, %p274
    %p276 = scmp.ne.s32.totalorder %s265, %s268
    %p277 = scmp.eq.s32.totalorder %s20, 1
    %p278 = por %p276, %p277
    %p279 = scmp.ne.s32.totalorder %s268, %s269
    %p280 = scmp.eq.s32.totalorder %s20, 0
    %p281 = por %p279, %p280
    %p282 = scmp.ne.s32.totalorder %s268, %s269
    %p283 = scmp.eq.s32.totalorder %s21, 1
    %p284 = por %p282, %p283
    %p286 = scmp.ne.s32.totalorder %s269, %s285
    %p287 = scmp.eq.s32.totalorder %s21, 0
    %p288 = por %p286, %p287
    %p289 = scmp.le.s32.totalorder 1, %s15
    %p290 = scmp.lt.s32.totalorder %s15, 3
    %p291 = pnand %p289, %p290
    %p292 = pneg %p291
    // Predicated region
    $region9: #{tpu_custom_call.1} parent=5 // pred_check
      _
    $region10: #{tpu_custom_call.1} parent=5 // pred_check_branch
      %294 = sbr.rel (%p291) target = $region12
    $region11: #{tpu_custom_call.1} parent=5 // pred_region
      %s295 = ssub.s32 %s15, 1
      // Predicated region
      $region13: #{tpu_custom_call.1} parent=11 // pred_check
        %p296 = pneg %p148
      $region14: #{tpu_custom_call.1} parent=11 // pred_check_branch
        %298 = sbr.rel (%p296) target = $region16
      $region15: #{tpu_custom_call.1} parent=11 // pred_region
        _
      $region16: #{tpu_custom_call.1} parent=11 // pred_fallthru
        _
      // Predicated region
      $region17: #{tpu_custom_call.1} parent=11 // pred_check
        %p299 = pneg %p169
      $region18: #{tpu_custom_call.1} parent=11 // pred_check_branch
        %301 = sbr.rel (%p299) target = $region20
      $region19: #{tpu_custom_call.1} parent=11 // pred_region
        _
      $region20: #{tpu_custom_call.1} parent=11 // pred_fallthru
        _
      // Predicated region
      $region21: #{tpu_custom_call.1} parent=11 // pred_check
        %p302 = pneg %p190
      $region22: #{tpu_custom_call.1} parent=11 // pred_check_branch
        %304 = sbr.rel (%p302) target = $region24
      $region23: #{tpu_custom_call.1} parent=11 // pred_region
        _
      $region24: #{tpu_custom_call.1} parent=11 // pred_fallthru
        _
      // Predicated region
      $region25: #{tpu_custom_call.1} parent=11 // pred_check
        %p305 = pneg %p211
      $region26: #{tpu_custom_call.1} parent=11 // pred_check_branch
        %307 = sbr.rel (%p305) target = $region28
      $region27: #{tpu_custom_call.1} parent=11 // pred_region
        _
      $region28: #{tpu_custom_call.1} parent=11 // pred_fallthru
        _
      // Predicated region
      $region29: #{tpu_custom_call.1} parent=11 // pred_check
        %p308 = pneg %p232
      $region30: #{tpu_custom_call.1} parent=11 // pred_check_branch
        %310 = sbr.rel (%p308) target = $region32
      $region31: #{tpu_custom_call.1} parent=11 // pred_region
        _
      $region32: #{tpu_custom_call.1} parent=11 // pred_fallthru
        _
      // Predicated region
      $region33: #{tpu_custom_call.1} parent=11 // pred_check
        %p311 = pneg %p253
      $region34: #{tpu_custom_call.1} parent=11 // pred_check_branch
        %313 = sbr.rel (%p311) target = $region36
      $region35: #{tpu_custom_call.1} parent=11 // pred_region
        _
      $region36: #{tpu_custom_call.1} parent=11 // pred_fallthru
        _
    $region12: #{tpu_custom_call.1} parent=5 // pred_fallthru
      _
    %p314 = scmp.lt.s32.totalorder %s15, 2
    // Predicated region
    $region37: #{tpu_custom_call.1} parent=5 // pred_check
      %p315 = pneg %p314
    $region38: #{tpu_custom_call.1} parent=5 // pred_check_branch
      %317 = sbr.rel (%p315) target = $region40
    $region39: #{tpu_custom_call.1} parent=5 // pred_region
      // Predicated region
      $region41: #{tpu_custom_call.1} parent=39 // pred_check
        %p318 = pneg %p49
      $region42: #{tpu_custom_call.1} parent=39 // pred_check_branch
        %320 = sbr.rel (%p318) target = $region44
      $region43: #{tpu_custom_call.1} parent=39 // pred_region
        %s321 = smul.u32 32, %s23
        %p322 = scmp.lt.s32.totalorder %s22, 1
        %s323 = scalar_select %p322, %s22, 1
        %p324 = scmp.lt.s32.totalorder %s321, 31
        %s325 = scalar_select %p324, %s321, 31
        %s326 = smul.addr %s323, 32
        %s327 = sadd.s32 %s325, %s326
        %s328 = smul.addr %s327, 8
        %s329 = scalar_lea.vmem %s0, %s328
        %s330 = smul.u32 32, %s23
      $region44: #{tpu_custom_call.1} parent=39 // pred_fallthru
        _
      // Predicated region
      $region45: #{tpu_custom_call.1} parent=39 // pred_check
        %p331 = pneg %p85
      $region46: #{tpu_custom_call.1} parent=39 // pred_check_branch
        %333 = sbr.rel (%p331) target = $region48
      $region47: #{tpu_custom_call.1} parent=39 // pred_region
        %s334 = smul.u32 %s23, 16
        %s335 = ssub.s32 %s334, 1
        %p336 = scmp.gt.s32.totalorder %s335, 0
        %s337 = scalar_select %p336, %s335, 0
        %p338 = scmp.lt.s32.totalorder %s22, 1
        %s339 = scalar_select %p338, %s22, 1
        %p340 = scmp.lt.s32.totalorder %s337, 15
        %s341 = scalar_select %p340, %s337, 15
        %s342 = smul.addr %s341, 2
        %s343 = smul.addr %s339, 32
        %s344 = sadd.s32 %s342, %s343
        %s345 = smul.addr %s344, 8
        %s346 = scalar_lea.vmem %s1, %s345
        %s347 = smul.u32 %s23, 16
        %s348 = ssub.s32 %s347, 1
        %p349 = scmp.gt.s32.totalorder %s348, 0
        %s350 = scalar_select %p349, %s348, 0
      $region48: #{tpu_custom_call.1} parent=39 // pred_fallthru
        _
      // Predicated region
      $region49: #{tpu_custom_call.1} parent=39 // pred_check
        %p351 = pneg %p121
      $region50: #{tpu_custom_call.1} parent=39 // pred_check_branch
        %353 = sbr.rel (%p351) target = $region52
      $region51: #{tpu_custom_call.1} parent=39 // pred_region
        %s354 = smul.u32 %s23, 16
        %s355 = sadd.s32 %s354, 16
        %p356 = scmp.lt.s32.totalorder %s355, 15
        %s357 = scalar_select %p356, %s355, 15
        %p358 = scmp.lt.s32.totalorder %s22, 1
        %s359 = scalar_select %p358, %s22, 1
        %p360 = scmp.lt.s32.totalorder %s357, 15
        %s361 = scalar_select %p360, %s357, 15
        %s362 = smul.addr %s361, 2
        %s363 = smul.addr %s359, 32
        %s364 = sadd.s32 %s362, %s363
        %s365 = smul.addr %s364, 8
        %s366 = scalar_lea.vmem %s2, %s365
        %s367 = smul.u32 %s23, 16
        %s368 = sadd.s32 %s367, 16
        %p369 = scmp.lt.s32.totalorder %s368, 15
        %s370 = scalar_select %p369, %s368, 15
      $region52: #{tpu_custom_call.1} parent=39 // pred_fallthru
        _
    $region40: #{tpu_custom_call.1} parent=5 // pred_fallthru
      _
    %p371 = scmp.le.s32.totalorder 1, %s15
    %p372 = scmp.lt.s32.totalorder %s15, 3
    %p373 = pnand %p371, %p372
    %p374 = pneg %p373
    // Predicated region
    $region53: #{tpu_custom_call.1} parent=5 // pred_check
      _
    $region54: #{tpu_custom_call.1} parent=5 // pred_check_branch
      %376 = sbr.rel (%p373) target = $region56
    $region55: #{tpu_custom_call.1} parent=5 // pred_region
      %s377 = ssub.s32 %s15, 1
      %s378 = smul.u32 32, %s25
      %p379 = scmp.lt.s32.totalorder %s24, 1
      %s380 = scalar_select %p379, %s24, 1
      %p381 = scmp.lt.s32.totalorder %s378, 31
      %s382 = scalar_select %p381, %s378, 31
      %s383 = smul.addr %s380, 32
      %s384 = sadd.s32 %s382, %s383
      %s385 = smul.addr %s384, 8
      %s386 = scalar_lea.vmem %s0, %s385
      %p387 = pneg %p55
      %p388 = pneg %p52
      %s389 = smul.u32 %s25, 16
      %s390 = ssub.s32 %s389, 1
      %p391 = scmp.gt.s32.totalorder %s390, 0
      %s392 = scalar_select %p391, %s390, 0
      %p393 = scmp.lt.s32.totalorder %s24, 1
      %s394 = scalar_select %p393, %s24, 1
      %p395 = scmp.lt.s32.totalorder %s392, 15
      %s396 = scalar_select %p395, %s392, 15
      %s397 = smul.addr %s396, 2
      %s398 = smul.addr %s394, 32
      %s399 = sadd.s32 %s397, %s398
      %s400 = smul.addr %s399, 8
      %s401 = scalar_lea.vmem %s1, %s400
      %p402 = pneg %p91
      %p403 = pneg %p88
      %s404 = smul.u32 %s25, 16
      %s405 = sadd.s32 %s404, 16
      %p406 = scmp.lt.s32.totalorder %s405, 15
      %s407 = scalar_select %p406, %s405, 15
      %p408 = scmp.lt.s32.totalorder %s24, 1
      %s409 = scalar_select %p408, %s24, 1
      %p410 = scmp.lt.s32.totalorder %s407, 15
      %s411 = scalar_select %p410, %s407, 15
      %s412 = smul.addr %s411, 2
      %s413 = smul.addr %s409, 32
      %s414 = sadd.s32 %s412, %s413
      %s415 = smul.addr %s414, 8
      %s416 = scalar_lea.vmem %s2, %s415
      %p417 = pneg %p127
      %p418 = pneg %p124
      %p419 = pneg %p148
      %p420 = pneg %p145
      %p421 = pneg %p169
      %p422 = pneg %p166
      %p423 = pneg %p190
      %p424 = pneg %p187
      %p425 = pneg %p211
      %p426 = pneg %p208
      %p427 = pneg %p232
      %p428 = pneg %p229
      %p429 = pneg %p253
      %p430 = pneg %p250
      %p431 = pneg %p281
      %p432 = pneg %p278
      %s433 = smul.u32 32, %s25
      %p434 = scmp.lt.s32.totalorder %s24, 1
      %s435 = scalar_select %p434, %s24, 1
      %p436 = scmp.lt.s32.totalorder %s433, 31
      %s437 = scalar_select %p436, %s433, 31
      %s438 = smul.addr %s435, 32
      %s439 = sadd.s32 %s437, %s438
      %s440 = smul.addr %s439, 8
      %s441 = scalar_lea.vmem %s9, %s440
      %s442 = smul.u32 32, %s25
      %p443 = scmp.lt.s32.totalorder %s24, 1
      %s444 = scalar_select %p443, %s24, 1
      %p445 = scmp.lt.s32.totalorder %s442, 31
      %s446 = scalar_select %p445, %s442, 31
      %s447 = smul.addr %s444, 32
      %s448 = sadd.s32 %s446, %s447
      %s449 = smul.addr %s448, 8
      %s450 = scalar_lea.vmem %s0, %s449
      %s451 = smul.u32 32, %s25
      %s452 = smul.u32 %s25, 16
      %s453 = ssub.s32 %s452, 1
      %p454 = scmp.gt.s32.totalorder %s453, 0
      %s455 = scalar_select %p454, %s453, 0
      %p456 = scmp.lt.s32.totalorder %s24, 1
      %s457 = scalar_select %p456, %s24, 1
      %p458 = scmp.lt.s32.totalorder %s455, 15
      %s459 = scalar_select %p458, %s455, 15
      %s460 = smul.addr %s459, 2
      %s461 = smul.addr %s457, 32
      %s462 = sadd.s32 %s460, %s461
      %s463 = smul.addr %s462, 8
      %s464 = scalar_lea.vmem %s1, %s463
      %s465 = smul.u32 %s25, 16
      %s466 = ssub.s32 %s465, 1
      %p467 = scmp.gt.s32.totalorder %s466, 0
      %s468 = scalar_select %p467, %s466, 0
      %s469 = smul.u32 %s25, 16
      %s470 = sadd.s32 %s469, 16
      %p471 = scmp.lt.s32.totalorder %s470, 15
      %s472 = scalar_select %p471, %s470, 15
      %p473 = scmp.lt.s32.totalorder %s24, 1
      %s474 = scalar_select %p473, %s24, 1
      %p475 = scmp.lt.s32.totalorder %s472, 15
      %s476 = scalar_select %p475, %s472, 15
      %s477 = smul.addr %s476, 2
      %s478 = smul.addr %s474, 32
      %s479 = sadd.s32 %s477, %s478
      %s480 = smul.addr %s479, 8
      %s481 = scalar_lea.vmem %s2, %s480
      %s482 = smul.u32 %s25, 16
      %s483 = sadd.s32 %s482, 16
      %p484 = scmp.lt.s32.totalorder %s483, 15
      %s485 = scalar_select %p484, %s483, 15
      %s486 = smul.u32 32, %s25
      %p487 = scmp.lt.s32.totalorder %s24, 1
      %s488 = scalar_select %p487, %s24, 1
      %p489 = scmp.lt.s32.totalorder %s486, 31
      %s490 = scalar_select %p489, %s486, 31
      %s491 = smul.addr %s488, 32
      %s492 = sadd.s32 %s490, %s491
      %s493 = smul.addr %s492, 8
      %s494 = scalar_lea.vmem %s9, %s493
      %s495 = smul.u32 32, %s25
      %v496 = vld [vmem:[%s3] sm:$0xf]
      %v497 = vld [vmem:[%s4] sm:$0x1]
      %v498 = vld [vmem:[%s450] sm:$0xff]
      %v499 = vld [vmem:[%s450 + $0x8] sm:$0xff]
      %v500 = vld [vmem:[%s450 + $0x10] sm:$0xff]
      %v501 = vld [vmem:[%s450 + $0x18] sm:$0xff]
      %v502 = vld [vmem:[%s450 + $0x20] sm:$0xff]
      %v503 = vld [vmem:[%s450 + $0x28] sm:$0xff]
      %v504 = vld [vmem:[%s450 + $0x30] sm:$0xff]
      %v505 = vld [vmem:[%s450 + $0x38] sm:$0xff]
      %v506 = vld [vmem:[%s450 + $0x40] sm:$0xff]
      %v507 = vld [vmem:[%s450 + $0x48] sm:$0xff]
      %v508 = vld [vmem:[%s450 + $0x50] sm:$0xff]
      %v509 = vld [vmem:[%s450 + $0x58] sm:$0xff]
      %v510 = vld [vmem:[%s450 + $0x60] sm:$0xff]
      %v511 = vld [vmem:[%s450 + $0x68] sm:$0xff]
      %v512 = vld [vmem:[%s450 + $0x70] sm:$0xff]
      %v513 = vld [vmem:[%s450 + $0x78] sm:$0xff]
      %v514 = vld [vmem:[%s450 + $0x80] sm:$0xff]
      %v515 = vld [vmem:[%s450 + $0x88] sm:$0xff]
      %v516 = vld [vmem:[%s450 + $0x90] sm:$0xff]
      %v517 = vld [vmem:[%s450 + $0x98] sm:$0xff]
      %v518 = vld [vmem:[%s450 + $0xa0] sm:$0xff]
      %v519 = vld [vmem:[%s450 + $0xa8] sm:$0xff]
      %v520 = vld [vmem:[%s450 + $0xb0] sm:$0xff]
      %v521 = vld [vmem:[%s450 + $0xb8] sm:$0xff]
      %v522 = vld [vmem:[%s450 + $0xc0] sm:$0xff]
      %v523 = vld [vmem:[%s450 + $0xc8] sm:$0xff]
      %v524 = vld [vmem:[%s450 + $0xd0] sm:$0xff]
      %v525 = vld [vmem:[%s450 + $0xd8] sm:$0xff]
      %v526 = vld [vmem:[%s450 + $0xe0] sm:$0xff]
      %v527 = vld [vmem:[%s450 + $0xe8] sm:$0xff]
      %v528 = vld [vmem:[%s450 + $0xf0] sm:$0xff]
      %v529 = vld [vmem:[%s450 + $0xf8] sm:$0xff]
      %v531 = vlaneseq
      %v532 = vshrl.u32 %v531, 7
      %v533 = vsub.s32 0, %v532
      %v534 = vrot.slane %v497, %v533
      %vm536 = vcmask 31744
      %v538 = vsel %vm536, %v498, 0
      %v541 = vsel %vm536, %v499, 0
      %v544 = vsel %vm536, %v500, 0
      %v547 = vsel %vm536, %v501, 0
      %v550 = vsel %vm536, %v502, 0
      %v553 = vsel %vm536, %v503, 0
      %v556 = vsel %vm536, %v504, 0
      %v559 = vsel %vm536, %v505, 0
      %v562 = vsel %vm536, %v506, 0
      %v565 = vsel %vm536, %v507, 0
      %v568 = vsel %vm536, %v508, 0
      %v571 = vsel %vm536, %v509, 0
      %v574 = vsel %vm536, %v510, 0
      %v577 = vsel %vm536, %v511, 0
      %v580 = vsel %vm536, %v512, 0
      %v583 = vsel %vm536, %v513, 0
      %v586 = vsel %vm536, %v514, 0
      %v589 = vsel %vm536, %v515, 0
      %v592 = vsel %vm536, %v516, 0
      %v595 = vsel %vm536, %v517, 0
      %v598 = vsel %vm536, %v518, 0
      %v601 = vsel %vm536, %v519, 0
      %v604 = vsel %vm536, %v520, 0
      %v607 = vsel %vm536, %v521, 0
      %v610 = vsel %vm536, %v522, 0
      %v613 = vsel %vm536, %v523, 0
      %v616 = vsel %vm536, %v524, 0
      %v619 = vsel %vm536, %v525, 0
      %v622 = vsel %vm536, %v526, 0
      %v625 = vsel %vm536, %v527, 0
      %v628 = vsel %vm536, %v528, 0
      %v631 = vsel %vm536, %v529, 0
      %vm633 = vcmask 1043456
      %v635 = vsel %vm633, %v496, 0
      %637 = vmatprep.subr.mxu0 0.0
      %638 = vmatpush1.msra.mxu0 %v635
      %639 = vmatprep.subr.mxu0 0.0
      %640 = vmatpush1.msra.mxu0 0.0
      %641 = vmatprep.subr.mxu0 0.0
      %642 = vmatpush1.msra.mxu0 0.0
      %643 = vmatprep.subr.mxu0 0.0
      %644 = vmatpush1.msra.mxu0 0.0
      %645 = vmatprep.subr.mxu0 0.0
      %646 = vmatpush1.msra.mxu0 0.0
      %647 = vmatprep.subr.mxu0 0.0
      %648 = vmatpush1.msra.mxu0 0.0
      %649 = vmatprep.subr.mxu0 0.0
      %650 = vmatpush1.msra.mxu0 0.0
      %651 = vmatprep.subr.mxu0 0.0
      %652 = vmatpush1.msra.mxu0 0.0
      %653 = vmatprep.subr.mxu0 0.0
      %654 = vmatpush1.msra.mxu0 0.0
      %655 = vmatprep.subr.mxu0 0.0
      %656 = vmatpush1.msra.mxu0 0.0
      %657 = vmatprep.subr.mxu0 0.0
      %658 = vmatpush1.msra.mxu0 0.0
      %659 = vmatprep.subr.mxu0 0.0
      %660 = vmatpush1.msra.mxu0 0.0
      %661 = vmatprep.subr.mxu0 0.0
      %662 = vmatpush1.msra.mxu0 0.0
      %663 = vmatprep.subr.mxu0 0.0
      %664 = vmatpush1.msra.mxu0 0.0
      %665 = vmatprep.subr.mxu0 0.0
      %666 = vmatpush1.msra.mxu0 0.0
      %667 = vmatprep.subr.mxu0 0.0
      %668 = vmatpush1.msra.mxu0 0.0
      %669 = vmatprep.subr.mxu0 0.0
      %670 = vmatpush1.msra.mxu0 0.0
      %671 = vmatprep.subr.mxu0 0.0
      %672 = vmatpush1.msra.mxu0 0.0
      %673 = vmatprep.subr.mxu0 0.0
      %674 = vmatpush1.msra.mxu0 0.0
      %675 = vmatprep.subr.mxu0 0.0
      %676 = vmatpush1.msra.mxu0 0.0
      %677 = vmatprep.subr.mxu0 0.0
      %678 = vmatpush1.msra.mxu0 0.0
      %679 = vmatprep.subr.mxu0 0.0
      %680 = vmatpush1.msra.mxu0 0.0
      %681 = vmatprep.subr.mxu0 0.0
      %682 = vmatpush1.msra.mxu0 0.0
      %683 = vmatprep.subr.mxu0 0.0
      %684 = vmatpush1.msra.mxu0 0.0
      %685 = vmatprep.subr.mxu0 0.0
      %686 = vmatpush1.msra.mxu0 0.0
      %687 = vmatprep.subr.mxu0 0.0
      %688 = vmatpush1.msra.mxu0 0.0
      %689 = vmatprep.subr.mxu0 0.0
      %690 = vmatpush1.msra.mxu0 0.0
      %691 = vmatprep.subr.mxu0 0.0
      %692 = vmatpush1.msra.mxu0 0.0
      %693 = vmatprep.subr.mxu0 0.0
      %694 = vmatpush1.msra.mxu0 0.0
      %695 = vmatprep.subr.mxu0 0.0
      %696 = vmatpush1.msra.mxu0 0.0
      %697 = vmatprep.subr.mxu0 0.0
      %698 = vmatpush1.msra.mxu0 0.0
      %699 = vmatprep.subr.mxu0 0.0
      %700 = vmatpush1.msra.mxu0 0.0
      %701 = vmatprep.mubr.f32.mxu0 0.0
      %702 = vmatmul.mubr.f32.gmra.mrb[0].mxu0 %v538
      %v703 = vpop.f32.mrb[0].mxu0
      %v704 = vadd.f32 %v534, %v703
      %v705 = vpop.f32.mrb[0].mxu0
      %706 = vmatprep.mubr.f32.mxu0 0.0
      %707 = vmatmul.mubr.f32.gmra.mrb[0].mxu0 %v541
      %v708 = vpop.f32.mrb[0].mxu0
      %v709 = vadd.f32 %v534, %v708
      %v710 = vpop.f32.mrb[0].mxu0
      %711 = vmatprep.mubr.f32.mxu0 0.0
      %712 = vmatmul.mubr.f32.gmra.mrb[0].mxu0 %v544
      %v713 = vpop.f32.mrb[0].mxu0
      %v714 = vadd.f32 %v534, %v713
      %v715 = vpop.f32.mrb[0].mxu0
      %716 = vmatprep.mubr.f32.mxu0 0.0
      %717 = vmatmul.mubr.f32.gmra.mrb[0].mxu0 %v547
      %v718 = vpop.f32.mrb[0].mxu0
      %v719 = vadd.f32 %v534, %v718
      %v720 = vpop.f32.mrb[0].mxu0
      %721 = vmatprep.mubr.f32.mxu0 0.0
      %722 = vmatmul.mubr.f32.gmra.mrb[0].mxu0 %v550
      %v723 = vpop.f32.mrb[0].mxu0
      %v724 = vadd.f32 %v534, %v723
      %v725 = vpop.f32.mrb[0].mxu0
      %726 = vmatprep.mubr.f32.mxu0 0.0
      %727 = vmatmul.mubr.f32.gmra.mrb[0].mxu0 %v553
      %v728 = vpop.f32.mrb[0].mxu0
      %v729 = vadd.f32 %v534, %v728
      %v730 = vpop.f32.mrb[0].mxu0
      %731 = vmatprep.mubr.f32.mxu0 0.0
      %732 = vmatmul.mubr.f32.gmra.mrb[0].mxu0 %v556
      %v733 = vpop.f32.mrb[0].mxu0
      %v734 = vadd.f32 %v534, %v733
      %v735 = vpop.f32.mrb[0].mxu0
      %736 = vmatprep.mubr.f32.mxu0 0.0
      %737 = vmatmul.mubr.f32.gmra.mrb[0].mxu0 %v559
      %v738 = vpop.f32.mrb[0].mxu0
      %v739 = vadd.f32 %v534, %v738
      %v740 = vpop.f32.mrb[0].mxu0
      %741 = vmatprep.mubr.f32.mxu0 0.0
      %742 = vmatmul.mubr.f32.gmra.mrb[0].mxu0 %v562
      %v743 = vpop.f32.mrb[0].mxu0
      %v744 = vadd.f32 %v534, %v743
      %v745 = vpop.f32.mrb[0].mxu0
      %746 = vmatprep.mubr.f32.mxu0 0.0
      %747 = vmatmul.mubr.f32.gmra.mrb[0].mxu0 %v565
      %v748 = vpop.f32.mrb[0].mxu0
      %v749 = vadd.f32 %v534, %v748
      %v750 = vpop.f32.mrb[0].mxu0
      %751 = vmatprep.mubr.f32.mxu0 0.0
      %752 = vmatmul.mubr.f32.gmra.mrb[0].mxu0 %v568
      %v753 = vpop.f32.mrb[0].mxu0
      %v754 = vadd.f32 %v534, %v753
      %v755 = vpop.f32.mrb[0].mxu0
      %756 = vmatprep.mubr.f32.mxu0 0.0
      %757 = vmatmul.mubr.f32.gmra.mrb[0].mxu0 %v571
      %v758 = vpop.f32.mrb[0].mxu0
      %v759 = vadd.f32 %v534, %v758
      %v760 = vpop.f32.mrb[0].mxu0
      %761 = vmatprep.mubr.f32.mxu0 0.0
      %762 = vmatmul.mubr.f32.gmra.mrb[0].mxu0 %v574
      %v763 = vpop.f32.mrb[0].mxu0
      %v764 = vadd.f32 %v534, %v763
      %v765 = vpop.f32.mrb[0].mxu0
      %766 = vmatprep.mubr.f32.mxu0 0.0
      %767 = vmatmul.mubr.f32.gmra.mrb[0].mxu0 %v577
      %v768 = vpop.f32.mrb[0].mxu0
      %v769 = vadd.f32 %v534, %v768
      %v770 = vpop.f32.mrb[0].mxu0
      %771 = vmatprep.mubr.f32.mxu0 0.0
      %772 = vmatmul.mubr.f32.gmra.mrb[0].mxu0 %v580
      %v773 = vpop.f32.mrb[0].mxu0
      %v774 = vadd.f32 %v534, %v773
      %v775 = vpop.f32.mrb[0].mxu0
      %776 = vmatprep.mubr.f32.mxu0 0.0
      %777 = vmatmul.mubr.f32.gmra.mrb[0].mxu0 %v583
      %v778 = vpop.f32.mrb[0].mxu0
      %v779 = vadd.f32 %v534, %v778
      %v780 = vpop.f32.mrb[0].mxu0
      %781 = vmatprep.mubr.f32.mxu0 0.0
      %782 = vmatmul.mubr.f32.gmra.mrb[0].mxu0 %v586
      %v783 = vpop.f32.mrb[0].mxu0
      %v784 = vadd.f32 %v534, %v783
      %v785 = vpop.f32.mrb[0].mxu0
      %786 = vmatprep.mubr.f32.mxu0 0.0
      %787 = vmatmul.mubr.f32.gmra.mrb[0].mxu0 %v589
      %v788 = vpop.f32.mrb[0].mxu0
      %v789 = vadd.f32 %v534, %v788
      %v790 = vpop.f32.mrb[0].mxu0
      %791 = vmatprep.mubr.f32.mxu0 0.0
      %792 = vmatmul.mubr.f32.gmra.mrb[0].mxu0 %v592
      %v793 = vpop.f32.mrb[0].mxu0
      %v794 = vadd.f32 %v534, %v793
      %v795 = vpop.f32.mrb[0].mxu0
      %796 = vmatprep.mubr.f32.mxu0 0.0
      %797 = vmatmul.mubr.f32.gmra.mrb[0].mxu0 %v595
      %v798 = vpop.f32.mrb[0].mxu0
      %v799 = vadd.f32 %v534, %v798
      %v800 = vpop.f32.mrb[0].mxu0
      %801 = vmatprep.mubr.f32.mxu0 0.0
      %802 = vmatmul.mubr.f32.gmra.mrb[0].mxu0 %v598
      %v803 = vpop.f32.mrb[0].mxu0
      %v804 = vadd.f32 %v534, %v803
      %v805 = vpop.f32.mrb[0].mxu0
      %806 = vmatprep.mubr.f32.mxu0 0.0
      %807 = vmatmul.mubr.f32.gmra.mrb[0].mxu0 %v601
      %v808 = vpop.f32.mrb[0].mxu0
      %v809 = vadd.f32 %v534, %v808
      %v810 = vpop.f32.mrb[0].mxu0
      %811 = vmatprep.mubr.f32.mxu0 0.0
      %812 = vmatmul.mubr.f32.gmra.mrb[0].mxu0 %v604
      %v813 = vpop.f32.mrb[0].mxu0
      %v814 = vadd.f32 %v534, %v813
      %v815 = vpop.f32.mrb[0].mxu0
      %816 = vmatprep.mubr.f32.mxu0 0.0
      %817 = vmatmul.mubr.f32.gmra.mrb[0].mxu0 %v607
      %v818 = vpop.f32.mrb[0].mxu0
      %v819 = vadd.f32 %v534, %v818
      %v820 = vpop.f32.mrb[0].mxu0
      %821 = vmatprep.mubr.f32.mxu0 0.0
      %822 = vmatmul.mubr.f32.gmra.mrb[0].mxu0 %v610
      %v823 = vpop.f32.mrb[0].mxu0
      %v824 = vadd.f32 %v534, %v823
      %v825 = vpop.f32.mrb[0].mxu0
      %826 = vmatprep.mubr.f32.mxu0 0.0
      %827 = vmatmul.mubr.f32.gmra.mrb[0].mxu0 %v613
      %v828 = vpop.f32.mrb[0].mxu0
      %v829 = vadd.f32 %v534, %v828
      %v830 = vpop.f32.mrb[0].mxu0
      %831 = vmatprep.mubr.f32.mxu0 0.0
      %832 = vmatmul.mubr.f32.gmra.mrb[0].mxu0 %v616
      %v833 = vpop.f32.mrb[0].mxu0
      %v834 = vadd.f32 %v534, %v833
      %v835 = vpop.f32.mrb[0].mxu0
      %836 = vmatprep.mubr.f32.mxu0 0.0
      %837 = vmatmul.mubr.f32.gmra.mrb[0].mxu0 %v619
      %v838 = vpop.f32.mrb[0].mxu0
      %v839 = vadd.f32 %v534, %v838
      %v840 = vpop.f32.mrb[0].mxu0
      %841 = vmatprep.mubr.f32.mxu0 0.0
      %842 = vmatmul.mubr.f32.gmra.mrb[0].mxu0 %v622
      %v843 = vpop.f32.mrb[0].mxu0
      %v844 = vadd.f32 %v534, %v843
      %v845 = vpop.f32.mrb[0].mxu0
      %846 = vmatprep.mubr.f32.mxu0 0.0
      %847 = vmatmul.mubr.f32.gmra.mrb[0].mxu0 %v625
      %v848 = vpop.f32.mrb[0].mxu0
      %v849 = vadd.f32 %v534, %v848
      %v850 = vpop.f32.mrb[0].mxu0
      %851 = vmatprep.mubr.f32.mxu0 0.0
      %852 = vmatmul.mubr.f32.gmra.mrb[0].mxu0 %v628
      %v853 = vpop.f32.mrb[0].mxu0
      %v854 = vadd.f32 %v534, %v853
      %v855 = vpop.f32.mrb[0].mxu0
      %856 = vmatprep.mubr.f32.mxu0 0.0
      %857 = vmatmul.mubr.f32.gmra.mrb[0].mxu0 %v631
      %v858 = vpop.f32.mrb[0].mxu0
      %v859 = vadd.f32 %v534, %v858
      %v860 = vpop.f32.mrb[0].mxu0
      %861 = vdwg.mxu0
      %v862 = vmul.f32 %v704, 0.5
      %v863 = vmul.f32 %v709, 0.5
      %v864 = vmul.f32 %v714, 0.5
      %v865 = vmul.f32 %v719, 0.5
      %v866 = vmul.f32 %v724, 0.5
      %v867 = vmul.f32 %v729, 0.5
      %v868 = vmul.f32 %v734, 0.5
      %v869 = vmul.f32 %v739, 0.5
      %v870 = vmul.f32 %v744, 0.5
      %v871 = vmul.f32 %v749, 0.5
      %v872 = vmul.f32 %v754, 0.5
      %v873 = vmul.f32 %v759, 0.5
      %v874 = vmul.f32 %v764, 0.5
      %v875 = vmul.f32 %v769, 0.5
      %v876 = vmul.f32 %v774, 0.5
      %v877 = vmul.f32 %v779, 0.5
      %v878 = vmul.f32 %v784, 0.5
      %v879 = vmul.f32 %v789, 0.5
      %v880 = vmul.f32 %v794, 0.5
      %v881 = vmul.f32 %v799, 0.5
      %v882 = vmul.f32 %v804, 0.5
      %v883 = vmul.f32 %v809, 0.5
      %v884 = vmul.f32 %v814, 0.5
      %v885 = vmul.f32 %v819, 0.5
      %v886 = vmul.f32 %v824, 0.5
      %v887 = vmul.f32 %v829, 0.5
      %v888 = vmul.f32 %v834, 0.5
      %v889 = vmul.f32 %v839, 0.5
      %v890 = vmul.f32 %v844, 0.5
      %v891 = vmul.f32 %v849, 0.5
      %v892 = vmul.f32 %v854, 0.5
      %v893 = vmul.f32 %v859, 0.5
      %v894 = vmul.f32 %v704, 0.044715
      %v895 = vmul.f32 %v709, 0.044715
      %v896 = vmul.f32 %v714, 0.044715
      %v897 = vmul.f32 %v719, 0.044715
      %v898 = vmul.f32 %v724, 0.044715
      %v899 = vmul.f32 %v729, 0.044715
      %v900 = vmul.f32 %v734, 0.044715
      %v901 = vmul.f32 %v739, 0.044715
      %v902 = vmul.f32 %v744, 0.044715
      %v903 = vmul.f32 %v749, 0.044715
      %v904 = vmul.f32 %v754, 0.044715
      %v905 = vmul.f32 %v759, 0.044715
      %v906 = vmul.f32 %v764, 0.044715
      %v907 = vmul.f32 %v769, 0.044715
      %v908 = vmul.f32 %v774, 0.044715
      %v909 = vmul.f32 %v779, 0.044715
      %v910 = vmul.f32 %v784, 0.044715
      %v911 = vmul.f32 %v789, 0.044715
      %v912 = vmul.f32 %v794, 0.044715
      %v913 = vmul.f32 %v799, 0.044715
      %v914 = vmul.f32 %v804, 0.044715
      %v915 = vmul.f32 %v809, 0.044715
      %v916 = vmul.f32 %v814, 0.044715
      %v917 = vmul.f32 %v819, 0.044715
      %v918 = vmul.f32 %v824, 0.044715
      %v919 = vmul.f32 %v829, 0.044715
      %v920 = vmul.f32 %v834, 0.044715
      %v921 = vmul.f32 %v839, 0.044715
      %v922 = vmul.f32 %v844, 0.044715
      %v923 = vmul.f32 %v849, 0.044715
      %v924 = vmul.f32 %v854, 0.044715
      %v925 = vmul.f32 %v859, 0.044715
      %v926 = vmul.f32 %v894, %v704
      %v927 = vmul.f32 %v895, %v709
      %v928 = vmul.f32 %v896, %v714
      %v929 = vmul.f32 %v897, %v719
      %v930 = vmul.f32 %v898, %v724
      %v931 = vmul.f32 %v899, %v729
      %v932 = vmul.f32 %v900, %v734
      %v933 = vmul.f32 %v901, %v739
      %v934 = vmul.f32 %v902, %v744
      %v935 = vmul.f32 %v903, %v749
      %v936 = vmul.f32 %v904, %v754
      %v937 = vmul.f32 %v905, %v759
      %v938 = vmul.f32 %v906, %v764
      %v939 = vmul.f32 %v907, %v769
      %v940 = vmul.f32 %v908, %v774
      %v941 = vmul.f32 %v909, %v779
      %v942 = vmul.f32 %v910, %v784
      %v943 = vmul.f32 %v911, %v789
      %v944 = vmul.f32 %v912, %v794
      %v945 = vmul.f32 %v913, %v799
      %v946 = vmul.f32 %v914, %v804
      %v947 = vmul.f32 %v915, %v809
      %v948 = vmul.f32 %v916, %v814
      %v949 = vmul.f32 %v917, %v819
      %v950 = vmul.f32 %v918, %v824
      %v951 = vmul.f32 %v919, %v829
      %v952 = vmul.f32 %v920, %v834
      %v953 = vmul.f32 %v921, %v839
      %v954 = vmul.f32 %v922, %v844
      %v955 = vmul.f32 %v923, %v849
      %v956 = vmul.f32 %v924, %v854
      %v957 = vmul.f32 %v925, %v859
      %v958 = vmul.f32 %v926, %v704
      %v959 = vmul.f32 %v927, %v709
      %v960 = vmul.f32 %v928, %v714
      %v961 = vmul.f32 %v929, %v719
      %v962 = vmul.f32 %v930, %v724
      %v963 = vmul.f32 %v931, %v729
      %v964 = vmul.f32 %v932, %v734
      %v965 = vmul.f32 %v933, %v739
      %v966 = vmul.f32 %v934, %v744
      %v967 = vmul.f32 %v935, %v749
      %v968 = vmul.f32 %v936, %v754
      %v969 = vmul.f32 %v937, %v759
      %v970 = vmul.f32 %v938, %v764
      %v971 = vmul.f32 %v939, %v769
      %v972 = vmul.f32 %v940, %v774
      %v973 = vmul.f32 %v941, %v779
      %v974 = vmul.f32 %v942, %v784
      %v975 = vmul.f32 %v943, %v789
      %v976 = vmul.f32 %v944, %v794
      %v977 = vmul.f32 %v945, %v799
      %v978 = vmul.f32 %v946, %v804
      %v979 = vmul.f32 %v947, %v809
      %v980 = vmul.f32 %v948, %v814
      %v981 = vmul.f32 %v949, %v819
      %v982 = vmul.f32 %v950, %v824
      %v983 = vmul.f32 %v951, %v829
      %v984 = vmul.f32 %v952, %v834
      %v985 = vmul.f32 %v953, %v839
      %v986 = vmul.f32 %v954, %v844
      %v987 = vmul.f32 %v955, %v849
      %v988 = vmul.f32 %v956, %v854
      %v989 = vmul.f32 %v957, %v859
      %v990 = vadd.f32 %v704, %v958
      %v991 = vadd.f32 %v709, %v959
      %v992 = vadd.f32 %v714, %v960
      %v993 = vadd.f32 %v719, %v961
      %v994 = vadd.f32 %v724, %v962
      %v995 = vadd.f32 %v729, %v963
      %v996 = vadd.f32 %v734, %v964
      %v997 = vadd.f32 %v739, %v965
      %v998 = vadd.f32 %v744, %v966
      %v999 = vadd.f32 %v749, %v967
      %v1000 = vadd.f32 %v754, %v968
      %v1001 = vadd.f32 %v759, %v969
      %v1002 = vadd.f32 %v764, %v970
      %v1003 = vadd.f32 %v769, %v971
      %v1004 = vadd.f32 %v774, %v972
      %v1005 = vadd.f32 %v779, %v973
      %v1006 = vadd.f32 %v784, %v974
      %v1007 = vadd.f32 %v789, %v975
      %v1008 = vadd.f32 %v794, %v976
      %v1009 = vadd.f32 %v799, %v977
      %v1010 = vadd.f32 %v804, %v978
      %v1011 = vadd.f32 %v809, %v979
      %v1012 = vadd.f32 %v814, %v980
      %v1013 = vadd.f32 %v819, %v981
      %v1014 = vadd.f32 %v824, %v982
      %v1015 = vadd.f32 %v829, %v983
      %v1016 = vadd.f32 %v834, %v984
      %v1017 = vadd.f32 %v839, %v985
      %v1018 = vadd.f32 %v844, %v986
      %v1019 = vadd.f32 %v849, %v987
      %v1020 = vadd.f32 %v854, %v988
      %v1021 = vadd.f32 %v859, %v989
      %v1022 = vmul.f32 %v990, 0.7978846
      %v1023 = vmul.f32 %v991, 0.7978846
      %v1024 = vmul.f32 %v992, 0.7978846
      %v1025 = vmul.f32 %v993, 0.7978846
      %v1026 = vmul.f32 %v994, 0.7978846
      %v1027 = vmul.f32 %v995, 0.7978846
      %v1028 = vmul.f32 %v996, 0.7978846
      %v1029 = vmul.f32 %v997, 0.7978846
      %v1030 = vmul.f32 %v998, 0.7978846
      %v1031 = vmul.f32 %v999, 0.7978846
      %v1032 = vmul.f32 %v1000, 0.7978846
      %v1033 = vmul.f32 %v1001, 0.7978846
      %v1034 = vmul.f32 %v1002, 0.7978846
      %v1035 = vmul.f32 %v1003, 0.7978846
      %v1036 = vmul.f32 %v1004, 0.7978846
      %v1037 = vmul.f32 %v1005, 0.7978846
      %v1038 = vmul.f32 %v1006, 0.7978846
      %v1039 = vmul.f32 %v1007, 0.7978846
      %v1040 = vmul.f32 %v1008, 0.7978846
      %v1041 = vmul.f32 %v1009, 0.7978846
      %v1042 = vmul.f32 %v1010, 0.7978846
      %v1043 = vmul.f32 %v1011, 0.7978846
      %v1044 = vmul.f32 %v1012, 0.7978846
      %v1045 = vmul.f32 %v1013, 0.7978846
      %v1046 = vmul.f32 %v1014, 0.7978846
      %v1047 = vmul.f32 %v1015, 0.7978846
      %v1048 = vmul.f32 %v1016, 0.7978846
      %v1049 = vmul.f32 %v1017, 0.7978846
      %v1050 = vmul.f32 %v1018, 0.7978846
      %v1051 = vmul.f32 %v1019, 0.7978846
      %v1052 = vmul.f32 %v1020, 0.7978846
      %v1053 = vmul.f32 %v1021, 0.7978846
      %v1054 = vtanh.pop %v1022
      %v1055 = vtanh.pop %v1023
      %v1056 = vtanh.pop %v1024
      %v1057 = vtanh.pop %v1025
      %v1058 = vtanh.pop %v1026
      %v1059 = vtanh.pop %v1027
      %v1060 = vtanh.pop %v1028
      %v1061 = vtanh.pop %v1029
      %v1062 = vtanh.pop %v1030
      %v1063 = vtanh.pop %v1031
      %v1064 = vtanh.pop %v1032
      %v1065 = vtanh.pop %v1033
      %v1066 = vtanh.pop %v1034
      %v1067 = vtanh.pop %v1035
      %v1068 = vtanh.pop %v1036
      %v1069 = vtanh.pop %v1037
      %v1070 = vtanh.pop %v1038
      %v1071 = vtanh.pop %v1039
      %v1072 = vtanh.pop %v1040
      %v1073 = vtanh.pop %v1041
      %v1074 = vtanh.pop %v1042
      %v1075 = vtanh.pop %v1043
      %v1076 = vtanh.pop %v1044
      %v1077 = vtanh.pop %v1045
      %v1078 = vtanh.pop %v1046
      %v1079 = vtanh.pop %v1047
      %v1080 = vtanh.pop %v1048
      %v1081 = vtanh.pop %v1049
      %v1082 = vtanh.pop %v1050
      %v1083 = vtanh.pop %v1051
      %v1084 = vtanh.pop %v1052
      %v1085 = vtanh.pop %v1053
      %v1086 = vadd.f32 %v1054, 1.0
      %v1087 = vadd.f32 %v1055, 1.0
      %v1088 = vadd.f32 %v1056, 1.0
      %v1089 = vadd.f32 %v1057, 1.0
      %v1090 = vadd.f32 %v1058, 1.0
      %v1091 = vadd.f32 %v1059, 1.0
      %v1092 = vadd.f32 %v1060, 1.0
      %v1093 = vadd.f32 %v1061, 1.0
      %v1094 = vadd.f32 %v1062, 1.0
      %v1095 = vadd.f32 %v1063, 1.0
      %v1096 = vadd.f32 %v1064, 1.0
      %v1097 = vadd.f32 %v1065, 1.0
      %v1098 = vadd.f32 %v1066, 1.0
      %v1099 = vadd.f32 %v1067, 1.0
      %v1100 = vadd.f32 %v1068, 1.0
      %v1101 = vadd.f32 %v1069, 1.0
      %v1102 = vadd.f32 %v1070, 1.0
      %v1103 = vadd.f32 %v1071, 1.0
      %v1104 = vadd.f32 %v1072, 1.0
      %v1105 = vadd.f32 %v1073, 1.0
      %v1106 = vadd.f32 %v1074, 1.0
      %v1107 = vadd.f32 %v1075, 1.0
      %v1108 = vadd.f32 %v1076, 1.0
      %v1109 = vadd.f32 %v1077, 1.0
      %v1110 = vadd.f32 %v1078, 1.0
      %v1111 = vadd.f32 %v1079, 1.0
      %v1112 = vadd.f32 %v1080, 1.0
      %v1113 = vadd.f32 %v1081, 1.0
      %v1114 = vadd.f32 %v1082, 1.0
      %v1115 = vadd.f32 %v1083, 1.0
      %v1116 = vadd.f32 %v1084, 1.0
      %v1117 = vadd.f32 %v1085, 1.0
      %v1118 = vmul.f32 %v862, %v1086
      %v1119 = vmul.f32 %v863, %v1087
      %v1120 = vmul.f32 %v864, %v1088
      %v1121 = vmul.f32 %v865, %v1089
      %v1122 = vmul.f32 %v866, %v1090
      %v1123 = vmul.f32 %v867, %v1091
      %v1124 = vmul.f32 %v868, %v1092
      %v1125 = vmul.f32 %v869, %v1093
      %v1126 = vmul.f32 %v870, %v1094
      %v1127 = vmul.f32 %v871, %v1095
      %v1128 = vmul.f32 %v872, %v1096
      %v1129 = vmul.f32 %v873, %v1097
      %v1130 = vmul.f32 %v874, %v1098
      %v1131 = vmul.f32 %v875, %v1099
      %v1132 = vmul.f32 %v876, %v1100
      %v1133 = vmul.f32 %v877, %v1101
      %v1134 = vmul.f32 %v878, %v1102
      %v1135 = vmul.f32 %v879, %v1103
      %v1136 = vmul.f32 %v880, %v1104
      %v1137 = vmul.f32 %v881, %v1105
      %v1138 = vmul.f32 %v882, %v1106
      %v1139 = vmul.f32 %v883, %v1107
      %v1140 = vmul.f32 %v884, %v1108
      %v1141 = vmul.f32 %v885, %v1109
      %v1142 = vmul.f32 %v886, %v1110
      %v1143 = vmul.f32 %v887, %v1111
      %v1144 = vmul.f32 %v888, %v1112
      %v1145 = vmul.f32 %v889, %v1113
      %v1146 = vmul.f32 %v890, %v1114
      %v1147 = vmul.f32 %v891, %v1115
      %v1148 = vmul.f32 %v892, %v1116
      %v1149 = vmul.f32 %v893, %v1117
      %v1150 = vld [vmem:[%s464] sm:$0xff]
      %v1151 = vld [vmem:[%s464 + $0x8] sm:$0xff]
      %v1153 = vsel %vm536, %v1150, 0
      %v1156 = vsel %vm536, %v1151, 0
      %1158 = vmatprep.subr.mxu0 0.0
      %1159 = vmatpush1.msra.mxu0 %v635
      %1160 = vmatprep.subr.mxu0 0.0
      %1161 = vmatpush1.msra.mxu0 0.0
      %1162 = vmatprep.subr.mxu0 0.0
      %1163 = vmatpush1.msra.mxu0 0.0
      %1164 = vmatprep.subr.mxu0 0.0
      %1165 = vmatpush1.msra.mxu0 0.0
      %1166 = vmatprep.subr.mxu0 0.0
      %1167 = vmatpush1.msra.mxu0 0.0
      %1168 = vmatprep.subr.mxu0 0.0
      %1169 = vmatpush1.msra.mxu0 0.0
      %1170 = vmatprep.subr.mxu0 0.0
      %1171 = vmatpush1.msra.mxu0 0.0
      %1172 = vmatprep.subr.mxu0 0.0
      %1173 = vmatpush1.msra.mxu0 0.0
      %1174 = vmatprep.subr.mxu0 0.0
      %1175 = vmatpush1.msra.mxu0 0.0
      %1176 = vmatprep.subr.mxu0 0.0
      %1177 = vmatpush1.msra.mxu0 0.0
      %1178 = vmatprep.subr.mxu0 0.0
      %1179 = vmatpush1.msra.mxu0 0.0
      %1180 = vmatprep.subr.mxu0 0.0
      %1181 = vmatpush1.msra.mxu0 0.0
      %1182 = vmatprep.subr.mxu0 0.0
      %1183 = vmatpush1.msra.mxu0 0.0
      %1184 = vmatprep.subr.mxu0 0.0
      %1185 = vmatpush1.msra.mxu0 0.0
      %1186 = vmatprep.subr.mxu0 0.0
      %1187 = vmatpush1.msra.mxu0 0.0
      %1188 = vmatprep.subr.mxu0 0.0
      %1189 = vmatpush1.msra.mxu0 0.0
      %1190 = vmatprep.subr.mxu0 0.0
      %1191 = vmatpush1.msra.mxu0 0.0
      %1192 = vmatprep.subr.mxu0 0.0
      %1193 = vmatpush1.msra.mxu0 0.0
      %1194 = vmatprep.subr.mxu0 0.0
      %1195 = vmatpush1.msra.mxu0 0.0
      %1196 = vmatprep.subr.mxu0 0.0
      %1197 = vmatpush1.msra.mxu0 0.0
      %1198 = vmatprep.subr.mxu0 0.0
      %1199 = vmatpush1.msra.mxu0 0.0
      %1200 = vmatprep.subr.mxu0 0.0
      %1201 = vmatpush1.msra.mxu0 0.0
      %1202 = vmatprep.subr.mxu0 0.0
      %1203 = vmatpush1.msra.mxu0 0.0
      %1204 = vmatprep.subr.mxu0 0.0
      %1205 = vmatpush1.msra.mxu0 0.0
      %1206 = vmatprep.subr.mxu0 0.0
      %1207 = vmatpush1.msra.mxu0 0.0
      %1208 = vmatprep.subr.mxu0 0.0
      %1209 = vmatpush1.msra.mxu0 0.0
      %1210 = vmatprep.subr.mxu0 0.0
      %1211 = vmatpush1.msra.mxu0 0.0
      %1212 = vmatprep.subr.mxu0 0.0
      %1213 = vmatpush1.msra.mxu0 0.0
      %1214 = vmatprep.subr.mxu0 0.0
      %1215 = vmatpush1.msra.mxu0 0.0
      %1216 = vmatprep.subr.mxu0 0.0
      %1217 = vmatpush1.msra.mxu0 0.0
      %1218 = vmatprep.subr.mxu0 0.0
      %1219 = vmatpush1.msra.mxu0 0.0
      %1220 = vmatprep.subr.mxu0 0.0
      %1221 = vmatpush1.msra.mxu0 0.0
      %1222 = vmatprep.mubr.f32.mxu0 0.0
      %1223 = vmatmul.mubr.f32.gmra.mrb[0].mxu0 %v1153
      %v1224 = vpop.f32.mrb[0].mxu0
      %v1225 = vadd.f32 %v534, %v1224
      %v1226 = vpop.f32.mrb[0].mxu0
      %1227 = vmatprep.mubr.f32.mxu0 0.0
      %1228 = vmatmul.mubr.f32.gmra.mrb[0].mxu0 %v1156
      %v1229 = vpop.f32.mrb[0].mxu0
      %v1230 = vadd.f32 %v534, %v1229
      %v1231 = vpop.f32.mrb[0].mxu0
      %1232 = vdwg.mxu0
      %v1233 = vmul.f32 %v1225, 0.5
      %v1234 = vmul.f32 %v1230, 0.5
      %v1235 = vmul.f32 %v1225, 0.044715
      %v1236 = vmul.f32 %v1230, 0.044715
      %v1237 = vmul.f32 %v1235, %v1225
      %v1238 = vmul.f32 %v1236, %v1230
      %v1239 = vmul.f32 %v1237, %v1225
      %v1240 = vmul.f32 %v1238, %v1230
      %v1241 = vadd.f32 %v1225, %v1239
      %v1242 = vadd.f32 %v1230, %v1240
      %v1243 = vmul.f32 %v1241, 0.7978846
      %v1244 = vmul.f32 %v1242, 0.7978846
      %v1245 = vtanh.pop %v1243
      %v1246 = vtanh.pop %v1244
      %v1247 = vadd.f32 %v1245, 1.0
      %v1248 = vadd.f32 %v1246, 1.0
      %v1249 = vmul.f32 %v1233, %v1247
      %v1250 = vmul.f32 %v1234, %v1248
      %v1251 = vld [vmem:[%s481] sm:$0xff]
      %v1252 = vld [vmem:[%s481 + $0x8] sm:$0xff]
      %v1254 = vsel %vm536, %v1251, 0
      %v1257 = vsel %vm536, %v1252, 0
      %1259 = vmatprep.subr.mxu0 0.0
      %1260 = vmatpush1.msra.mxu0 %v635
      %1261 = vmatprep.subr.mxu0 0.0
      %1262 = vmatpush1.msra.mxu0 0.0
      %1263 = vmatprep.subr.mxu0 0.0
      %1264 = vmatpush1.msra.mxu0 0.0
      %1265 = vmatprep.subr.mxu0 0.0
      %1266 = vmatpush1.msra.mxu0 0.0
      %1267 = vmatprep.subr.mxu0 0.0
      %1268 = vmatpush1.msra.mxu0 0.0
      %1269 = vmatprep.subr.mxu0 0.0
      %1270 = vmatpush1.msra.mxu0 0.0
      %1271 = vmatprep.subr.mxu0 0.0
      %1272 = vmatpush1.msra.mxu0 0.0
      %1273 = vmatprep.subr.mxu0 0.0
      %1274 = vmatpush1.msra.mxu0 0.0
      %1275 = vmatprep.subr.mxu0 0.0
      %1276 = vmatpush1.msra.mxu0 0.0
      %1277 = vmatprep.subr.mxu0 0.0
      %1278 = vmatpush1.msra.mxu0 0.0
      %1279 = vmatprep.subr.mxu0 0.0
      %1280 = vmatpush1.msra.mxu0 0.0
      %1281 = vmatprep.subr.mxu0 0.0
      %1282 = vmatpush1.msra.mxu0 0.0
      %1283 = vmatprep.subr.mxu0 0.0
      %1284 = vmatpush1.msra.mxu0 0.0
      %1285 = vmatprep.subr.mxu0 0.0
      %1286 = vmatpush1.msra.mxu0 0.0
      %1287 = vmatprep.subr.mxu0 0.0
      %1288 = vmatpush1.msra.mxu0 0.0
      %1289 = vmatprep.subr.mxu0 0.0
      %1290 = vmatpush1.msra.mxu0 0.0
      %1291 = vmatprep.subr.mxu0 0.0
      %1292 = vmatpush1.msra.mxu0 0.0
      %1293 = vmatprep.subr.mxu0 0.0
      %1294 = vmatpush1.msra.mxu0 0.0
      %1295 = vmatprep.subr.mxu0 0.0
      %1296 = vmatpush1.msra.mxu0 0.0
      %1297 = vmatprep.subr.mxu0 0.0
      %1298 = vmatpush1.msra.mxu0 0.0
      %1299 = vmatprep.subr.mxu0 0.0
      %1300 = vmatpush1.msra.mxu0 0.0
      %1301 = vmatprep.subr.mxu0 0.0
      %1302 = vmatpush1.msra.mxu0 0.0
      %1303 = vmatprep.subr.mxu0 0.0
      %1304 = vmatpush1.msra.mxu0 0.0
      %1305 = vmatprep.subr.mxu0 0.0
      %1306 = vmatpush1.msra.mxu0 0.0
      %1307 = vmatprep.subr.mxu0 0.0
      %1308 = vmatpush1.msra.mxu0 0.0
      %1309 = vmatprep.subr.mxu0 0.0
      %1310 = vmatpush1.msra.mxu0 0.0
      %1311 = vmatprep.subr.mxu0 0.0
      %1312 = vmatpush1.msra.mxu0 0.0
      %1313 = vmatprep.subr.mxu0 0.0
      %1314 = vmatpush1.msra.mxu0 0.0
      %1315 = vmatprep.subr.mxu0 0.0
      %1316 = vmatpush1.msra.mxu0 0.0
      %1317 = vmatprep.subr.mxu0 0.0
      %1318 = vmatpush1.msra.mxu0 0.0
      %1319 = vmatprep.subr.mxu0 0.0
      %1320 = vmatpush1.msra.mxu0 0.0
      %1321 = vmatprep.subr.mxu0 0.0
      %1322 = vmatpush1.msra.mxu0 0.0
      %1323 = vmatprep.mubr.f32.mxu0 0.0
      %1324 = vmatmul.mubr.f32.gmra.mrb[0].mxu0 %v1254
      %v1325 = vpop.f32.mrb[0].mxu0
      %v1326 = vadd.f32 %v534, %v1325
      %v1327 = vpop.f32.mrb[0].mxu0
      %1328 = vmatprep.mubr.f32.mxu0 0.0
      %1329 = vmatmul.mubr.f32.gmra.mrb[0].mxu0 %v1257
      %v1330 = vpop.f32.mrb[0].mxu0
      %v1331 = vadd.f32 %v534, %v1330
      %v1332 = vpop.f32.mrb[0].mxu0
      %1333 = vdwg.mxu0
      %v1334 = vmul.f32 %v1326, 0.5
      %v1335 = vmul.f32 %v1331, 0.5
      %v1336 = vmul.f32 %v1326, 0.044715
      %v1337 = vmul.f32 %v1331, 0.044715
      %v1338 = vmul.f32 %v1336, %v1326
      %v1339 = vmul.f32 %v1337, %v1331
      %v1340 = vmul.f32 %v1338, %v1326
      %v1341 = vmul.f32 %v1339, %v1331
      %v1342 = vadd.f32 %v1326, %v1340
      %v1343 = vadd.f32 %v1331, %v1341
      %v1344 = vmul.f32 %v1342, 0.7978846
      %v1345 = vmul.f32 %v1343, 0.7978846
      %v1346 = vtanh.pop %v1344
      %v1347 = vtanh.pop %v1345
      %v1348 = vadd.f32 %v1346, 1.0
      %v1349 = vadd.f32 %v1347, 1.0
      %v1350 = vmul.f32 %v1334, %v1348
      %v1351 = vmul.f32 %v1335, %v1349
      %p1352 = scmp.gt.s32.totalorder %s25, 0
      %s1353 = scalar_select %p1352, 1, 0
      %s1354 = scvt.s32.f32 %s1353
      %v1355 = vstv %s1354
      %v1356 = vmul.f32 %v1249, %v1355
      %v1357 = vmul.f32 %v1250, %v1355
      %p1358 = scmp.lt.s32.totalorder %s25, 0
      %s1359 = scalar_select %p1358, 1, 0
      %s1360 = scvt.s32.f32 %s1359
      %v1361 = vstv %s1360
      %v1362 = vmul.f32 %v1350, %v1361
      %v1363 = vmul.f32 %v1351, %v1361
      %1364 = vst.msk [vmem:[#allocation2] sm:$0xff] %vm536, 0.0
      %1365 = vst.msk [vmem:[#allocation2 + $0x8] sm:$0xff] %vm536, 0.0
      %1366 = vst.msk [vmem:[#allocation2 + $0x10] sm:$0xff] %vm536, %v1356
      %1367 = vst.msk [vmem:[#allocation2 + $0x18] sm:$0xff] %vm536, %v1357
      %1368 = vst.msk [vmem:[#allocation2 + $0x20] sm:$0xff] %vm536, %v1118
      %1369 = vst.msk [vmem:[#allocation2 + $0x28] sm:$0xff] %vm536, %v1119
      %1370 = vst.msk [vmem:[#allocation2 + $0x30] sm:$0xff] %vm536, %v1120
      %1371 = vst.msk [vmem:[#allocation2 + $0x38] sm:$0xff] %vm536, %v1121
      %1372 = vst.msk [vmem:[#allocation2 + $0x40] sm:$0xff] %vm536, %v1122
      %1373 = vst.msk [vmem:[#allocation2 + $0x48] sm:$0xff] %vm536, %v1123
      %1374 = vst.msk [vmem:[#allocation2 + $0x50] sm:$0xff] %vm536, %v1124
      %1375 = vst.msk [vmem:[#allocation2 + $0x58] sm:$0xff] %vm536, %v1125
      %1376 = vst.msk [vmem:[#allocation2 + $0x60] sm:$0xff] %vm536, %v1126
      %1377 = vst.msk [vmem:[#allocation2 + $0x68] sm:$0xff] %vm536, %v1127
      %1378 = vst.msk [vmem:[#allocation2 + $0x70] sm:$0xff] %vm536, %v1128
      %1379 = vst.msk [vmem:[#allocation2 + $0x78] sm:$0xff] %vm536, %v1129
      %1380 = vst.msk [vmem:[#allocation2 + $0x80] sm:$0xff] %vm536, %v1130
      %1381 = vst.msk [vmem:[#allocation2 + $0x88] sm:$0xff] %vm536, %v1131
      %1382 = vst.msk [vmem:[#allocation2 + $0x90] sm:$0xff] %vm536, %v1132
      %1383 = vst.msk [vmem:[#allocation2 + $0x98] sm:$0xff] %vm536, %v1133
      %1384 = vst.msk [vmem:[#allocation2 + $0xa0] sm:$0xff] %vm536, %v1134
      %1385 = vst.msk [vmem:[#allocation2 + $0xa8] sm:$0xff] %vm536, %v1135
      %1386 = vst.msk [vmem:[#allocation2 + $0xb0] sm:$0xff] %vm536, %v1136
      %1387 = vst.msk [vmem:[#allocation2 + $0xb8] sm:$0xff] %vm536, %v1137
      %1388 = vst.msk [vmem:[#allocation2 + $0xc0] sm:$0xff] %vm536, %v1138
      %1389 = vst.msk [vmem:[#allocation2 + $0xc8] sm:$0xff] %vm536, %v1139
      %1390 = vst.msk [vmem:[#allocation2 + $0xd0] sm:$0xff] %vm536, %v1140
      %1391 = vst.msk [vmem:[#allocation2 + $0xd8] sm:$0xff] %vm536, %v1141
      %1392 = vst.msk [vmem:[#allocation2 + $0xe0] sm:$0xff] %vm536, %v1142
      %1393 = vst.msk [vmem:[#allocation2 + $0xe8] sm:$0xff] %vm536, %v1143
      %1394 = vst.msk [vmem:[#allocation2 + $0xf0] sm:$0xff] %vm536, %v1144
      %1395 = vst.msk [vmem:[#allocation2 + $0xf8] sm:$0xff] %vm536, %v1145
      %1396 = vst.msk [vmem:[#allocation2 + $0x100] sm:$0xff] %vm536, %v1146
      %1397 = vst.msk [vmem:[#allocation2 + $0x108] sm:$0xff] %vm536, %v1147
      %1398 = vst.msk [vmem:[#allocation2 + $0x110] sm:$0xff] %vm536, %v1148
      %1399 = vst.msk [vmem:[#allocation2 + $0x118] sm:$0xff] %vm536, %v1149
      %1400 = vst.msk [vmem:[#allocation2 + $0x120] sm:$0xff] %vm536, %v1362
      %1401 = vst.msk [vmem:[#allocation2 + $0x128] sm:$0xff] %vm536, %v1363
      %1402 = vst.msk [vmem:[#allocation2 + $0x130] sm:$0xff] %vm536, 0.0
      %1403 = vst.msk [vmem:[#allocation2 + $0x138] sm:$0xff] %vm536, 0.0
      %v1404 = vld [vmem:[%s5] sm:$0xff]
      %v1405 = vld [vmem:[%s5 + $0x8] sm:$0x1]
      %v1406 = vld [vmem:[%s6] sm:$0x1]
      %v1408 = vlaneseq
      %v1409 = vshrl.u32 %v1408, 7
      %v1410 = vsub.s32 0, %v1409
      %v1411 = vrot.slane %v1406, %v1410
      %v1413 = vlaneseq
      %v1414 = vshrl.u32 %v1413, 7
      %v1415 = vadd.s32 %v1414, 8
      %v1416 = vadd.s32 %v1414, 16
      %v1417 = vadd.s32 %v1414, 24
      %v1418 = vadd.s32 %v1414, 32
      %v1419 = vadd.s32 %v1414, 40
      %v1420 = vadd.s32 %v1414, 48
      %v1421 = vadd.s32 %v1414, 56
      %v1422 = vadd.s32 %v1414, 64
      %v1423 = vadd.s32 %v1414, 72
      %v1424 = vadd.s32 %v1414, 80
      %v1425 = vadd.s32 %v1414, 88
      %v1426 = vadd.s32 %v1414, 96
      %v1427 = vadd.s32 %v1414, 104
      %v1428 = vadd.s32 %v1414, 112
      %v1429 = vadd.s32 %v1414, 120
      %v1430 = vadd.s32 %v1414, 128
      %v1431 = vadd.s32 %v1414, 136
      %v1432 = vadd.s32 %v1414, 144
      %v1433 = vadd.s32 %v1414, 152
      %v1434 = vadd.s32 %v1414, 160
      %v1435 = vadd.s32 %v1414, 168
      %v1436 = vadd.s32 %v1414, 176
      %v1437 = vadd.s32 %v1414, 184
      %v1438 = vadd.s32 %v1414, 192
      %v1439 = vadd.s32 %v1414, 200
      %v1440 = vadd.s32 %v1414, 208
      %v1441 = vadd.s32 %v1414, 216
      %v1442 = vadd.s32 %v1414, 224
      %v1443 = vadd.s32 %v1414, 232
      %v1444 = vadd.s32 %v1414, 240
      %v1445 = vadd.s32 %v1414, 248
      %v1446 = vand.u32 %v1414, 15
      %v1447 = vand.u32 %v1415, 15
      %v1448 = vand.u32 %v1416, 15
      %v1449 = vand.u32 %v1417, 15
      %v1450 = vand.u32 %v1418, 15
      %v1451 = vand.u32 %v1419, 15
      %v1452 = vand.u32 %v1420, 15
      %v1453 = vand.u32 %v1421, 15
      %v1454 = vand.u32 %v1422, 15
      %v1455 = vand.u32 %v1423, 15
      %v1456 = vand.u32 %v1424, 15
      %v1457 = vand.u32 %v1425, 15
      %v1458 = vand.u32 %v1426, 15
      %v1459 = vand.u32 %v1427, 15
      %v1460 = vand.u32 %v1428, 15
      %v1461 = vand.u32 %v1429, 15
      %v1462 = vand.u32 %v1430, 15
      %v1463 = vand.u32 %v1431, 15
      %v1464 = vand.u32 %v1432, 15
      %v1465 = vand.u32 %v1433, 15
      %v1466 = vand.u32 %v1434, 15
      %v1467 = vand.u32 %v1435, 15
      %v1468 = vand.u32 %v1436, 15
      %v1469 = vand.u32 %v1437, 15
      %v1470 = vand.u32 %v1438, 15
      %v1471 = vand.u32 %v1439, 15
      %v1472 = vand.u32 %v1440, 15
      %v1473 = vand.u32 %v1441, 15
      %v1474 = vand.u32 %v1442, 15
      %v1475 = vand.u32 %v1443, 15
      %v1476 = vand.u32 %v1444, 15
      %v1477 = vand.u32 %v1445, 15
      %vm1478 = vcmp.ne.s32.totalorder %v1446, 0
      %vm1479 = vcmp.ne.s32.totalorder %v1447, 0
      %vm1480 = vcmp.ne.s32.totalorder %v1448, 0
      %vm1481 = vcmp.ne.s32.totalorder %v1449, 0
      %vm1482 = vcmp.ne.s32.totalorder %v1450, 0
      %vm1483 = vcmp.ne.s32.totalorder %v1451, 0
      %vm1484 = vcmp.ne.s32.totalorder %v1452, 0
      %vm1485 = vcmp.ne.s32.totalorder %v1453, 0
      %vm1486 = vcmp.ne.s32.totalorder %v1454, 0
      %vm1487 = vcmp.ne.s32.totalorder %v1455, 0
      %vm1488 = vcmp.ne.s32.totalorder %v1456, 0
      %vm1489 = vcmp.ne.s32.totalorder %v1457, 0
      %vm1490 = vcmp.ne.s32.totalorder %v1458, 0
      %vm1491 = vcmp.ne.s32.totalorder %v1459, 0
      %vm1492 = vcmp.ne.s32.totalorder %v1460, 0
      %vm1493 = vcmp.ne.s32.totalorder %v1461, 0
      %vm1494 = vcmp.ne.s32.totalorder %v1462, 0
      %vm1495 = vcmp.ne.s32.totalorder %v1463, 0
      %vm1496 = vcmp.ne.s32.totalorder %v1464, 0
      %vm1497 = vcmp.ne.s32.totalorder %v1465, 0
      %vm1498 = vcmp.ne.s32.totalorder %v1466, 0
      %vm1499 = vcmp.ne.s32.totalorder %v1467, 0
      %vm1500 = vcmp.ne.s32.totalorder %v1468, 0
      %vm1501 = vcmp.ne.s32.totalorder %v1469, 0
      %vm1502 = vcmp.ne.s32.totalorder %v1470, 0
      %vm1503 = vcmp.ne.s32.totalorder %v1471, 0
      %vm1504 = vcmp.ne.s32.totalorder %v1472, 0
      %vm1505 = vcmp.ne.s32.totalorder %v1473, 0
      %vm1506 = vcmp.ne.s32.totalorder %v1474, 0
      %vm1507 = vcmp.ne.s32.totalorder %v1475, 0
      %vm1508 = vcmp.ne.s32.totalorder %v1476, 0
      %vm1509 = vcmp.ne.s32.totalorder %v1477, 0
      %vm1510 = vcmp.ne.s32.totalorder %v1446, 15
      %vm1511 = vcmp.ne.s32.totalorder %v1447, 15
      %vm1512 = vcmp.ne.s32.totalorder %v1448, 15
      %vm1513 = vcmp.ne.s32.totalorder %v1449, 15
      %vm1514 = vcmp.ne.s32.totalorder %v1450, 15
      %vm1515 = vcmp.ne.s32.totalorder %v1451, 15
      %vm1516 = vcmp.ne.s32.totalorder %v1452, 15
      %vm1517 = vcmp.ne.s32.totalorder %v1453, 15
      %vm1518 = vcmp.ne.s32.totalorder %v1454, 15
      %vm1519 = vcmp.ne.s32.totalorder %v1455, 15
      %vm1520 = vcmp.ne.s32.totalorder %v1456, 15
      %vm1521 = vcmp.ne.s32.totalorder %v1457, 15
      %vm1522 = vcmp.ne.s32.totalorder %v1458, 15
      %vm1523 = vcmp.ne.s32.totalorder %v1459, 15
      %vm1524 = vcmp.ne.s32.totalorder %v1460, 15
      %vm1525 = vcmp.ne.s32.totalorder %v1461, 15
      %vm1526 = vcmp.ne.s32.totalorder %v1462, 15
      %vm1527 = vcmp.ne.s32.totalorder %v1463, 15
      %vm1528 = vcmp.ne.s32.totalorder %v1464, 15
      %vm1529 = vcmp.ne.s32.totalorder %v1465, 15
      %vm1530 = vcmp.ne.s32.totalorder %v1466, 15
      %vm1531 = vcmp.ne.s32.totalorder %v1467, 15
      %vm1532 = vcmp.ne.s32.totalorder %v1468, 15
      %vm1533 = vcmp.ne.s32.totalorder %v1469, 15
      %vm1534 = vcmp.ne.s32.totalorder %v1470, 15
      %vm1535 = vcmp.ne.s32.totalorder %v1471, 15
      %vm1536 = vcmp.ne.s32.totalorder %v1472, 15
      %vm1537 = vcmp.ne.s32.totalorder %v1473, 15
      %vm1538 = vcmp.ne.s32.totalorder %v1474, 15
      %vm1539 = vcmp.ne.s32.totalorder %v1475, 15
      %vm1540 = vcmp.ne.s32.totalorder %v1476, 15
      %vm1541 = vcmp.ne.s32.totalorder %v1477, 15
      %v1542 = vld [vmem:[#allocation2 + $0xf] sm:$0xff]
      %v1543 = vld [vmem:[#allocation2 + $0x17] sm:$0xff]
      %v1544 = vld [vmem:[#allocation2 + $0x1f] sm:$0xff]
      %v1545 = vld [vmem:[#allocation2 + $0x27] sm:$0xff]
      %v1546 = vld [vmem:[#allocation2 + $0x2f] sm:$0xff]
      %v1547 = vld [vmem:[#allocation2 + $0x37] sm:$0xff]
      %v1548 = vld [vmem:[#allocation2 + $0x3f] sm:$0xff]
      %v1549 = vld [vmem:[#allocation2 + $0x47] sm:$0xff]
      %v1550 = vld [vmem:[#allocation2 + $0x4f] sm:$0xff]
      %v1551 = vld [vmem:[#allocation2 + $0x57] sm:$0xff]
      %v1552 = vld [vmem:[#allocation2 + $0x5f] sm:$0xff]
      %v1553 = vld [vmem:[#allocation2 + $0x67] sm:$0xff]
      %v1554 = vld [vmem:[#allocation2 + $0x6f] sm:$0xff]
      %v1555 = vld [vmem:[#allocation2 + $0x77] sm:$0xff]
      %v1556 = vld [vmem:[#allocation2 + $0x7f] sm:$0xff]
      %v1557 = vld [vmem:[#allocation2 + $0x87] sm:$0xff]
      %v1558 = vld [vmem:[#allocation2 + $0x8f] sm:$0xff]
      %v1559 = vld [vmem:[#allocation2 + $0x97] sm:$0xff]
      %v1560 = vld [vmem:[#allocation2 + $0x9f] sm:$0xff]
      %v1561 = vld [vmem:[#allocation2 + $0xa7] sm:$0xff]
      %v1562 = vld [vmem:[#allocation2 + $0xaf] sm:$0xff]
      %v1563 = vld [vmem:[#allocation2 + $0xb7] sm:$0xff]
      %v1564 = vld [vmem:[#allocation2 + $0xbf] sm:$0xff]
      %v1565 = vld [vmem:[#allocation2 + $0xc7] sm:$0xff]
      %v1566 = vld [vmem:[#allocation2 + $0xcf] sm:$0xff]
      %v1567 = vld [vmem:[#allocation2 + $0xd7] sm:$0xff]
      %v1568 = vld [vmem:[#allocation2 + $0xdf] sm:$0xff]
      %v1569 = vld [vmem:[#allocation2 + $0xe7] sm:$0xff]
      %v1570 = vld [vmem:[#allocation2 + $0xef] sm:$0xff]
      %v1571 = vld [vmem:[#allocation2 + $0xf7] sm:$0xff]
      %v1572 = vld [vmem:[#allocation2 + $0xff] sm:$0xff]
      %v1573 = vld [vmem:[#allocation2 + $0x107] sm:$0xff]
      %v1574 = vsel %vm1478, %v1542, 0.0
      %v1575 = vsel %vm1479, %v1543, 0.0
      %v1576 = vsel %vm1480, %v1544, 0.0
      %v1577 = vsel %vm1481, %v1545, 0.0
      %v1578 = vsel %vm1482, %v1546, 0.0
      %v1579 = vsel %vm1483, %v1547, 0.0
      %v1580 = vsel %vm1484, %v1548, 0.0
      %v1581 = vsel %vm1485, %v1549, 0.0
      %v1582 = vsel %vm1486, %v1550, 0.0
      %v1583 = vsel %vm1487, %v1551, 0.0
      %v1584 = vsel %vm1488, %v1552, 0.0
      %v1585 = vsel %vm1489, %v1553, 0.0
      %v1586 = vsel %vm1490, %v1554, 0.0
      %v1587 = vsel %vm1491, %v1555, 0.0
      %v1588 = vsel %vm1492, %v1556, 0.0
      %v1589 = vsel %vm1493, %v1557, 0.0
      %v1590 = vsel %vm1494, %v1558, 0.0
      %v1591 = vsel %vm1495, %v1559, 0.0
      %v1592 = vsel %vm1496, %v1560, 0.0
      %v1593 = vsel %vm1497, %v1561, 0.0
      %v1594 = vsel %vm1498, %v1562, 0.0
      %v1595 = vsel %vm1499, %v1563, 0.0
      %v1596 = vsel %vm1500, %v1564, 0.0
      %v1597 = vsel %vm1501, %v1565, 0.0
      %v1598 = vsel %vm1502, %v1566, 0.0
      %v1599 = vsel %vm1503, %v1567, 0.0
      %v1600 = vsel %vm1504, %v1568, 0.0
      %v1601 = vsel %vm1505, %v1569, 0.0
      %v1602 = vsel %vm1506, %v1570, 0.0
      %v1603 = vsel %vm1507, %v1571, 0.0
      %v1604 = vsel %vm1508, %v1572, 0.0
      %v1605 = vsel %vm1509, %v1573, 0.0
      %v1606 = vlaneseq
      %v1607 = vshrl.u32 %v1606, 7
      %v1608 = vsub.s32 0, %v1607
      %v1609 = vrot.slane %v1404, %v1608
      %v1610 = vmul.f32 %v1574, %v1609
      %v1611 = vmul.f32 %v1575, %v1609
      %v1612 = vmul.f32 %v1576, %v1609
      %v1613 = vmul.f32 %v1577, %v1609
      %v1614 = vmul.f32 %v1578, %v1609
      %v1615 = vmul.f32 %v1579, %v1609
      %v1616 = vmul.f32 %v1580, %v1609
      %v1617 = vmul.f32 %v1581, %v1609
      %v1618 = vmul.f32 %v1582, %v1609
      %v1619 = vmul.f32 %v1583, %v1609
      %v1620 = vmul.f32 %v1584, %v1609
      %v1621 = vmul.f32 %v1585, %v1609
      %v1622 = vmul.f32 %v1586, %v1609
      %v1623 = vmul.f32 %v1587, %v1609
      %v1624 = vmul.f32 %v1588, %v1609
      %v1625 = vmul.f32 %v1589, %v1609
      %v1626 = vmul.f32 %v1590, %v1609
      %v1627 = vmul.f32 %v1591, %v1609
      %v1628 = vmul.f32 %v1592, %v1609
      %v1629 = vmul.f32 %v1593, %v1609
      %v1630 = vmul.f32 %v1594, %v1609
      %v1631 = vmul.f32 %v1595, %v1609
      %v1632 = vmul.f32 %v1596, %v1609
      %v1633 = vmul.f32 %v1597, %v1609
      %v1634 = vmul.f32 %v1598, %v1609
      %v1635 = vmul.f32 %v1599, %v1609
      %v1636 = vmul.f32 %v1600, %v1609
      %v1637 = vmul.f32 %v1601, %v1609
      %v1638 = vmul.f32 %v1602, %v1609
      %v1639 = vmul.f32 %v1603, %v1609
      %v1640 = vmul.f32 %v1604, %v1609
      %v1641 = vmul.f32 %v1605, %v1609
      %v1642 = vadd.f32 %v1411, %v1610
      %v1643 = vadd.f32 %v1411, %v1611
      %v1644 = vadd.f32 %v1411, %v1612
      %v1645 = vadd.f32 %v1411, %v1613
      %v1646 = vadd.f32 %v1411, %v1614
      %v1647 = vadd.f32 %v1411, %v1615
      %v1648 = vadd.f32 %v1411, %v1616
      %v1649 = vadd.f32 %v1411, %v1617
      %v1650 = vadd.f32 %v1411, %v1618
      %v1651 = vadd.f32 %v1411, %v1619
      %v1652 = vadd.f32 %v1411, %v1620
      %v1653 = vadd.f32 %v1411, %v1621
      %v1654 = vadd.f32 %v1411, %v1622
      %v1655 = vadd.f32 %v1411, %v1623
      %v1656 = vadd.f32 %v1411, %v1624
      %v1657 = vadd.f32 %v1411, %v1625
      %v1658 = vadd.f32 %v1411, %v1626
      %v1659 = vadd.f32 %v1411, %v1627
      %v1660 = vadd.f32 %v1411, %v1628
      %v1661 = vadd.f32 %v1411, %v1629
      %v1662 = vadd.f32 %v1411, %v1630
      %v1663 = vadd.f32 %v1411, %v1631
      %v1664 = vadd.f32 %v1411, %v1632
      %v1665 = vadd.f32 %v1411, %v1633
      %v1666 = vadd.f32 %v1411, %v1634
      %v1667 = vadd.f32 %v1411, %v1635
      %v1668 = vadd.f32 %v1411, %v1636
      %v1669 = vadd.f32 %v1411, %v1637
      %v1670 = vadd.f32 %v1411, %v1638
      %v1671 = vadd.f32 %v1411, %v1639
      %v1672 = vadd.f32 %v1411, %v1640
      %v1673 = vadd.f32 %v1411, %v1641
      %v1674 = vld [vmem:[#allocation2 + $0x10] sm:$0xff]
      %v1675 = vld [vmem:[#allocation2 + $0x18] sm:$0xff]
      %v1676 = vld [vmem:[#allocation2 + $0x20] sm:$0xff]
      %v1677 = vld [vmem:[#allocation2 + $0x28] sm:$0xff]
      %v1678 = vld [vmem:[#allocation2 + $0x30] sm:$0xff]
      %v1679 = vld [vmem:[#allocation2 + $0x38] sm:$0xff]
      %v1680 = vld [vmem:[#allocation2 + $0x40] sm:$0xff]
      %v1681 = vld [vmem:[#allocation2 + $0x48] sm:$0xff]
      %v1682 = vld [vmem:[#allocation2 + $0x50] sm:$0xff]
      %v1683 = vld [vmem:[#allocation2 + $0x58] sm:$0xff]
      %v1684 = vld [vmem:[#allocation2 + $0x60] sm:$0xff]
      %v1685 = vld [vmem:[#allocation2 + $0x68] sm:$0xff]
      %v1686 = vld [vmem:[#allocation2 + $0x70] sm:$0xff]
      %v1687 = vld [vmem:[#allocation2 + $0x78] sm:$0xff]
      %v1688 = vld [vmem:[#allocation2 + $0x80] sm:$0xff]
      %v1689 = vld [vmem:[#allocation2 + $0x88] sm:$0xff]
      %v1690 = vld [vmem:[#allocation2 + $0x90] sm:$0xff]
      %v1691 = vld [vmem:[#allocation2 + $0x98] sm:$0xff]
      %v1692 = vld [vmem:[#allocation2 + $0xa0] sm:$0xff]
      %v1693 = vld [vmem:[#allocation2 + $0xa8] sm:$0xff]
      %v1694 = vld [vmem:[#allocation2 + $0xb0] sm:$0xff]
      %v1695 = vld [vmem:[#allocation2 + $0xb8] sm:$0xff]
      %v1696 = vld [vmem:[#allocation2 + $0xc0] sm:$0xff]
      %v1697 = vld [vmem:[#allocation2 + $0xc8] sm:$0xff]
      %v1698 = vld [vmem:[#allocation2 + $0xd0] sm:$0xff]
      %v1699 = vld [vmem:[#allocation2 + $0xd8] sm:$0xff]
      %v1700 = vld [vmem:[#allocation2 + $0xe0] sm:$0xff]
      %v1701 = vld [vmem:[#allocation2 + $0xe8] sm:$0xff]
      %v1702 = vld [vmem:[#allocation2 + $0xf0] sm:$0xff]
      %v1703 = vld [vmem:[#allocation2 + $0xf8] sm:$0xff]
      %v1704 = vld [vmem:[#allocation2 + $0x100] sm:$0xff]
      %v1705 = vld [vmem:[#allocation2 + $0x108] sm:$0xff]
      %v1706 = vlaneseq
      %v1707 = vshrl.u32 %v1706, 7
      %v1708 = vsub.s32 1, %v1707
      %v1709 = vrot.slane %v1404, %v1708
      %v1710 = vmul.f32 %v1674, %v1709
      %v1711 = vmul.f32 %v1675, %v1709
      %v1712 = vmul.f32 %v1676, %v1709
      %v1713 = vmul.f32 %v1677, %v1709
      %v1714 = vmul.f32 %v1678, %v1709
      %v1715 = vmul.f32 %v1679, %v1709
      %v1716 = vmul.f32 %v1680, %v1709
      %v1717 = vmul.f32 %v1681, %v1709
      %v1718 = vmul.f32 %v1682, %v1709
      %v1719 = vmul.f32 %v1683, %v1709
      %v1720 = vmul.f32 %v1684, %v1709
      %v1721 = vmul.f32 %v1685, %v1709
      %v1722 = vmul.f32 %v1686, %v1709
      %v1723 = vmul.f32 %v1687, %v1709
      %v1724 = vmul.f32 %v1688, %v1709
      %v1725 = vmul.f32 %v1689, %v1709
      %v1726 = vmul.f32 %v1690, %v1709
      %v1727 = vmul.f32 %v1691, %v1709
      %v1728 = vmul.f32 %v1692, %v1709
      %v1729 = vmul.f32 %v1693, %v1709
      %v1730 = vmul.f32 %v1694, %v1709
      %v1731 = vmul.f32 %v1695, %v1709
      %v1732 = vmul.f32 %v1696, %v1709
      %v1733 = vmul.f32 %v1697, %v1709
      %v1734 = vmul.f32 %v1698, %v1709
      %v1735 = vmul.f32 %v1699, %v1709
      %v1736 = vmul.f32 %v1700, %v1709
      %v1737 = vmul.f32 %v1701, %v1709
      %v1738 = vmul.f32 %v1702, %v1709
      %v1739 = vmul.f32 %v1703, %v1709
      %v1740 = vmul.f32 %v1704, %v1709
      %v1741 = vmul.f32 %v1705, %v1709
      %v1742 = vadd.f32 %v1642, %v1710
      %v1743 = vadd.f32 %v1643, %v1711
      %v1744 = vadd.f32 %v1644, %v1712
      %v1745 = vadd.f32 %v1645, %v1713
      %v1746 = vadd.f32 %v1646, %v1714
      %v1747 = vadd.f32 %v1647, %v1715
      %v1748 = vadd.f32 %v1648, %v1716
      %v1749 = vadd.f32 %v1649, %v1717
      %v1750 = vadd.f32 %v1650, %v1718
      %v1751 = vadd.f32 %v1651, %v1719
      %v1752 = vadd.f32 %v1652, %v1720
      %v1753 = vadd.f32 %v1653, %v1721
      %v1754 = vadd.f32 %v1654, %v1722
      %v1755 = vadd.f32 %v1655, %v1723
      %v1756 = vadd.f32 %v1656, %v1724
      %v1757 = vadd.f32 %v1657, %v1725
      %v1758 = vadd.f32 %v1658, %v1726
      %v1759 = vadd.f32 %v1659, %v1727
      %v1760 = vadd.f32 %v1660, %v1728
      %v1761 = vadd.f32 %v1661, %v1729
      %v1762 = vadd.f32 %v1662, %v1730
      %v1763 = vadd.f32 %v1663, %v1731
      %v1764 = vadd.f32 %v1664, %v1732
      %v1765 = vadd.f32 %v1665, %v1733
      %v1766 = vadd.f32 %v1666, %v1734
      %v1767 = vadd.f32 %v1667, %v1735
      %v1768 = vadd.f32 %v1668, %v1736
      %v1769 = vadd.f32 %v1669, %v1737
      %v1770 = vadd.f32 %v1670, %v1738
      %v1771 = vadd.f32 %v1671, %v1739
      %v1772 = vadd.f32 %v1672, %v1740
      %v1773 = vadd.f32 %v1673, %v1741
      %v1774 = vld [vmem:[#allocation2 + $0x11] sm:$0xff]
      %v1775 = vld [vmem:[#allocation2 + $0x19] sm:$0xff]
      %v1776 = vld [vmem:[#allocation2 + $0x21] sm:$0xff]
      %v1777 = vld [vmem:[#allocation2 + $0x29] sm:$0xff]
      %v1778 = vld [vmem:[#allocation2 + $0x31] sm:$0xff]
      %v1779 = vld [vmem:[#allocation2 + $0x39] sm:$0xff]
      %v1780 = vld [vmem:[#allocation2 + $0x41] sm:$0xff]
      %v1781 = vld [vmem:[#allocation2 + $0x49] sm:$0xff]
      %v1782 = vld [vmem:[#allocation2 + $0x51] sm:$0xff]
      %v1783 = vld [vmem:[#allocation2 + $0x59] sm:$0xff]
      %v1784 = vld [vmem:[#allocation2 + $0x61] sm:$0xff]
      %v1785 = vld [vmem:[#allocation2 + $0x69] sm:$0xff]
      %v1786 = vld [vmem:[#allocation2 + $0x71] sm:$0xff]
      %v1787 = vld [vmem:[#allocation2 + $0x79] sm:$0xff]
      %v1788 = vld [vmem:[#allocation2 + $0x81] sm:$0xff]
      %v1789 = vld [vmem:[#allocation2 + $0x89] sm:$0xff]
      %v1790 = vld [vmem:[#allocation2 + $0x91] sm:$0xff]
      %v1791 = vld [vmem:[#allocation2 + $0x99] sm:$0xff]
      %v1792 = vld [vmem:[#allocation2 + $0xa1] sm:$0xff]
      %v1793 = vld [vmem:[#allocation2 + $0xa9] sm:$0xff]
      %v1794 = vld [vmem:[#allocation2 + $0xb1] sm:$0xff]
      %v1795 = vld [vmem:[#allocation2 + $0xb9] sm:$0xff]
      %v1796 = vld [vmem:[#allocation2 + $0xc1] sm:$0xff]
      %v1797 = vld [vmem:[#allocation2 + $0xc9] sm:$0xff]
      %v1798 = vld [vmem:[#allocation2 + $0xd1] sm:$0xff]
      %v1799 = vld [vmem:[#allocation2 + $0xd9] sm:$0xff]
      %v1800 = vld [vmem:[#allocation2 + $0xe1] sm:$0xff]
      %v1801 = vld [vmem:[#allocation2 + $0xe9] sm:$0xff]
      %v1802 = vld [vmem:[#allocation2 + $0xf1] sm:$0xff]
      %v1803 = vld [vmem:[#allocation2 + $0xf9] sm:$0xff]
      %v1804 = vld [vmem:[#allocation2 + $0x101] sm:$0xff]
      %v1805 = vld [vmem:[#allocation2 + $0x109] sm:$0xff]
      %v1806 = vsel %vm1510, %v1774, 0.0
      %v1807 = vsel %vm1511, %v1775, 0.0
      %v1808 = vsel %vm1512, %v1776, 0.0
      %v1809 = vsel %vm1513, %v1777, 0.0
      %v1810 = vsel %vm1514, %v1778, 0.0
      %v1811 = vsel %vm1515, %v1779, 0.0
      %v1812 = vsel %vm1516, %v1780, 0.0
      %v1813 = vsel %vm1517, %v1781, 0.0
      %v1814 = vsel %vm1518, %v1782, 0.0
      %v1815 = vsel %vm1519, %v1783, 0.0
      %v1816 = vsel %vm1520, %v1784, 0.0
      %v1817 = vsel %vm1521, %v1785, 0.0
      %v1818 = vsel %vm1522, %v1786, 0.0
      %v1819 = vsel %vm1523, %v1787, 0.0
      %v1820 = vsel %vm1524, %v1788, 0.0
      %v1821 = vsel %vm1525, %v1789, 0.0
      %v1822 = vsel %vm1526, %v1790, 0.0
      %v1823 = vsel %vm1527, %v1791, 0.0
      %v1824 = vsel %vm1528, %v1792, 0.0
      %v1825 = vsel %vm1529, %v1793, 0.0
      %v1826 = vsel %vm1530, %v1794, 0.0
      %v1827 = vsel %vm1531, %v1795, 0.0
      %v1828 = vsel %vm1532, %v1796, 0.0
      %v1829 = vsel %vm1533, %v1797, 0.0
      %v1830 = vsel %vm1534, %v1798, 0.0
      %v1831 = vsel %vm1535, %v1799, 0.0
      %v1832 = vsel %vm1536, %v1800, 0.0
      %v1833 = vsel %vm1537, %v1801, 0.0
      %v1834 = vsel %vm1538, %v1802, 0.0
      %v1835 = vsel %vm1539, %v1803, 0.0
      %v1836 = vsel %vm1540, %v1804, 0.0
      %v1837 = vsel %vm1541, %v1805, 0.0
      %v1838 = vlaneseq
      %v1839 = vshrl.u32 %v1838, 7
      %v1840 = vsub.s32 2, %v1839
      %v1841 = vrot.slane %v1404, %v1840
      %v1842 = vmul.f32 %v1806, %v1841
      %v1843 = vmul.f32 %v1807, %v1841
      %v1844 = vmul.f32 %v1808, %v1841
      %v1845 = vmul.f32 %v1809, %v1841
      %v1846 = vmul.f32 %v1810, %v1841
      %v1847 = vmul.f32 %v1811, %v1841
      %v1848 = vmul.f32 %v1812, %v1841
      %v1849 = vmul.f32 %v1813, %v1841
      %v1850 = vmul.f32 %v1814, %v1841
      %v1851 = vmul.f32 %v1815, %v1841
      %v1852 = vmul.f32 %v1816, %v1841
      %v1853 = vmul.f32 %v1817, %v1841
      %v1854 = vmul.f32 %v1818, %v1841
      %v1855 = vmul.f32 %v1819, %v1841
      %v1856 = vmul.f32 %v1820, %v1841
      %v1857 = vmul.f32 %v1821, %v1841
      %v1858 = vmul.f32 %v1822, %v1841
      %v1859 = vmul.f32 %v1823, %v1841
      %v1860 = vmul.f32 %v1824, %v1841
      %v1861 = vmul.f32 %v1825, %v1841
      %v1862 = vmul.f32 %v1826, %v1841
      %v1863 = vmul.f32 %v1827, %v1841
      %v1864 = vmul.f32 %v1828, %v1841
      %v1865 = vmul.f32 %v1829, %v1841
      %v1866 = vmul.f32 %v1830, %v1841
      %v1867 = vmul.f32 %v1831, %v1841
      %v1868 = vmul.f32 %v1832, %v1841
      %v1869 = vmul.f32 %v1833, %v1841
      %v1870 = vmul.f32 %v1834, %v1841
      %v1871 = vmul.f32 %v1835, %v1841
      %v1872 = vmul.f32 %v1836, %v1841
      %v1873 = vmul.f32 %v1837, %v1841
      %v1874 = vadd.f32 %v1742, %v1842
      %v1875 = vadd.f32 %v1743, %v1843
      %v1876 = vadd.f32 %v1744, %v1844
      %v1877 = vadd.f32 %v1745, %v1845
      %v1878 = vadd.f32 %v1746, %v1846
      %v1879 = vadd.f32 %v1747, %v1847
      %v1880 = vadd.f32 %v1748, %v1848
      %v1881 = vadd.f32 %v1749, %v1849
      %v1882 = vadd.f32 %v1750, %v1850
      %v1883 = vadd.f32 %v1751, %v1851
      %v1884 = vadd.f32 %v1752, %v1852
      %v1885 = vadd.f32 %v1753, %v1853
      %v1886 = vadd.f32 %v1754, %v1854
      %v1887 = vadd.f32 %v1755, %v1855
      %v1888 = vadd.f32 %v1756, %v1856
      %v1889 = vadd.f32 %v1757, %v1857
      %v1890 = vadd.f32 %v1758, %v1858
      %v1891 = vadd.f32 %v1759, %v1859
      %v1892 = vadd.f32 %v1760, %v1860
      %v1893 = vadd.f32 %v1761, %v1861
      %v1894 = vadd.f32 %v1762, %v1862
      %v1895 = vadd.f32 %v1763, %v1863
      %v1896 = vadd.f32 %v1764, %v1864
      %v1897 = vadd.f32 %v1765, %v1865
      %v1898 = vadd.f32 %v1766, %v1866
      %v1899 = vadd.f32 %v1767, %v1867
      %v1900 = vadd.f32 %v1768, %v1868
      %v1901 = vadd.f32 %v1769, %v1869
      %v1902 = vadd.f32 %v1770, %v1870
      %v1903 = vadd.f32 %v1771, %v1871
      %v1904 = vadd.f32 %v1772, %v1872
      %v1905 = vadd.f32 %v1773, %v1873
      %v1906 = vld [vmem:[#allocation2 + $0x10f] sm:$0xff]
      %v1907 = vld [vmem:[#allocation2 + $0x117] sm:$0xff]
      %v1908 = vsel %vm1478, %v1544, 0.0
      %v1909 = vsel %vm1479, %v1545, 0.0
      %v1910 = vsel %vm1480, %v1546, 0.0
      %v1911 = vsel %vm1481, %v1547, 0.0
      %v1912 = vsel %vm1482, %v1548, 0.0
      %v1913 = vsel %vm1483, %v1549, 0.0
      %v1914 = vsel %vm1484, %v1550, 0.0
      %v1915 = vsel %vm1485, %v1551, 0.0
      %v1916 = vsel %vm1486, %v1552, 0.0
      %v1917 = vsel %vm1487, %v1553, 0.0
      %v1918 = vsel %vm1488, %v1554, 0.0
      %v1919 = vsel %vm1489, %v1555, 0.0
      %v1920 = vsel %vm1490, %v1556, 0.0
      %v1921 = vsel %vm1491, %v1557, 0.0
      %v1922 = vsel %vm1492, %v1558, 0.0
      %v1923 = vsel %vm1493, %v1559, 0.0
      %v1924 = vsel %vm1494, %v1560, 0.0
      %v1925 = vsel %vm1495, %v1561, 0.0
      %v1926 = vsel %vm1496, %v1562, 0.0
      %v1927 = vsel %vm1497, %v1563, 0.0
      %v1928 = vsel %vm1498, %v1564, 0.0
      %v1929 = vsel %vm1499, %v1565, 0.0
      %v1930 = vsel %vm1500, %v1566, 0.0
      %v1931 = vsel %vm1501, %v1567, 0.0
      %v1932 = vsel %vm1502, %v1568, 0.0
      %v1933 = vsel %vm1503, %v1569, 0.0
      %v1934 = vsel %vm1504, %v1570, 0.0
      %v1935 = vsel %vm1505, %v1571, 0.0
      %v1936 = vsel %vm1506, %v1572, 0.0
      %v1937 = vsel %vm1507, %v1573, 0.0
      %v1938 = vsel %vm1508, %v1906, 0.0
      %v1939 = vsel %vm1509, %v1907, 0.0
      %v1940 = vlaneseq
      %v1941 = vshrl.u32 %v1940, 7
      %v1942 = vsub.s32 3, %v1941
      %v1943 = vrot.slane %v1404, %v1942
      %v1944 = vmul.f32 %v1908, %v1943
      %v1945 = vmul.f32 %v1909, %v1943
      %v1946 = vmul.f32 %v1910, %v1943
      %v1947 = vmul.f32 %v1911, %v1943
      %v1948 = vmul.f32 %v1912, %v1943
      %v1949 = vmul.f32 %v1913, %v1943
      %v1950 = vmul.f32 %v1914, %v1943
      %v1951 = vmul.f32 %v1915, %v1943
      %v1952 = vmul.f32 %v1916, %v1943
      %v1953 = vmul.f32 %v1917, %v1943
      %v1954 = vmul.f32 %v1918, %v1943
      %v1955 = vmul.f32 %v1919, %v1943
      %v1956 = vmul.f32 %v1920, %v1943
      %v1957 = vmul.f32 %v1921, %v1943
      %v1958 = vmul.f32 %v1922, %v1943
      %v1959 = vmul.f32 %v1923, %v1943
      %v1960 = vmul.f32 %v1924, %v1943
      %v1961 = vmul.f32 %v1925, %v1943
      %v1962 = vmul.f32 %v1926, %v1943
      %v1963 = vmul.f32 %v1927, %v1943
      %v1964 = vmul.f32 %v1928, %v1943
      %v1965 = vmul.f32 %v1929, %v1943
      %v1966 = vmul.f32 %v1930, %v1943
      %v1967 = vmul.f32 %v1931, %v1943
      %v1968 = vmul.f32 %v1932, %v1943
      %v1969 = vmul.f32 %v1933, %v1943
      %v1970 = vmul.f32 %v1934, %v1943
      %v1971 = vmul.f32 %v1935, %v1943
      %v1972 = vmul.f32 %v1936, %v1943
      %v1973 = vmul.f32 %v1937, %v1943
      %v1974 = vmul.f32 %v1938, %v1943
      %v1975 = vmul.f32 %v1939, %v1943
      %v1976 = vadd.f32 %v1874, %v1944
      %v1977 = vadd.f32 %v1875, %v1945
      %v1978 = vadd.f32 %v1876, %v1946
      %v1979 = vadd.f32 %v1877, %v1947
      %v1980 = vadd.f32 %v1878, %v1948
      %v1981 = vadd.f32 %v1879, %v1949
      %v1982 = vadd.f32 %v1880, %v1950
      %v1983 = vadd.f32 %v1881, %v1951
      %v1984 = vadd.f32 %v1882, %v1952
      %v1985 = vadd.f32 %v1883, %v1953
      %v1986 = vadd.f32 %v1884, %v1954
      %v1987 = vadd.f32 %v1885, %v1955
      %v1988 = vadd.f32 %v1886, %v1956
      %v1989 = vadd.f32 %v1887, %v1957
      %v1990 = vadd.f32 %v1888, %v1958
      %v1991 = vadd.f32 %v1889, %v1959
      %v1992 = vadd.f32 %v1890, %v1960
      %v1993 = vadd.f32 %v1891, %v1961
      %v1994 = vadd.f32 %v1892, %v1962
      %v1995 = vadd.f32 %v1893, %v1963
      %v1996 = vadd.f32 %v1894, %v1964
      %v1997 = vadd.f32 %v1895, %v1965
      %v1998 = vadd.f32 %v1896, %v1966
      %v1999 = vadd.f32 %v1897, %v1967
      %v2000 = vadd.f32 %v1898, %v1968
      %v2001 = vadd.f32 %v1899, %v1969
      %v2002 = vadd.f32 %v1900, %v1970
      %v2003 = vadd.f32 %v1901, %v1971
      %v2004 = vadd.f32 %v1902, %v1972
      %v2005 = vadd.f32 %v1903, %v1973
      %v2006 = vadd.f32 %v1904, %v1974
      %v2007 = vadd.f32 %v1905, %v1975
      %v2008 = vld [vmem:[#allocation2 + $0x110] sm:$0xff]
      %v2009 = vld [vmem:[#allocation2 + $0x118] sm:$0xff]
      %v2010 = vlaneseq
      %v2011 = vshrl.u32 %v2010, 7
      %v2012 = vsub.s32 4, %v2011
      %v2013 = vrot.slane %v1404, %v2012
      %v2014 = vmul.f32 %v1676, %v2013
      %v2015 = vmul.f32 %v1677, %v2013
      %v2016 = vmul.f32 %v1678, %v2013
      %v2017 = vmul.f32 %v1679, %v2013
      %v2018 = vmul.f32 %v1680, %v2013
      %v2019 = vmul.f32 %v1681, %v2013
      %v2020 = vmul.f32 %v1682, %v2013
      %v2021 = vmul.f32 %v1683, %v2013
      %v2022 = vmul.f32 %v1684, %v2013
      %v2023 = vmul.f32 %v1685, %v2013
      %v2024 = vmul.f32 %v1686, %v2013
      %v2025 = vmul.f32 %v1687, %v2013
      %v2026 = vmul.f32 %v1688, %v2013
      %v2027 = vmul.f32 %v1689, %v2013
      %v2028 = vmul.f32 %v1690, %v2013
      %v2029 = vmul.f32 %v1691, %v2013
      %v2030 = vmul.f32 %v1692, %v2013
      %v2031 = vmul.f32 %v1693, %v2013
      %v2032 = vmul.f32 %v1694, %v2013
      %v2033 = vmul.f32 %v1695, %v2013
      %v2034 = vmul.f32 %v1696, %v2013
      %v2035 = vmul.f32 %v1697, %v2013
      %v2036 = vmul.f32 %v1698, %v2013
      %v2037 = vmul.f32 %v1699, %v2013
      %v2038 = vmul.f32 %v1700, %v2013
      %v2039 = vmul.f32 %v1701, %v2013
      %v2040 = vmul.f32 %v1702, %v2013
      %v2041 = vmul.f32 %v1703, %v2013
      %v2042 = vmul.f32 %v1704, %v2013
      %v2043 = vmul.f32 %v1705, %v2013
      %v2044 = vmul.f32 %v2008, %v2013
      %v2045 = vmul.f32 %v2009, %v2013
      %v2046 = vadd.f32 %v1976, %v2014
      %v2047 = vadd.f32 %v1977, %v2015
      %v2048 = vadd.f32 %v1978, %v2016
      %v2049 = vadd.f32 %v1979, %v2017
      %v2050 = vadd.f32 %v1980, %v2018
      %v2051 = vadd.f32 %v1981, %v2019
      %v2052 = vadd.f32 %v1982, %v2020
      %v2053 = vadd.f32 %v1983, %v2021
      %v2054 = vadd.f32 %v1984, %v2022
      %v2055 = vadd.f32 %v1985, %v2023
      %v2056 = vadd.f32 %v1986, %v2024
      %v2057 = vadd.f32 %v1987, %v2025
      %v2058 = vadd.f32 %v1988, %v2026
      %v2059 = vadd.f32 %v1989, %v2027
      %v2060 = vadd.f32 %v1990, %v2028
      %v2061 = vadd.f32 %v1991, %v2029
      %v2062 = vadd.f32 %v1992, %v2030
      %v2063 = vadd.f32 %v1993, %v2031
      %v2064 = vadd.f32 %v1994, %v2032
      %v2065 = vadd.f32 %v1995, %v2033
      %v2066 = vadd.f32 %v1996, %v2034
      %v2067 = vadd.f32 %v1997, %v2035
      %v2068 = vadd.f32 %v1998, %v2036
      %v2069 = vadd.f32 %v1999, %v2037
      %v2070 = vadd.f32 %v2000, %v2038
      %v2071 = vadd.f32 %v2001, %v2039
      %v2072 = vadd.f32 %v2002, %v2040
      %v2073 = vadd.f32 %v2003, %v2041
      %v2074 = vadd.f32 %v2004, %v2042
      %v2075 = vadd.f32 %v2005, %v2043
      %v2076 = vadd.f32 %v2006, %v2044
      %v2077 = vadd.f32 %v2007, %v2045
      %v2078 = vld [vmem:[#allocation2 + $0x111] sm:$0xff]
      %v2079 = vld [vmem:[#allocation2 + $0x119] sm:$0xff]
      %v2080 = vsel %vm1510, %v1776, 0.0
      %v2081 = vsel %vm1511, %v1777, 0.0
      %v2082 = vsel %vm1512, %v1778, 0.0
      %v2083 = vsel %vm1513, %v1779, 0.0
      %v2084 = vsel %vm1514, %v1780, 0.0
      %v2085 = vsel %vm1515, %v1781, 0.0
      %v2086 = vsel %vm1516, %v1782, 0.0
      %v2087 = vsel %vm1517, %v1783, 0.0
      %v2088 = vsel %vm1518, %v1784, 0.0
      %v2089 = vsel %vm1519, %v1785, 0.0
      %v2090 = vsel %vm1520, %v1786, 0.0
      %v2091 = vsel %vm1521, %v1787, 0.0
      %v2092 = vsel %vm1522, %v1788, 0.0
      %v2093 = vsel %vm1523, %v1789, 0.0
      %v2094 = vsel %vm1524, %v1790, 0.0
      %v2095 = vsel %vm1525, %v1791, 0.0
      %v2096 = vsel %vm1526, %v1792, 0.0
      %v2097 = vsel %vm1527, %v1793, 0.0
      %v2098 = vsel %vm1528, %v1794, 0.0
      %v2099 = vsel %vm1529, %v1795, 0.0
      %v2100 = vsel %vm1530, %v1796, 0.0
      %v2101 = vsel %vm1531, %v1797, 0.0
      %v2102 = vsel %vm1532, %v1798, 0.0
      %v2103 = vsel %vm1533, %v1799, 0.0
      %v2104 = vsel %vm1534, %v1800, 0.0
      %v2105 = vsel %vm1535, %v1801, 0.0
      %v2106 = vsel %vm1536, %v1802, 0.0
      %v2107 = vsel %vm1537, %v1803, 0.0
      %v2108 = vsel %vm1538, %v1804, 0.0
      %v2109 = vsel %vm1539, %v1805, 0.0
      %v2110 = vsel %vm1540, %v2078, 0.0
      %v2111 = vsel %vm1541, %v2079, 0.0
      %v2112 = vlaneseq
      %v2113 = vshrl.u32 %v2112, 7
      %v2114 = vsub.s32 5, %v2113
      %v2115 = vrot.slane %v1404, %v2114
      %v2116 = vmul.f32 %v2080, %v2115
      %v2117 = vmul.f32 %v2081, %v2115
      %v2118 = vmul.f32 %v2082, %v2115
      %v2119 = vmul.f32 %v2083, %v2115
      %v2120 = vmul.f32 %v2084, %v2115
      %v2121 = vmul.f32 %v2085, %v2115
      %v2122 = vmul.f32 %v2086, %v2115
      %v2123 = vmul.f32 %v2087, %v2115
      %v2124 = vmul.f32 %v2088, %v2115
      %v2125 = vmul.f32 %v2089, %v2115
      %v2126 = vmul.f32 %v2090, %v2115
      %v2127 = vmul.f32 %v2091, %v2115
      %v2128 = vmul.f32 %v2092, %v2115
      %v2129 = vmul.f32 %v2093, %v2115
      %v2130 = vmul.f32 %v2094, %v2115
      %v2131 = vmul.f32 %v2095, %v2115
      %v2132 = vmul.f32 %v2096, %v2115
      %v2133 = vmul.f32 %v2097, %v2115
      %v2134 = vmul.f32 %v2098, %v2115
      %v2135 = vmul.f32 %v2099, %v2115
      %v2136 = vmul.f32 %v2100, %v2115
      %v2137 = vmul.f32 %v2101, %v2115
      %v2138 = vmul.f32 %v2102, %v2115
      %v2139 = vmul.f32 %v2103, %v2115
      %v2140 = vmul.f32 %v2104, %v2115
      %v2141 = vmul.f32 %v2105, %v2115
      %v2142 = vmul.f32 %v2106, %v2115
      %v2143 = vmul.f32 %v2107, %v2115
      %v2144 = vmul.f32 %v2108, %v2115
      %v2145 = vmul.f32 %v2109, %v2115
      %v2146 = vmul.f32 %v2110, %v2115
      %v2147 = vmul.f32 %v2111, %v2115
      %v2148 = vadd.f32 %v2046, %v2116
      %v2149 = vadd.f32 %v2047, %v2117
      %v2150 = vadd.f32 %v2048, %v2118
      %v2151 = vadd.f32 %v2049, %v2119
      %v2152 = vadd.f32 %v2050, %v2120
      %v2153 = vadd.f32 %v2051, %v2121
      %v2154 = vadd.f32 %v2052, %v2122
      %v2155 = vadd.f32 %v2053, %v2123
      %v2156 = vadd.f32 %v2054, %v2124
      %v2157 = vadd.f32 %v2055, %v2125
      %v2158 = vadd.f32 %v2056, %v2126
      %v2159 = vadd.f32 %v2057, %v2127
      %v2160 = vadd.f32 %v2058, %v2128
      %v2161 = vadd.f32 %v2059, %v2129
      %v2162 = vadd.f32 %v2060, %v2130
      %v2163 = vadd.f32 %v2061, %v2131
      %v2164 = vadd.f32 %v2062, %v2132
      %v2165 = vadd.f32 %v2063, %v2133
      %v2166 = vadd.f32 %v2064, %v2134
      %v2167 = vadd.f32 %v2065, %v2135
      %v2168 = vadd.f32 %v2066, %v2136
      %v2169 = vadd.f32 %v2067, %v2137
      %v2170 = vadd.f32 %v2068, %v2138
      %v2171 = vadd.f32 %v2069, %v2139
      %v2172 = vadd.f32 %v2070, %v2140
      %v2173 = vadd.f32 %v2071, %v2141
      %v2174 = vadd.f32 %v2072, %v2142
      %v2175 = vadd.f32 %v2073, %v2143
      %v2176 = vadd.f32 %v2074, %v2144
      %v2177 = vadd.f32 %v2075, %v2145
      %v2178 = vadd.f32 %v2076, %v2146
      %v2179 = vadd.f32 %v2077, %v2147
      %v2180 = vld [vmem:[#allocation2 + $0x11f] sm:$0xff]
      %v2181 = vld [vmem:[#allocation2 + $0x127] sm:$0xff]
      %v2182 = vsel %vm1478, %v1546, 0.0
      %v2183 = vsel %vm1479, %v1547, 0.0
      %v2184 = vsel %vm1480, %v1548, 0.0
      %v2185 = vsel %vm1481, %v1549, 0.0
      %v2186 = vsel %vm1482, %v1550, 0.0
      %v2187 = vsel %vm1483, %v1551, 0.0
      %v2188 = vsel %vm1484, %v1552, 0.0
      %v2189 = vsel %vm1485, %v1553, 0.0
      %v2190 = vsel %vm1486, %v1554, 0.0
      %v2191 = vsel %vm1487, %v1555, 0.0
      %v2192 = vsel %vm1488, %v1556, 0.0
      %v2193 = vsel %vm1489, %v1557, 0.0
      %v2194 = vsel %vm1490, %v1558, 0.0
      %v2195 = vsel %vm1491, %v1559, 0.0
      %v2196 = vsel %vm1492, %v1560, 0.0
      %v2197 = vsel %vm1493, %v1561, 0.0
      %v2198 = vsel %vm1494, %v1562, 0.0
      %v2199 = vsel %vm1495, %v1563, 0.0
      %v2200 = vsel %vm1496, %v1564, 0.0
      %v2201 = vsel %vm1497, %v1565, 0.0
      %v2202 = vsel %vm1498, %v1566, 0.0
      %v2203 = vsel %vm1499, %v1567, 0.0
      %v2204 = vsel %vm1500, %v1568, 0.0
      %v2205 = vsel %vm1501, %v1569, 0.0
      %v2206 = vsel %vm1502, %v1570, 0.0
      %v2207 = vsel %vm1503, %v1571, 0.0
      %v2208 = vsel %vm1504, %v1572, 0.0
      %v2209 = vsel %vm1505, %v1573, 0.0
      %v2210 = vsel %vm1506, %v1906, 0.0
      %v2211 = vsel %vm1507, %v1907, 0.0
      %v2212 = vsel %vm1508, %v2180, 0.0
      %v2213 = vsel %vm1509, %v2181, 0.0
      %v2214 = vlaneseq
      %v2215 = vshrl.u32 %v2214, 7
      %v2216 = vsub.s32 6, %v2215
      %v2217 = vrot.slane %v1404, %v2216
      %v2218 = vmul.f32 %v2182, %v2217
      %v2219 = vmul.f32 %v2183, %v2217
      %v2220 = vmul.f32 %v2184, %v2217
      %v2221 = vmul.f32 %v2185, %v2217
      %v2222 = vmul.f32 %v2186, %v2217
      %v2223 = vmul.f32 %v2187, %v2217
      %v2224 = vmul.f32 %v2188, %v2217
      %v2225 = vmul.f32 %v2189, %v2217
      %v2226 = vmul.f32 %v2190, %v2217
      %v2227 = vmul.f32 %v2191, %v2217
      %v2228 = vmul.f32 %v2192, %v2217
      %v2229 = vmul.f32 %v2193, %v2217
      %v2230 = vmul.f32 %v2194, %v2217
      %v2231 = vmul.f32 %v2195, %v2217
      %v2232 = vmul.f32 %v2196, %v2217
      %v2233 = vmul.f32 %v2197, %v2217
      %v2234 = vmul.f32 %v2198, %v2217
      %v2235 = vmul.f32 %v2199, %v2217
      %v2236 = vmul.f32 %v2200, %v2217
      %v2237 = vmul.f32 %v2201, %v2217
      %v2238 = vmul.f32 %v2202, %v2217
      %v2239 = vmul.f32 %v2203, %v2217
      %v2240 = vmul.f32 %v2204, %v2217
      %v2241 = vmul.f32 %v2205, %v2217
      %v2242 = vmul.f32 %v2206, %v2217
      %v2243 = vmul.f32 %v2207, %v2217
      %v2244 = vmul.f32 %v2208, %v2217
      %v2245 = vmul.f32 %v2209, %v2217
      %v2246 = vmul.f32 %v2210, %v2217
      %v2247 = vmul.f32 %v2211, %v2217
      %v2248 = vmul.f32 %v2212, %v2217
      %v2249 = vmul.f32 %v2213, %v2217
      %v2250 = vadd.f32 %v2148, %v2218
      %v2251 = vadd.f32 %v2149, %v2219
      %v2252 = vadd.f32 %v2150, %v2220
      %v2253 = vadd.f32 %v2151, %v2221
      %v2254 = vadd.f32 %v2152, %v2222
      %v2255 = vadd.f32 %v2153, %v2223
      %v2256 = vadd.f32 %v2154, %v2224
      %v2257 = vadd.f32 %v2155, %v2225
      %v2258 = vadd.f32 %v2156, %v2226
      %v2259 = vadd.f32 %v2157, %v2227
      %v2260 = vadd.f32 %v2158, %v2228
      %v2261 = vadd.f32 %v2159, %v2229
      %v2262 = vadd.f32 %v2160, %v2230
      %v2263 = vadd.f32 %v2161, %v2231
      %v2264 = vadd.f32 %v2162, %v2232
      %v2265 = vadd.f32 %v2163, %v2233
      %v2266 = vadd.f32 %v2164, %v2234
      %v2267 = vadd.f32 %v2165, %v2235
      %v2268 = vadd.f32 %v2166, %v2236
      %v2269 = vadd.f32 %v2167, %v2237
      %v2270 = vadd.f32 %v2168, %v2238
      %v2271 = vadd.f32 %v2169, %v2239
      %v2272 = vadd.f32 %v2170, %v2240
      %v2273 = vadd.f32 %v2171, %v2241
      %v2274 = vadd.f32 %v2172, %v2242
      %v2275 = vadd.f32 %v2173, %v2243
      %v2276 = vadd.f32 %v2174, %v2244
      %v2277 = vadd.f32 %v2175, %v2245
      %v2278 = vadd.f32 %v2176, %v2246
      %v2279 = vadd.f32 %v2177, %v2247
      %v2280 = vadd.f32 %v2178, %v2248
      %v2281 = vadd.f32 %v2179, %v2249
      %v2282 = vld [vmem:[#allocation2 + $0x120] sm:$0xff]
      %v2283 = vld [vmem:[#allocation2 + $0x128] sm:$0xff]
      %v2284 = vlaneseq
      %v2285 = vshrl.u32 %v2284, 7
      %v2286 = vsub.s32 7, %v2285
      %v2287 = vrot.slane %v1404, %v2286
      %v2288 = vmul.f32 %v1678, %v2287
      %v2289 = vmul.f32 %v1679, %v2287
      %v2290 = vmul.f32 %v1680, %v2287
      %v2291 = vmul.f32 %v1681, %v2287
      %v2292 = vmul.f32 %v1682, %v2287
      %v2293 = vmul.f32 %v1683, %v2287
      %v2294 = vmul.f32 %v1684, %v2287
      %v2295 = vmul.f32 %v1685, %v2287
      %v2296 = vmul.f32 %v1686, %v2287
      %v2297 = vmul.f32 %v1687, %v2287
      %v2298 = vmul.f32 %v1688, %v2287
      %v2299 = vmul.f32 %v1689, %v2287
      %v2300 = vmul.f32 %v1690, %v2287
      %v2301 = vmul.f32 %v1691, %v2287
      %v2302 = vmul.f32 %v1692, %v2287
      %v2303 = vmul.f32 %v1693, %v2287
      %v2304 = vmul.f32 %v1694, %v2287
      %v2305 = vmul.f32 %v1695, %v2287
      %v2306 = vmul.f32 %v1696, %v2287
      %v2307 = vmul.f32 %v1697, %v2287
      %v2308 = vmul.f32 %v1698, %v2287
      %v2309 = vmul.f32 %v1699, %v2287
      %v2310 = vmul.f32 %v1700, %v2287
      %v2311 = vmul.f32 %v1701, %v2287
      %v2312 = vmul.f32 %v1702, %v2287
      %v2313 = vmul.f32 %v1703, %v2287
      %v2314 = vmul.f32 %v1704, %v2287
      %v2315 = vmul.f32 %v1705, %v2287
      %v2316 = vmul.f32 %v2008, %v2287
      %v2317 = vmul.f32 %v2009, %v2287
      %v2318 = vmul.f32 %v2282, %v2287
      %v2319 = vmul.f32 %v2283, %v2287
      %v2320 = vadd.f32 %v2250, %v2288
      %v2321 = vadd.f32 %v2251, %v2289
      %v2322 = vadd.f32 %v2252, %v2290
      %v2323 = vadd.f32 %v2253, %v2291
      %v2324 = vadd.f32 %v2254, %v2292
      %v2325 = vadd.f32 %v2255, %v2293
      %v2326 = vadd.f32 %v2256, %v2294
      %v2327 = vadd.f32 %v2257, %v2295
      %v2328 = vadd.f32 %v2258, %v2296
      %v2329 = vadd.f32 %v2259, %v2297
      %v2330 = vadd.f32 %v2260, %v2298
      %v2331 = vadd.f32 %v2261, %v2299
      %v2332 = vadd.f32 %v2262, %v2300
      %v2333 = vadd.f32 %v2263, %v2301
      %v2334 = vadd.f32 %v2264, %v2302
      %v2335 = vadd.f32 %v2265, %v2303
      %v2336 = vadd.f32 %v2266, %v2304
      %v2337 = vadd.f32 %v2267, %v2305
      %v2338 = vadd.f32 %v2268, %v2306
      %v2339 = vadd.f32 %v2269, %v2307
      %v2340 = vadd.f32 %v2270, %v2308
      %v2341 = vadd.f32 %v2271, %v2309
      %v2342 = vadd.f32 %v2272, %v2310
      %v2343 = vadd.f32 %v2273, %v2311
      %v2344 = vadd.f32 %v2274, %v2312
      %v2345 = vadd.f32 %v2275, %v2313
      %v2346 = vadd.f32 %v2276, %v2314
      %v2347 = vadd.f32 %v2277, %v2315
      %v2348 = vadd.f32 %v2278, %v2316
      %v2349 = vadd.f32 %v2279, %v2317
      %v2350 = vadd.f32 %v2280, %v2318
      %v2351 = vadd.f32 %v2281, %v2319
      %v2352 = vld [vmem:[#allocation2 + $0x121] sm:$0xff]
      %v2353 = vld [vmem:[#allocation2 + $0x129] sm:$0xff]
      %v2354 = vsel %vm1510, %v1778, 0.0
      %v2355 = vsel %vm1511, %v1779, 0.0
      %v2356 = vsel %vm1512, %v1780, 0.0
      %v2357 = vsel %vm1513, %v1781, 0.0
      %v2358 = vsel %vm1514, %v1782, 0.0
      %v2359 = vsel %vm1515, %v1783, 0.0
      %v2360 = vsel %vm1516, %v1784, 0.0
      %v2361 = vsel %vm1517, %v1785, 0.0
      %v2362 = vsel %vm1518, %v1786, 0.0
      %v2363 = vsel %vm1519, %v1787, 0.0
      %v2364 = vsel %vm1520, %v1788, 0.0
      %v2365 = vsel %vm1521, %v1789, 0.0
      %v2366 = vsel %vm1522, %v1790, 0.0
      %v2367 = vsel %vm1523, %v1791, 0.0
      %v2368 = vsel %vm1524, %v1792, 0.0
      %v2369 = vsel %vm1525, %v1793, 0.0
      %v2370 = vsel %vm1526, %v1794, 0.0
      %v2371 = vsel %vm1527, %v1795, 0.0
      %v2372 = vsel %vm1528, %v1796, 0.0
      %v2373 = vsel %vm1529, %v1797, 0.0
      %v2374 = vsel %vm1530, %v1798, 0.0
      %v2375 = vsel %vm1531, %v1799, 0.0
      %v2376 = vsel %vm1532, %v1800, 0.0
      %v2377 = vsel %vm1533, %v1801, 0.0
      %v2378 = vsel %vm1534, %v1802, 0.0
      %v2379 = vsel %vm1535, %v1803, 0.0
      %v2380 = vsel %vm1536, %v1804, 0.0
      %v2381 = vsel %vm1537, %v1805, 0.0
      %v2382 = vsel %vm1538, %v2078, 0.0
      %v2383 = vsel %vm1539, %v2079, 0.0
      %v2384 = vsel %vm1540, %v2352, 0.0
      %v2385 = vsel %vm1541, %v2353, 0.0
      %v2386 = vlaneseq
      %v2387 = vshrl.u32 %v2386, 7
      %v2388 = vsub.s32 0, %v2387
      %v2389 = vrot.slane %v1405, %v2388
      %v2390 = vmul.f32 %v2354, %v2389
      %v2391 = vmul.f32 %v2355, %v2389
      %v2392 = vmul.f32 %v2356, %v2389
      %v2393 = vmul.f32 %v2357, %v2389
      %v2394 = vmul.f32 %v2358, %v2389
      %v2395 = vmul.f32 %v2359, %v2389
      %v2396 = vmul.f32 %v2360, %v2389
      %v2397 = vmul.f32 %v2361, %v2389
      %v2398 = vmul.f32 %v2362, %v2389
      %v2399 = vmul.f32 %v2363, %v2389
      %v2400 = vmul.f32 %v2364, %v2389
      %v2401 = vmul.f32 %v2365, %v2389
      %v2402 = vmul.f32 %v2366, %v2389
      %v2403 = vmul.f32 %v2367, %v2389
      %v2404 = vmul.f32 %v2368, %v2389
      %v2405 = vmul.f32 %v2369, %v2389
      %v2406 = vmul.f32 %v2370, %v2389
      %v2407 = vmul.f32 %v2371, %v2389
      %v2408 = vmul.f32 %v2372, %v2389
      %v2409 = vmul.f32 %v2373, %v2389
      %v2410 = vmul.f32 %v2374, %v2389
      %v2411 = vmul.f32 %v2375, %v2389
      %v2412 = vmul.f32 %v2376, %v2389
      %v2413 = vmul.f32 %v2377, %v2389
      %v2414 = vmul.f32 %v2378, %v2389
      %v2415 = vmul.f32 %v2379, %v2389
      %v2416 = vmul.f32 %v2380, %v2389
      %v2417 = vmul.f32 %v2381, %v2389
      %v2418 = vmul.f32 %v2382, %v2389
      %v2419 = vmul.f32 %v2383, %v2389
      %v2420 = vmul.f32 %v2384, %v2389
      %v2421 = vmul.f32 %v2385, %v2389
      %v2422 = vadd.f32 %v2320, %v2390
      %v2423 = vadd.f32 %v2321, %v2391
      %v2424 = vadd.f32 %v2322, %v2392
      %v2425 = vadd.f32 %v2323, %v2393
      %v2426 = vadd.f32 %v2324, %v2394
      %v2427 = vadd.f32 %v2325, %v2395
      %v2428 = vadd.f32 %v2326, %v2396
      %v2429 = vadd.f32 %v2327, %v2397
      %v2430 = vadd.f32 %v2328, %v2398
      %v2431 = vadd.f32 %v2329, %v2399
      %v2432 = vadd.f32 %v2330, %v2400
      %v2433 = vadd.f32 %v2331, %v2401
      %v2434 = vadd.f32 %v2332, %v2402
      %v2435 = vadd.f32 %v2333, %v2403
      %v2436 = vadd.f32 %v2334, %v2404
      %v2437 = vadd.f32 %v2335, %v2405
      %v2438 = vadd.f32 %v2336, %v2406
      %v2439 = vadd.f32 %v2337, %v2407
      %v2440 = vadd.f32 %v2338, %v2408
      %v2441 = vadd.f32 %v2339, %v2409
      %v2442 = vadd.f32 %v2340, %v2410
      %v2443 = vadd.f32 %v2341, %v2411
      %v2444 = vadd.f32 %v2342, %v2412
      %v2445 = vadd.f32 %v2343, %v2413
      %v2446 = vadd.f32 %v2344, %v2414
      %v2447 = vadd.f32 %v2345, %v2415
      %v2448 = vadd.f32 %v2346, %v2416
      %v2449 = vadd.f32 %v2347, %v2417
      %v2450 = vadd.f32 %v2348, %v2418
      %v2451 = vadd.f32 %v2349, %v2419
      %v2452 = vadd.f32 %v2350, %v2420
      %v2453 = vadd.f32 %v2351, %v2421
      %v2454 = vmax.f32 %v2422, 0.0
      %v2455 = vmax.f32 %v2423, 0.0
      %v2456 = vmax.f32 %v2424, 0.0
      %v2457 = vmax.f32 %v2425, 0.0
      %v2458 = vmax.f32 %v2426, 0.0
      %v2459 = vmax.f32 %v2427, 0.0
      %v2460 = vmax.f32 %v2428, 0.0
      %v2461 = vmax.f32 %v2429, 0.0
      %v2462 = vmax.f32 %v2430, 0.0
      %v2463 = vmax.f32 %v2431, 0.0
      %v2464 = vmax.f32 %v2432, 0.0
      %v2465 = vmax.f32 %v2433, 0.0
      %v2466 = vmax.f32 %v2434, 0.0
      %v2467 = vmax.f32 %v2435, 0.0
      %v2468 = vmax.f32 %v2436, 0.0
      %v2469 = vmax.f32 %v2437, 0.0
      %v2470 = vmax.f32 %v2438, 0.0
      %v2471 = vmax.f32 %v2439, 0.0
      %v2472 = vmax.f32 %v2440, 0.0
      %v2473 = vmax.f32 %v2441, 0.0
      %v2474 = vmax.f32 %v2442, 0.0
      %v2475 = vmax.f32 %v2443, 0.0
      %v2476 = vmax.f32 %v2444, 0.0
      %v2477 = vmax.f32 %v2445, 0.0
      %v2478 = vmax.f32 %v2446, 0.0
      %v2479 = vmax.f32 %v2447, 0.0
      %v2480 = vmax.f32 %v2448, 0.0
      %v2481 = vmax.f32 %v2449, 0.0
      %v2482 = vmax.f32 %v2450, 0.0
      %v2483 = vmax.f32 %v2451, 0.0
      %v2484 = vmax.f32 %v2452, 0.0
      %v2485 = vmax.f32 %v2453, 0.0
      %v2486 = vld [vmem:[%s7] sm:$0xf]
      %v2487 = vld [vmem:[%s8] sm:$0x1]
      %v2489 = vlaneseq
      %v2490 = vshrl.u32 %v2489, 7
      %v2491 = vsub.s32 0, %v2490
      %v2492 = vrot.slane %v2487, %v2491
      %v2495 = vsel %vm536, %v2454, 0
      %v2498 = vsel %vm536, %v2455, 0
      %v2501 = vsel %vm536, %v2456, 0
      %v2504 = vsel %vm536, %v2457, 0
      %v2507 = vsel %vm536, %v2458, 0
      %v2510 = vsel %vm536, %v2459, 0
      %v2513 = vsel %vm536, %v2460, 0
      %v2516 = vsel %vm536, %v2461, 0
      %v2519 = vsel %vm536, %v2462, 0
      %v2522 = vsel %vm536, %v2463, 0
      %v2525 = vsel %vm536, %v2464, 0
      %v2528 = vsel %vm536, %v2465, 0
      %v2531 = vsel %vm536, %v2466, 0
      %v2534 = vsel %vm536, %v2467, 0
      %v2537 = vsel %vm536, %v2468, 0
      %v2540 = vsel %vm536, %v2469, 0
      %v2543 = vsel %vm536, %v2470, 0
      %v2546 = vsel %vm536, %v2471, 0
      %v2549 = vsel %vm536, %v2472, 0
      %v2552 = vsel %vm536, %v2473, 0
      %v2555 = vsel %vm536, %v2474, 0
      %v2558 = vsel %vm536, %v2475, 0
      %v2561 = vsel %vm536, %v2476, 0
      %v2564 = vsel %vm536, %v2477, 0
      %v2567 = vsel %vm536, %v2478, 0
      %v2570 = vsel %vm536, %v2479, 0
      %v2573 = vsel %vm536, %v2480, 0
      %v2576 = vsel %vm536, %v2481, 0
      %v2579 = vsel %vm536, %v2482, 0
      %v2582 = vsel %vm536, %v2483, 0
      %v2585 = vsel %vm536, %v2484, 0
      %v2588 = vsel %vm536, %v2485, 0
      %v2591 = vsel %vm633, %v2486, 0
      %2593 = vmatprep.subr.mxu0 0.0
      %2594 = vmatpush1.msra.mxu0 %v2591
      %2595 = vmatprep.subr.mxu0 0.0
      %2596 = vmatpush1.msra.mxu0 0.0
      %2597 = vmatprep.subr.mxu0 0.0
      %2598 = vmatpush1.msra.mxu0 0.0
      %2599 = vmatprep.subr.mxu0 0.0
      %2600 = vmatpush1.msra.mxu0 0.0
      %2601 = vmatprep.subr.mxu0 0.0
      %2602 = vmatpush1.msra.mxu0 0.0
      %2603 = vmatprep.subr.mxu0 0.0
      %2604 = vmatpush1.msra.mxu0 0.0
      %2605 = vmatprep.subr.mxu0 0.0
      %2606 = vmatpush1.msra.mxu0 0.0
      %2607 = vmatprep.subr.mxu0 0.0
      %2608 = vmatpush1.msra.mxu0 0.0
      %2609 = vmatprep.subr.mxu0 0.0
      %2610 = vmatpush1.msra.mxu0 0.0
      %2611 = vmatprep.subr.mxu0 0.0
      %2612 = vmatpush1.msra.mxu0 0.0
      %2613 = vmatprep.subr.mxu0 0.0
      %2614 = vmatpush1.msra.mxu0 0.0
      %2615 = vmatprep.subr.mxu0 0.0
      %2616 = vmatpush1.msra.mxu0 0.0
      %2617 = vmatprep.subr.mxu0 0.0
      %2618 = vmatpush1.msra.mxu0 0.0
      %2619 = vmatprep.subr.mxu0 0.0
      %2620 = vmatpush1.msra.mxu0 0.0
      %2621 = vmatprep.subr.mxu0 0.0
      %2622 = vmatpush1.msra.mxu0 0.0
      %2623 = vmatprep.subr.mxu0 0.0
      %2624 = vmatpush1.msra.mxu0 0.0
      %2625 = vmatprep.subr.mxu0 0.0
      %2626 = vmatpush1.msra.mxu0 0.0
      %2627 = vmatprep.subr.mxu0 0.0
      %2628 = vmatpush1.msra.mxu0 0.0
      %2629 = vmatprep.subr.mxu0 0.0
      %2630 = vmatpush1.msra.mxu0 0.0
      %2631 = vmatprep.subr.mxu0 0.0
      %2632 = vmatpush1.msra.mxu0 0.0
      %2633 = vmatprep.subr.mxu0 0.0
      %2634 = vmatpush1.msra.mxu0 0.0
      %2635 = vmatprep.subr.mxu0 0.0
      %2636 = vmatpush1.msra.mxu0 0.0
      %2637 = vmatprep.subr.mxu0 0.0
      %2638 = vmatpush1.msra.mxu0 0.0
      %2639 = vmatprep.subr.mxu0 0.0
      %2640 = vmatpush1.msra.mxu0 0.0
      %2641 = vmatprep.subr.mxu0 0.0
      %2642 = vmatpush1.msra.mxu0 0.0
      %2643 = vmatprep.subr.mxu0 0.0
      %2644 = vmatpush1.msra.mxu0 0.0
      %2645 = vmatprep.subr.mxu0 0.0
      %2646 = vmatpush1.msra.mxu0 0.0
      %2647 = vmatprep.subr.mxu0 0.0
      %2648 = vmatpush1.msra.mxu0 0.0
      %2649 = vmatprep.subr.mxu0 0.0
      %2650 = vmatpush1.msra.mxu0 0.0
      %2651 = vmatprep.subr.mxu0 0.0
      %2652 = vmatpush1.msra.mxu0 0.0
      %2653 = vmatprep.subr.mxu0 0.0
      %2654 = vmatpush1.msra.mxu0 0.0
      %2655 = vmatprep.subr.mxu0 0.0
      %2656 = vmatpush1.msra.mxu0 0.0
      %2657 = vmatprep.mubr.f32.mxu0 0.0
      %2658 = vmatmul.mubr.f32.gmra.mrb[0].mxu0 %v2495
      %v2659 = vpop.f32.mrb[0].mxu0
      %v2660 = vadd.f32 %v2492, %v2659
      %v2661 = vpop.f32.mrb[0].mxu0
      %2662 = vmatprep.mubr.f32.mxu0 0.0
      %2663 = vmatmul.mubr.f32.gmra.mrb[0].mxu0 %v2498
      %v2664 = vpop.f32.mrb[0].mxu0
      %v2665 = vadd.f32 %v2492, %v2664
      %v2666 = vpop.f32.mrb[0].mxu0
      %2667 = vmatprep.mubr.f32.mxu0 0.0
      %2668 = vmatmul.mubr.f32.gmra.mrb[0].mxu0 %v2501
      %v2669 = vpop.f32.mrb[0].mxu0
      %v2670 = vadd.f32 %v2492, %v2669
      %v2671 = vpop.f32.mrb[0].mxu0
      %2672 = vmatprep.mubr.f32.mxu0 0.0
      %2673 = vmatmul.mubr.f32.gmra.mrb[0].mxu0 %v2504
      %v2674 = vpop.f32.mrb[0].mxu0
      %v2675 = vadd.f32 %v2492, %v2674
      %v2676 = vpop.f32.mrb[0].mxu0
      %2677 = vmatprep.mubr.f32.mxu0 0.0
      %2678 = vmatmul.mubr.f32.gmra.mrb[0].mxu0 %v2507
      %v2679 = vpop.f32.mrb[0].mxu0
      %v2680 = vadd.f32 %v2492, %v2679
      %v2681 = vpop.f32.mrb[0].mxu0
      %2682 = vmatprep.mubr.f32.mxu0 0.0
      %2683 = vmatmul.mubr.f32.gmra.mrb[0].mxu0 %v2510
      %v2684 = vpop.f32.mrb[0].mxu0
      %v2685 = vadd.f32 %v2492, %v2684
      %v2686 = vpop.f32.mrb[0].mxu0
      %2687 = vmatprep.mubr.f32.mxu0 0.0
      %2688 = vmatmul.mubr.f32.gmra.mrb[0].mxu0 %v2513
      %v2689 = vpop.f32.mrb[0].mxu0
      %v2690 = vadd.f32 %v2492, %v2689
      %v2691 = vpop.f32.mrb[0].mxu0
      %2692 = vmatprep.mubr.f32.mxu0 0.0
      %2693 = vmatmul.mubr.f32.gmra.mrb[0].mxu0 %v2516
      %v2694 = vpop.f32.mrb[0].mxu0
      %v2695 = vadd.f32 %v2492, %v2694
      %v2696 = vpop.f32.mrb[0].mxu0
      %2697 = vmatprep.mubr.f32.mxu0 0.0
      %2698 = vmatmul.mubr.f32.gmra.mrb[0].mxu0 %v2519
      %v2699 = vpop.f32.mrb[0].mxu0
      %v2700 = vadd.f32 %v2492, %v2699
      %v2701 = vpop.f32.mrb[0].mxu0
      %2702 = vmatprep.mubr.f32.mxu0 0.0
      %2703 = vmatmul.mubr.f32.gmra.mrb[0].mxu0 %v2522
      %v2704 = vpop.f32.mrb[0].mxu0
      %v2705 = vadd.f32 %v2492, %v2704
      %v2706 = vpop.f32.mrb[0].mxu0
      %2707 = vmatprep.mubr.f32.mxu0 0.0
      %2708 = vmatmul.mubr.f32.gmra.mrb[0].mxu0 %v2525
      %v2709 = vpop.f32.mrb[0].mxu0
      %v2710 = vadd.f32 %v2492, %v2709
      %v2711 = vpop.f32.mrb[0].mxu0
      %2712 = vmatprep.mubr.f32.mxu0 0.0
      %2713 = vmatmul.mubr.f32.gmra.mrb[0].mxu0 %v2528
      %v2714 = vpop.f32.mrb[0].mxu0
      %v2715 = vadd.f32 %v2492, %v2714
      %v2716 = vpop.f32.mrb[0].mxu0
      %2717 = vmatprep.mubr.f32.mxu0 0.0
      %2718 = vmatmul.mubr.f32.gmra.mrb[0].mxu0 %v2531
      %v2719 = vpop.f32.mrb[0].mxu0
      %v2720 = vadd.f32 %v2492, %v2719
      %v2721 = vpop.f32.mrb[0].mxu0
      %2722 = vmatprep.mubr.f32.mxu0 0.0
      %2723 = vmatmul.mubr.f32.gmra.mrb[0].mxu0 %v2534
      %v2724 = vpop.f32.mrb[0].mxu0
      %v2725 = vadd.f32 %v2492, %v2724
      %v2726 = vpop.f32.mrb[0].mxu0
      %2727 = vmatprep.mubr.f32.mxu0 0.0
      %2728 = vmatmul.mubr.f32.gmra.mrb[0].mxu0 %v2537
      %v2729 = vpop.f32.mrb[0].mxu0
      %v2730 = vadd.f32 %v2492, %v2729
      %v2731 = vpop.f32.mrb[0].mxu0
      %2732 = vmatprep.mubr.f32.mxu0 0.0
      %2733 = vmatmul.mubr.f32.gmra.mrb[0].mxu0 %v2540
      %v2734 = vpop.f32.mrb[0].mxu0
      %v2735 = vadd.f32 %v2492, %v2734
      %v2736 = vpop.f32.mrb[0].mxu0
      %2737 = vmatprep.mubr.f32.mxu0 0.0
      %2738 = vmatmul.mubr.f32.gmra.mrb[0].mxu0 %v2543
      %v2739 = vpop.f32.mrb[0].mxu0
      %v2740 = vadd.f32 %v2492, %v2739
      %v2741 = vpop.f32.mrb[0].mxu0
      %2742 = vmatprep.mubr.f32.mxu0 0.0
      %2743 = vmatmul.mubr.f32.gmra.mrb[0].mxu0 %v2546
      %v2744 = vpop.f32.mrb[0].mxu0
      %v2745 = vadd.f32 %v2492, %v2744
      %v2746 = vpop.f32.mrb[0].mxu0
      %2747 = vmatprep.mubr.f32.mxu0 0.0
      %2748 = vmatmul.mubr.f32.gmra.mrb[0].mxu0 %v2549
      %v2749 = vpop.f32.mrb[0].mxu0
      %v2750 = vadd.f32 %v2492, %v2749
      %v2751 = vpop.f32.mrb[0].mxu0
      %2752 = vmatprep.mubr.f32.mxu0 0.0
      %2753 = vmatmul.mubr.f32.gmra.mrb[0].mxu0 %v2552
      %v2754 = vpop.f32.mrb[0].mxu0
      %v2755 = vadd.f32 %v2492, %v2754
      %v2756 = vpop.f32.mrb[0].mxu0
      %2757 = vmatprep.mubr.f32.mxu0 0.0
      %2758 = vmatmul.mubr.f32.gmra.mrb[0].mxu0 %v2555
      %v2759 = vpop.f32.mrb[0].mxu0
      %v2760 = vadd.f32 %v2492, %v2759
      %v2761 = vpop.f32.mrb[0].mxu0
      %2762 = vmatprep.mubr.f32.mxu0 0.0
      %2763 = vmatmul.mubr.f32.gmra.mrb[0].mxu0 %v2558
      %v2764 = vpop.f32.mrb[0].mxu0
      %v2765 = vadd.f32 %v2492, %v2764
      %v2766 = vpop.f32.mrb[0].mxu0
      %2767 = vmatprep.mubr.f32.mxu0 0.0
      %2768 = vmatmul.mubr.f32.gmra.mrb[0].mxu0 %v2561
      %v2769 = vpop.f32.mrb[0].mxu0
      %v2770 = vadd.f32 %v2492, %v2769
      %v2771 = vpop.f32.mrb[0].mxu0
      %2772 = vmatprep.mubr.f32.mxu0 0.0
      %2773 = vmatmul.mubr.f32.gmra.mrb[0].mxu0 %v2564
      %v2774 = vpop.f32.mrb[0].mxu0
      %v2775 = vadd.f32 %v2492, %v2774
      %v2776 = vpop.f32.mrb[0].mxu0
      %2777 = vmatprep.mubr.f32.mxu0 0.0
      %2778 = vmatmul.mubr.f32.gmra.mrb[0].mxu0 %v2567
      %v2779 = vpop.f32.mrb[0].mxu0
      %v2780 = vadd.f32 %v2492, %v2779
      %v2781 = vpop.f32.mrb[0].mxu0
      %2782 = vmatprep.mubr.f32.mxu0 0.0
      %2783 = vmatmul.mubr.f32.gmra.mrb[0].mxu0 %v2570
      %v2784 = vpop.f32.mrb[0].mxu0
      %v2785 = vadd.f32 %v2492, %v2784
      %v2786 = vpop.f32.mrb[0].mxu0
      %2787 = vmatprep.mubr.f32.mxu0 0.0
      %2788 = vmatmul.mubr.f32.gmra.mrb[0].mxu0 %v2573
      %v2789 = vpop.f32.mrb[0].mxu0
      %v2790 = vadd.f32 %v2492, %v2789
      %v2791 = vpop.f32.mrb[0].mxu0
      %2792 = vmatprep.mubr.f32.mxu0 0.0
      %2793 = vmatmul.mubr.f32.gmra.mrb[0].mxu0 %v2576
      %v2794 = vpop.f32.mrb[0].mxu0
      %v2795 = vadd.f32 %v2492, %v2794
      %v2796 = vpop.f32.mrb[0].mxu0
      %2797 = vmatprep.mubr.f32.mxu0 0.0
      %2798 = vmatmul.mubr.f32.gmra.mrb[0].mxu0 %v2579
      %v2799 = vpop.f32.mrb[0].mxu0
      %v2800 = vadd.f32 %v2492, %v2799
      %v2801 = vpop.f32.mrb[0].mxu0
      %2802 = vmatprep.mubr.f32.mxu0 0.0
      %2803 = vmatmul.mubr.f32.gmra.mrb[0].mxu0 %v2582
      %v2804 = vpop.f32.mrb[0].mxu0
      %v2805 = vadd.f32 %v2492, %v2804
      %v2806 = vpop.f32.mrb[0].mxu0
      %2807 = vmatprep.mubr.f32.mxu0 0.0
      %2808 = vmatmul.mubr.f32.gmra.mrb[0].mxu0 %v2585
      %v2809 = vpop.f32.mrb[0].mxu0
      %v2810 = vadd.f32 %v2492, %v2809
      %v2811 = vpop.f32.mrb[0].mxu0
      %2812 = vmatprep.mubr.f32.mxu0 0.0
      %2813 = vmatmul.mubr.f32.gmra.mrb[0].mxu0 %v2588
      %v2814 = vpop.f32.mrb[0].mxu0
      %v2815 = vadd.f32 %v2492, %v2814
      %v2816 = vpop.f32.mrb[0].mxu0
      %2817 = vdwg.mxu0
      %2818 = vst.msk [vmem:[%s494] sm:$0xff] %vm536, %v2660
      %2819 = vst.msk [vmem:[%s494 + $0x8] sm:$0xff] %vm536, %v2665
      %2820 = vst.msk [vmem:[%s494 + $0x10] sm:$0xff] %vm536, %v2670
      %2821 = vst.msk [vmem:[%s494 + $0x18] sm:$0xff] %vm536, %v2675
      %2822 = vst.msk [vmem:[%s494 + $0x20] sm:$0xff] %vm536, %v2680
      %2823 = vst.msk [vmem:[%s494 + $0x28] sm:$0xff] %vm536, %v2685
      %2824 = vst.msk [vmem:[%s494 + $0x30] sm:$0xff] %vm536, %v2690
      %2825 = vst.msk [vmem:[%s494 + $0x38] sm:$0xff] %vm536, %v2695
      %2826 = vst.msk [vmem:[%s494 + $0x40] sm:$0xff] %vm536, %v2700
      %2827 = vst.msk [vmem:[%s494 + $0x48] sm:$0xff] %vm536, %v2705
      %2828 = vst.msk [vmem:[%s494 + $0x50] sm:$0xff] %vm536, %v2710
      %2829 = vst.msk [vmem:[%s494 + $0x58] sm:$0xff] %vm536, %v2715
      %2830 = vst.msk [vmem:[%s494 + $0x60] sm:$0xff] %vm536, %v2720
      %2831 = vst.msk [vmem:[%s494 + $0x68] sm:$0xff] %vm536, %v2725
      %2832 = vst.msk [vmem:[%s494 + $0x70] sm:$0xff] %vm536, %v2730
      %2833 = vst.msk [vmem:[%s494 + $0x78] sm:$0xff] %vm536, %v2735
      %2834 = vst.msk [vmem:[%s494 + $0x80] sm:$0xff] %vm536, %v2740
      %2835 = vst.msk [vmem:[%s494 + $0x88] sm:$0xff] %vm536, %v2745
      %2836 = vst.msk [vmem:[%s494 + $0x90] sm:$0xff] %vm536, %v2750
      %2837 = vst.msk [vmem:[%s494 + $0x98] sm:$0xff] %vm536, %v2755
      %2838 = vst.msk [vmem:[%s494 + $0xa0] sm:$0xff] %vm536, %v2760
      %2839 = vst.msk [vmem:[%s494 + $0xa8] sm:$0xff] %vm536, %v2765
      %2840 = vst.msk [vmem:[%s494 + $0xb0] sm:$0xff] %vm536, %v2770
      %2841 = vst.msk [vmem:[%s494 + $0xb8] sm:$0xff] %vm536, %v2775
      %2842 = vst.msk [vmem:[%s494 + $0xc0] sm:$0xff] %vm536, %v2780
      %2843 = vst.msk [vmem:[%s494 + $0xc8] sm:$0xff] %vm536, %v2785
      %2844 = vst.msk [vmem:[%s494 + $0xd0] sm:$0xff] %vm536, %v2790
      %2845 = vst.msk [vmem:[%s494 + $0xd8] sm:$0xff] %vm536, %v2795
      %2846 = vst.msk [vmem:[%s494 + $0xe0] sm:$0xff] %vm536, %v2800
      %2847 = vst.msk [vmem:[%s494 + $0xe8] sm:$0xff] %vm536, %v2805
      %2848 = vst.msk [vmem:[%s494 + $0xf0] sm:$0xff] %vm536, %v2810
      %2849 = vst.msk [vmem:[%s494 + $0xf8] sm:$0xff] %vm536, %v2815
      %s2850 = smul.u32 32, %s25
      %p2851 = scmp.lt.s32.totalorder %s24, 1
      %s2852 = scalar_select %p2851, %s24, 1
      %p2853 = scmp.lt.s32.totalorder %s2850, 31
      %s2854 = scalar_select %p2853, %s2850, 31
      %s2855 = smul.addr %s2852, 32
      %s2856 = sadd.s32 %s2854, %s2855
      %s2857 = smul.addr %s2856, 8
      %s2858 = scalar_lea.vmem %s9, %s2857
      // Predicated region
      $region57: #{tpu_custom_call.1} parent=55 // pred_check
        %p2859 = pneg %p278
      $region58: #{tpu_custom_call.1} parent=55 // pred_check_branch
        %2861 = sbr.rel (%p2859) target = $region60
      $region59: #{tpu_custom_call.1} parent=55 // pred_region
        %s2862 = smul.u32 32, %s25
      $region60: #{tpu_custom_call.1} parent=55 // pred_fallthru
        _
    $region56: #{tpu_custom_call.1} parent=5 // pred_fallthru
      _
    %p2863 = scmp.le.s32.totalorder 2, %s15
    // Predicated region
    $region61: #{tpu_custom_call.1} parent=5 // pred_check
      %p2864 = pneg %p2863
    $region62: #{tpu_custom_call.1} parent=5 // pred_check_branch
      %2866 = sbr.rel (%p2864) target = $region64
    $region63: #{tpu_custom_call.1} parent=5 // pred_region
      %s2867 = ssub.s32 %s15, 2
      // Predicated region
      $region65: #{tpu_custom_call.1} parent=63 // pred_check
        %p2868 = pneg %p284
      $region66: #{tpu_custom_call.1} parent=63 // pred_check_branch
        %2870 = sbr.rel (%p2868) target = $region68
      $region67: #{tpu_custom_call.1} parent=63 // pred_region
        %s2871 = smul.u32 32, %s27
        %p2872 = scmp.lt.s32.totalorder %s26, 1
        %s2873 = scalar_select %p2872, %s26, 1
        %p2874 = scmp.lt.s32.totalorder %s2871, 31
        %s2875 = scalar_select %p2874, %s2871, 31
        %s2876 = smul.addr %s2873, 32
        %s2877 = sadd.s32 %s2875, %s2876
        %s2878 = smul.addr %s2877, 8
        %s2879 = scalar_lea.vmem %s9, %s2878
      $region68: #{tpu_custom_call.1} parent=63 // pred_fallthru
        _
    $region64: #{tpu_custom_call.1} parent=5 // pred_fallthru
      _
  $region6: #{tpu_custom_call.1} parent=0 // loop_footer
    %s19 = sadd.s32 1, %s15
  $region7: #{tpu_custom_call.1} parent=0 // loop_footer_branch
    %14 = sbr.rel target = $region3
  $region8: #{tpu_custom_call.1} parent=0 // loop_exit
    _

</llo_original>
